<compile_context>
chip_gen: v7x
topology: tpu7x:2x2x1
jax: 0.10.0
libtpu: 0.0.40
codegen_flags: <defaults>
</compile_context>

<pallas_src>
import numpy as np
import jax
import jax.numpy as jnp
from jax import lax
from jax.experimental import pallas as pl
from jax.experimental.pallas import tpu as pltpu

# hyper-parameters implied by the module
D_MODEL = 128                       # nn.Linear(3, 128) / Mamba d_model
D_STATE = 16                        # Mamba d_state
D_CONV = 4                          # Mamba d_conv
EXPAND = 2
D_INNER = EXPAND * D_MODEL          # 256
DT_RANK = (D_MODEL + 15) // 16      # 8


def _sigmoid(x):
    return 1.0 / (1.0 + jnp.exp(-x))


def _softplus(x):
    return jnp.where(x > 20.0, x, jnp.log(1.0 + jnp.exp(x)))


# ----------------------------- Pallas kernel --------------------------------
def nu_selector_forward(ipt, p, temperature=1.0, batch_tile=None):
    """ipt: (B, L, 3) float32 -> softmax probabilities (B, n_out) float32."""
    B, L, F = ipt.shape
    n_out = p["W2"].shape[1]
    inv_temp = 1.0 / float(temperature)

    # pad time to a multiple of 8 (sublane tile); padded steps are masked out
    Lp = ((L + 7) // 8) * 8
    if Lp != L:
        ipt = jnp.pad(ipt, ((0, 0), (0, Lp - L), (0, 0)))
    pow2_Lp = (Lp & (Lp - 1)) == 0

    # ---- batch tile: VMEM-aware, >= 2 grid steps (megacore) when B >= 16 ---
    try:
        vmem_cap = int(pltpu.get_tpu_info().vmem_capacity_bytes)
    except Exception:
        vmem_cap = 64 << 20                         # conservative (v7x VMEM)
    if batch_tile is None:
        bytes_per_row = 16 * 1024                   # live f32 intermediates/row
        rows_budget = max(Lp, (vmem_cap * 2 // 5) // bytes_per_row)
        m_target = max(Lp, min(2048, rows_budget))
        tb = max(1, m_target // Lp)
        if B >= 16:                                 # keep >= 2 grid steps
            tb = min(tb, max(8, ((B // 2) // 8) * 8))
        batch_tile = tb
    if int(batch_tile) >= B:
        TB = B                                      # single tile == full array
    else:
        TB = max(8, (int(batch_tile) // 8) * 8)     # sublane-aligned tile
    B_pad = ((B + TB - 1) // TB) * TB
    if B_pad != B:
        ipt = jnp.pad(ipt, ((0, B_pad - B), (0, 0), (0, 0)))
    M = TB * Lp

    # flatten (batch, time) so the kernel works on dense 2-D rows
    ipt_flat = ipt.reshape(B_pad * Lp, F)

    # exact 0/1 segment-sum matrix (TB, M): seg[s, r] = 1 iff row r in sample s
    rows = np.arange(M)
    seg = jnp.asarray((rows[None, :] // Lp ==
                       np.arange(TB)[:, None]).astype(np.float32))

    # ---- host-side weight prep ---------------------------------------------
    w1a = p["W1"][0:1, :] * (1.0 / 127.0)           # fold the /127 input scale
    w1b = p["W1"][1:2, :]                           # input channel 2 is zeroed
    # fused x_proj + dt_proj: [Wxp_dt | Wxp_B | Wxp_C] -> (256, 288),
    # delta_pre on aligned lanes [0, 256)
    wxp_fused = jnp.concatenate(
        [p["Wxp"][:, :DT_RANK] @ p["Wdt"], p["Wxp"][:, DT_RANK:]], axis=1)
    # lane-dense output: pad n_out up to a multiple of 128 lanes; padded
    # logits get bias -1e30 so softmax assigns them ~0 probability
    n_pad = ((n_out + 127) // 128) * 128
    w2p = jnp.zeros((D_MODEL, n_pad), jnp.float32).at[:, :n_out].set(p["W2"])
    b2p = jnp.full((1, n_pad), -1e30, jnp.float32).at[:, :n_out].set(p["b2"])

    # S4D-real structure check: A[d, n] == -(n+1) for all d -> power trick
    try:
        a_t = np.asarray(p["A_T"])
        tgt = -np.arange(1, D_STATE + 1, dtype=np.float32)[:, None]
        use_power_trick = bool(np.allclose(
            a_t, np.broadcast_to(tgt, a_t.shape), rtol=1e-5, atol=1e-6))
    except Exception:                               # traced params -> fallback
        use_power_trick = False

    def kernel(ipt_ref, w1a_ref, w1b_ref, b1_ref, win_ref, wconv_ref,
               bconv_ref, wxp_ref, bdt_ref, at_ref, d_ref, wout_ref,
               w2_ref, b2_ref, seg_ref, out_ref):
        ip = ipt_ref[...]                                  # (M, 3)
        x0 = ip[:, 0:1]                                    # /127 lives in w1a
        x1 = ip[:, 1:2]
        # Linear(3,128): channel 2 zeroed -> two rank-1 VPU FMAs (no MXU),
        # eval-mode Dropout (identity), Sigmoid.
        h1 = _sigmoid(x0 * w1a_ref[...] + x1 * w1b_ref[...] + b1_ref[...])

        # ---------------- Mamba block ------------------------------------
        # in_proj (bias=False): (M,128) @ (128,512) -> x / z halves
        xz = jnp.dot(h1, win_ref[...], preferred_element_type=jnp.float32)
        xm = xz[:, :D_INNER]                               # (M, 256)
        zg = xz[:, D_INNER:]                               # (M, 256)

        # per-row within-sample time index, (M,1): lane-broadcast masks
        if pow2_Lp:
            t_idx = lax.broadcasted_iota(jnp.int32, (M, 1), 0) & (Lp - 1)
        else:
            t_idx = jnp.tile(lax.broadcasted_iota(jnp.int32, (Lp, 1), 0),
                             (TB, 1))

        # depthwise causal conv1d (kernel 4, left zero pad), per sample
        wconv = wconv_ref[...]                             # (4, 256)
        conv = jnp.zeros((M, D_INNER), jnp.float32) + bconv_ref[...]
        for k in range(D_CONV):
            s = D_CONV - 1 - k                             # time shift
            if s == 0:
                xs = xm
            else:
                xs = jnp.where(t_idx >= s,
                               pltpu.roll(xm, shift=s, axis=0), 0.0)
            conv = conv + xs * wconv[k:k + 1, :]
        u = conv * _sigmoid(conv)                          # SiLU, (M, 256)

        # fused x_proj + dt_proj: one (M,256) @ (256,288) matmul
        xd = jnp.dot(u, wxp_ref[...], preferred_element_type=jnp.float32)
        delta = _softplus(xd[:, :D_INNER] + bdt_ref[...])  # (M, 256)
        if Lp != L:
            delta = jnp.where(t_idx < L, delta, 0.0)       # mask padded steps
        bmat = xd[:, D_INNER:D_INNER + D_STATE]            # (M, 16)
        cmat = xd[:, D_INNER + D_STATE:D_INNER + 2 * D_STATE]
        du = delta * u

        # segmented suffix sums via log-step rolls (no matmul, no (M,M) op):
        #   tot  -> inclusive suffix sum of delta within each sample
        #   crep -> last real step's C broadcast to every row of its sample
        last = t_idx == (L - 1)
        tot = delta
        crep = jnp.where(last, cmat, 0.0)
        step = 1
        while step < Lp:
            keep = t_idx < (Lp - step)
            tot = tot + jnp.where(
                keep, pltpu.roll(tot, shift=M - step, axis=0), 0.0)
            crep = crep + jnp.where(
                keep, pltpu.roll(crep, shift=M - step, axis=0), 0.0)
            step *= 2
        ssum = tot - delta                                 # S_t = sum_{t'>t} d

        wb = crep * bmat                                   # (M, 16)

        # closed-form scan: acc[r,d] = sum_n wb[r,n] * exp(A[d,n] * S[r,d])
        if use_power_trick:
            # S4D-real A: A[d,n] = -(n+1) -> exp(A*S) = E^(n+1), E = exp(-S).
            # One EUP pass + 15 VPU multiplies instead of 16 EUP passes.
            e1 = jnp.exp(-ssum)
            pw = e1
            acc = wb[:, 0:1] * pw
            for n in range(1, D_STATE):
                pw = pw * e1
                acc = acc + wb[:, n:n + 1] * pw
        else:
            at = at_ref[...]                               # (16, 256) = A^T
            acc = jnp.zeros((M, D_INNER), jnp.float32)
            for n in range(D_STATE):
                acc = acc + wb[:, n:n + 1] * jnp.exp(at[n:n + 1, :] * ssum)

        # D-skip folded into the per-row sum (only the last real step adds it)
        y_rows = acc * du + jnp.where(last, u * d_ref[...], 0.0)
        zm = jnp.where(last, zg, 0.0)

        # segmented time reductions as DEFAULT-precision 0/1 matmuls (the MXU
        # has slack once the HIGHEST / (M,M) structural matmuls are removed)
        segm = seg_ref[...]                                # (TB, M)
        y_sum = jnp.dot(segm, y_rows, preferred_element_type=jnp.float32)
        z_last = jnp.dot(segm, zm, preferred_element_type=jnp.float32)

        # SiLU(z) gate, out_proj (bias=False), Linear(128, n_out), temperature
        # and softmax -- all on (TB, .) rows only
        y = y_sum * (z_last * _sigmoid(z_last))
        so = jnp.dot(y, wout_ref[...], preferred_element_type=jnp.float32)
        logits = (jnp.dot(so, w2_ref[...], preferred_element_type=jnp.float32)
                  + b2_ref[...]) * inv_temp                # (TB, n_pad)
        m = jnp.max(logits, axis=-1, keepdims=True)
        e = jnp.exp(logits - m)
        out_ref[...] = e / jnp.sum(e, axis=-1, keepdims=True)

    weights = [w1a, w1b, p["b1"], p["Win"], p["Wconv"], p["bconv"],
               wxp_fused, p["bdt"], p["A_T"], p["Dvec"], p["Wout"],
               w2p, b2p, seg]

    def full_spec(arr):
        nd = arr.ndim
        return pl.BlockSpec(arr.shape, lambda b, _nd=nd: (0,) * _nd)

    grid_spec = pltpu.PrefetchScalarGridSpec(
        num_scalar_prefetch=0,
        grid=(B_pad // TB,),
        in_specs=[pl.BlockSpec((M, F), lambda b: (b, 0))]
                 + [full_spec(w) for w in weights],
        out_specs=pl.BlockSpec((TB, n_pad), lambda b: (b, 0)),
    )

    out = pl.pallas_call(
        kernel,
        grid_spec=grid_spec,
        out_shape=jax.ShapeDtypeStruct((B_pad, n_pad), jnp.float32),
        compiler_params=pltpu.CompilerParams(
            dimension_semantics=("parallel",),
            vmem_limit_bytes=int(min(vmem_cap, 128 << 20) * 3 // 4)),
    )(ipt_flat, *weights)
    return out[:B, :n_out]


# --------------------------- deterministic params ---------------------------
def init_params(key, n_out):
    ks = jax.random.split(key, 10)

    def rnd(k, shape, s):
        return (jax.random.normal(k, shape, jnp.float32) * s).astype(jnp.float32)

    p = {}
    p["W1"] = rnd(ks[0], (3, D_MODEL), 1.0 / np.sqrt(3.0))
    p["b1"] = rnd(ks[1], (1, D_MODEL), 0.05)
    p["Win"] = rnd(ks[2], (D_MODEL, 2 * D_INNER), 1.0 / np.sqrt(D_MODEL))
    p["Wconv"] = rnd(ks[3], (D_CONV, D_INNER), 1.0 / np.sqrt(D_CONV))
    p["bconv"] = rnd(ks[4], (1, D_INNER), 0.05)
    p["Wxp"] = rnd(ks[5], (D_INNER, DT_RANK + 2 * D_STATE),
                   1.0 / np.sqrt(D_INNER))
    p["Wdt"] = rnd(ks[6], (DT_RANK, D_INNER), 1.0 / np.sqrt(DT_RANK))
    # dt bias = inv_softplus(0.01)  (Mamba-style small-dt init)
    p["bdt"] = jnp.full((1, D_INNER), float(np.log(np.expm1(0.01))),
                        jnp.float32)
    # A = -exp(A_log), A_log = log(1..d_state)   (S4D-real init)
    a_log = jnp.log(jnp.arange(1, D_STATE + 1, dtype=jnp.float32))
    p["A_log"] = jnp.broadcast_to(a_log[None, :], (D_INNER, D_STATE))
    p["A_T"] = jnp.asarray((-jnp.exp(p["A_log"])).T)           # (16, 256)
    p["Dvec"] = jnp.ones((1, D_INNER), jnp.float32)
    p["Wout"] = rnd(ks[7], (D_INNER, D_MODEL), 1.0 / np.sqrt(D_INNER))
    p["W2"] = rnd(ks[8], (D_MODEL, n_out), 1.0 / np.sqrt(D_MODEL))
    p["b2"] = rnd(ks[9], (1, n_out), 0.05)
    return p


# ------------------------- pure-JAX reference (check) -----------------------
def reference_forward(ipt, p, temperature=1.0):
    Bsz, L, _ = ipt.shape
    x0 = ipt[:, :, 0] / 127.0
    x1 = ipt[:, :, 1] / 1.0
    # channel 2 of the module input is zeroed, so Linear(3,128) reduces to
    # two rank-1 terms (mathematically identical to x @ W1 with x[:,:,2]=0)
    h1 = _sigmoid(x0[..., None] * p["W1"][0] + x1[..., None] * p["W1"][1]
                  + p["b1"])
    xz = h1 @ p["Win"]
    xm, z = xz[..., :D_INNER], xz[..., D_INNER:]
    xpad = jnp.pad(xm, ((0, 0), (D_CONV - 1, 0), (0, 0)))
    conv = jnp.zeros_like(xm) + p["bconv"]
    for k in range(D_CONV):
        conv = conv + xpad[:, k:k + L, :] * p["Wconv"][k]
    u = conv * _sigmoid(conv)
    x_dbl = u @ p["Wxp"]
    delta = _softplus(x_dbl[..., :DT_RANK] @ p["Wdt"] + p["bdt"])
    Bm = x_dbl[..., DT_RANK:DT_RANK + D_STATE]
    Cm = x_dbl[..., DT_RANK + D_STATE:]
    A = -jnp.exp(p["A_log"])                                   # (256, 16)
    h = jnp.zeros((Bsz, D_INNER, D_STATE), jnp.float32)
    for t in range(L):
        dA = jnp.exp(delta[:, t, :, None] * A)
        dBu = (delta[:, t, :] * u[:, t, :])[:, :, None] * Bm[:, t, None, :]
        h = dA * h + dBu
    y_last = jnp.einsum("bdn,bn->bd", h, Cm[:, -1, :])
    y = y_last + u[:, -1, :] * p["Dvec"]
    y = y * (z[:, -1, :] * _sigmoid(z[:, -1, :]))
    logits = ((y @ p["Wout"]) @ p["W2"] + p["b2"]) / temperature
    m = jnp.max(logits, axis=-1, keepdims=True)
    e = jnp.exp(logits - m)
    return e / jnp.sum(e, axis=-1, keepdims=True)


if __name__ == "__main__":
    list_data = [2, 3, 5, 7, 11, 13]        # synthetic list_data -> n_out = 6
    n_out = len(list_data)

    key = jax.random.PRNGKey(0)
    k_param, k_in1, k_in2 = jax.random.split(key, 3)
    params = init_params(k_param, n_out)

    # check 1: multi-tile batch grid (B=20 -> TB=8, 3 grid steps, batch pad)
    B, L = 20, 8
    ipt = jax.random.uniform(k_in1, (B, L, 3), jnp.float32, 0.0, 127.0)
    out = jax.block_until_ready(
        nu_selector_forward(ipt, params, temperature=1.0))
    ref = reference_forward(ipt, params, temperature=1.0)
    assert out.shape == (B, n_out)
    assert np.allclose(np.asarray(out), np.asarray(ref),
                       atol=1e-2, rtol=1e-2), (np.asarray(out),
                                               np.asarray(ref))

    # check 2: single tile, non-multiple-of-8 sequence length (time padded)
    B2, L2 = 2, 5
    ipt2 = jax.random.uniform(k_in2, (B2, L2, 3), jnp.float32, 0.0, 127.0)
    out2 = jax.block_until_ready(
        nu_selector_forward(ipt2, params, temperature=2.0))
    ref2 = reference_forward(ipt2, params, temperature=2.0)
    assert out2.shape == (B2, n_out)
    assert np.allclose(np.asarray(out2), np.asarray(ref2),
                       atol=1e-2, rtol=1e-2), (np.asarray(out2),
                                               np.asarray(ref2))

    print("KERNEL_OK")
</pallas_src>

<mosaic_0001>
module attributes {stable_mosaic.version = 11 : i64} {
  func.func @kernel(%arg0: i32, %arg1: memref<64x3xf32, #tpu.memory_space<vmem>>, %arg2: memref<1x128xf32, #tpu.memory_space<vmem>>, %arg3: memref<1x128xf32, #tpu.memory_space<vmem>>, %arg4: memref<1x128xf32, #tpu.memory_space<vmem>>, %arg5: memref<128x512xf32, #tpu.memory_space<vmem>>, %arg6: memref<4x256xf32, #tpu.memory_space<vmem>>, %arg7: memref<1x256xf32, #tpu.memory_space<vmem>>, %arg8: memref<256x288xf32, #tpu.memory_space<vmem>>, %arg9: memref<1x256xf32, #tpu.memory_space<vmem>>, %arg10: memref<16x256xf32, #tpu.memory_space<vmem>>, %arg11: memref<1x256xf32, #tpu.memory_space<vmem>>, %arg12: memref<256x128xf32, #tpu.memory_space<vmem>>, %arg13: memref<128x128xf32, #tpu.memory_space<vmem>>, %arg14: memref<1x128xf32, #tpu.memory_space<vmem>>, %arg15: memref<8x64xf32, #tpu.memory_space<vmem>>, %arg16: memref<8x128xf32, #tpu.memory_space<vmem>>) attributes {dimension_semantics = [#tpu.dimension_semantics<parallel>], iteration_bounds = array<i64: 3>, scalar_prefetch = 0 : i64, scratch_operands = 0 : i64, tpu.core_type = #tpu.core_type<tc>, window_params = [{transform_indices = @transform_0, window_bounds = array<i64: 64, 3>}, {pipeline_mode = #tpu.pipeline_mode<synchronous>, transform_indices = @transform_1, window_bounds = array<i64: 1, 128>}, {pipeline_mode = #tpu.pipeline_mode<synchronous>, transform_indices = @transform_2, window_bounds = array<i64: 1, 128>}, {pipeline_mode = #tpu.pipeline_mode<synchronous>, transform_indices = @transform_3, window_bounds = array<i64: 1, 128>}, {pipeline_mode = #tpu.pipeline_mode<synchronous>, transform_indices = @transform_4, window_bounds = array<i64: 128, 512>}, {pipeline_mode = #tpu.pipeline_mode<synchronous>, transform_indices = @transform_5, window_bounds = array<i64: 4, 256>}, {pipeline_mode = #tpu.pipeline_mode<synchronous>, transform_indices = @transform_6, window_bounds = array<i64: 1, 256>}, {pipeline_mode = #tpu.pipeline_mode<synchronous>, transform_indices = @transform_7, window_bounds = array<i64: 256, 288>}, {pipeline_mode = #tpu.pipeline_mode<synchronous>, transform_indices = @transform_8, window_bounds = array<i64: 1, 256>}, {pipeline_mode = #tpu.pipeline_mode<synchronous>, transform_indices = @transform_9, window_bounds = array<i64: 16, 256>}, {pipeline_mode = #tpu.pipeline_mode<synchronous>, transform_indices = @transform_10, window_bounds = array<i64: 1, 256>}, {pipeline_mode = #tpu.pipeline_mode<synchronous>, transform_indices = @transform_11, window_bounds = array<i64: 256, 128>}, {pipeline_mode = #tpu.pipeline_mode<synchronous>, transform_indices = @transform_12, window_bounds = array<i64: 128, 128>}, {pipeline_mode = #tpu.pipeline_mode<synchronous>, transform_indices = @transform_13, window_bounds = array<i64: 1, 128>}, {pipeline_mode = #tpu.pipeline_mode<synchronous>, transform_indices = @transform_14, window_bounds = array<i64: 8, 64>}, {transform_indices = @transform_15, window_bounds = array<i64: 8, 128>}]} {
    %c0 = arith.constant 0 : index
    %c0_0 = arith.constant 0 : index
    %0 = vector.load %arg1[%c0, %c0_0] : memref<64x3xf32, #tpu.memory_space<vmem>>, vector<64x3xf32>
    %1 = vector.extract_strided_slice %0 {offsets = [0, 0], sizes = [64, 1], strides = [1, 1]} : vector<64x3xf32> to vector<64x1xf32>
    %2 = vector.extract_strided_slice %0 {offsets = [0, 1], sizes = [64, 1], strides = [1, 1]} : vector<64x3xf32> to vector<64x1xf32>
    %c0_1 = arith.constant 0 : index
    %c0_2 = arith.constant 0 : index
    %3 = vector.load %arg2[%c0_1, %c0_2] : memref<1x128xf32, #tpu.memory_space<vmem>>, vector<1x128xf32>
    %4 = vector.broadcast %1 : vector<64x1xf32> to vector<64x128xf32>
    %5 = vector.broadcast %3 : vector<1x128xf32> to vector<64x128xf32>
    %6 = arith.mulf %4, %5 : vector<64x128xf32>
    %c0_3 = arith.constant 0 : index
    %c0_4 = arith.constant 0 : index
    %7 = vector.load %arg3[%c0_3, %c0_4] : memref<1x128xf32, #tpu.memory_space<vmem>>, vector<1x128xf32>
    %8 = vector.broadcast %2 : vector<64x1xf32> to vector<64x128xf32>
    %9 = vector.broadcast %7 : vector<1x128xf32> to vector<64x128xf32>
    %10 = arith.mulf %8, %9 : vector<64x128xf32>
    %11 = arith.addf %6, %10 : vector<64x128xf32>
    %c0_5 = arith.constant 0 : index
    %c0_6 = arith.constant 0 : index
    %12 = vector.load %arg4[%c0_5, %c0_6] : memref<1x128xf32, #tpu.memory_space<vmem>>, vector<1x128xf32>
    %13 = vector.broadcast %12 : vector<1x128xf32> to vector<64x128xf32>
    %14 = arith.addf %11, %13 : vector<64x128xf32>
    %cst = arith.constant 0.000000e+00 : f32
    %15 = vector.broadcast %cst : f32 to vector<64x128xf32>
    %16 = arith.subf %15, %14 : vector<64x128xf32>
    %17 = math.exp %16 : vector<64x128xf32>
    %cst_7 = arith.constant 1.000000e+00 : f32
    %18 = vector.broadcast %cst_7 : f32 to vector<64x128xf32>
    %19 = arith.addf %18, %17 : vector<64x128xf32>
    %cst_8 = arith.constant 1.000000e+00 : f32
    %20 = vector.broadcast %cst_8 : f32 to vector<64x128xf32>
    %21 = arith.divf %20, %19 : vector<64x128xf32>
    %c0_9 = arith.constant 0 : index
    %c0_10 = arith.constant 0 : index
    %22 = vector.load %arg5[%c0_9, %c0_10] : memref<128x512xf32, #tpu.memory_space<vmem>>, vector<128x512xf32>
    %cst_11 = arith.constant dense<0.000000e+00> : vector<64x512xf32>
    %23 = tpu.matmul %21, %22, %cst_11 {dimension_numbers = #tpu.dot_dimension_numbers<[1], [0], [0], [1], [0, 0, 1, 1], [], []>} : vector<64x128xf32>, vector<128x512xf32>, vector<64x512xf32> -> vector<64x512xf32>
    %24 = vector.extract_strided_slice %23 {offsets = [0, 0], sizes = [64, 256], strides = [1, 1]} : vector<64x512xf32> to vector<64x256xf32>
    %25 = vector.extract_strided_slice %23 {offsets = [0, 256], sizes = [64, 256], strides = [1, 1]} : vector<64x512xf32> to vector<64x256xf32>
    %26 = tpu.iota {dimensions = array<i32: 0>} : vector<64x1xi32>
    %c7_i32 = arith.constant 7 : i32
    %27 = vector.broadcast %c7_i32 : i32 to vector<64x1xi32>
    %28 = arith.andi %26, %27 : vector<64x1xi32>
    %c0_12 = arith.constant 0 : index
    %c0_13 = arith.constant 0 : index
    %29 = vector.load %arg6[%c0_12, %c0_13] : memref<4x256xf32, #tpu.memory_space<vmem>>, vector<4x256xf32>
    %cst_14 = arith.constant 0.000000e+00 : f32
    %30 = vector.broadcast %cst_14 : f32 to vector<64x256xf32>
    %c0_15 = arith.constant 0 : index
    %c0_16 = arith.constant 0 : index
    %31 = vector.load %arg7[%c0_15, %c0_16] : memref<1x256xf32, #tpu.memory_space<vmem>>, vector<1x256xf32>
    %32 = vector.broadcast %31 : vector<1x256xf32> to vector<64x256xf32>
    %33 = arith.addf %30, %32 : vector<64x256xf32>
    %c3_i32 = arith.constant 3 : i32
    %34 = vector.broadcast %c3_i32 : i32 to vector<64x1xi32>
    %35 = arith.cmpi sge, %28, %34 : vector<64x1xi32>
    %c3_i32_17 = arith.constant 3 : i32
    %36 = tpu.dynamic_rotate %24 by %c3_i32_17 dim 0 : vector<64x256xf32>, i32 -> vector<64x256xf32>
    %cst_18 = arith.constant 0.000000e+00 : f32
    %37 = vector.shape_cast %35 : vector<64x1xi1> to vector<64x1xi1>
    %38 = vector.broadcast %37 : vector<64x1xi1> to vector<64x256xi1>
    %39 = vector.broadcast %cst_18 : f32 to vector<64x256xf32>
    %40 = arith.select %38, %36, %39 : vector<64x256xi1>, vector<64x256xf32>
    %41 = vector.extract_strided_slice %29 {offsets = [0, 0], sizes = [1, 256], strides = [1, 1]} : vector<4x256xf32> to vector<1x256xf32>
    %42 = vector.broadcast %41 : vector<1x256xf32> to vector<64x256xf32>
    %43 = arith.mulf %40, %42 : vector<64x256xf32>
    %44 = arith.addf %33, %43 : vector<64x256xf32>
    %c2_i32 = arith.constant 2 : i32
    %45 = vector.broadcast %c2_i32 : i32 to vector<64x1xi32>
    %46 = arith.cmpi sge, %28, %45 : vector<64x1xi32>
    %c2_i32_19 = arith.constant 2 : i32
    %47 = tpu.dynamic_rotate %24 by %c2_i32_19 dim 0 : vector<64x256xf32>, i32 -> vector<64x256xf32>
    %cst_20 = arith.constant 0.000000e+00 : f32
    %48 = vector.shape_cast %46 : vector<64x1xi1> to vector<64x1xi1>
    %49 = vector.broadcast %48 : vector<64x1xi1> to vector<64x256xi1>
    %50 = vector.broadcast %cst_20 : f32 to vector<64x256xf32>
    %51 = arith.select %49, %47, %50 : vector<64x256xi1>, vector<64x256xf32>
    %52 = vector.extract_strided_slice %29 {offsets = [1, 0], sizes = [1, 256], strides = [1, 1]} : vector<4x256xf32> to vector<1x256xf32>
    %53 = vector.broadcast %52 : vector<1x256xf32> to vector<64x256xf32>
    %54 = arith.mulf %51, %53 : vector<64x256xf32>
    %55 = arith.addf %44, %54 : vector<64x256xf32>
    %c1_i32 = arith.constant 1 : i32
    %56 = vector.broadcast %c1_i32 : i32 to vector<64x1xi32>
    %57 = arith.cmpi sge, %28, %56 : vector<64x1xi32>
    %c1_i32_21 = arith.constant 1 : i32
    %58 = tpu.dynamic_rotate %24 by %c1_i32_21 dim 0 : vector<64x256xf32>, i32 -> vector<64x256xf32>
    %cst_22 = arith.constant 0.000000e+00 : f32
    %59 = vector.shape_cast %57 : vector<64x1xi1> to vector<64x1xi1>
    %60 = vector.broadcast %59 : vector<64x1xi1> to vector<64x256xi1>
    %61 = vector.broadcast %cst_22 : f32 to vector<64x256xf32>
    %62 = arith.select %60, %58, %61 : vector<64x256xi1>, vector<64x256xf32>
    %63 = vector.extract_strided_slice %29 {offsets = [2, 0], sizes = [1, 256], strides = [1, 1]} : vector<4x256xf32> to vector<1x256xf32>
    %64 = vector.broadcast %63 : vector<1x256xf32> to vector<64x256xf32>
    %65 = arith.mulf %62, %64 : vector<64x256xf32>
    %66 = arith.addf %55, %65 : vector<64x256xf32>
    %67 = vector.extract_strided_slice %29 {offsets = [3, 0], sizes = [1, 256], strides = [1, 1]} : vector<4x256xf32> to vector<1x256xf32>
    %68 = vector.broadcast %67 : vector<1x256xf32> to vector<64x256xf32>
    %69 = arith.mulf %24, %68 : vector<64x256xf32>
    %70 = arith.addf %66, %69 : vector<64x256xf32>
    %cst_23 = arith.constant 0.000000e+00 : f32
    %71 = vector.broadcast %cst_23 : f32 to vector<64x256xf32>
    %72 = arith.subf %71, %70 : vector<64x256xf32>
    %73 = math.exp %72 : vector<64x256xf32>
    %cst_24 = arith.constant 1.000000e+00 : f32
    %74 = vector.broadcast %cst_24 : f32 to vector<64x256xf32>
    %75 = arith.addf %74, %73 : vector<64x256xf32>
    %cst_25 = arith.constant 1.000000e+00 : f32
    %76 = vector.broadcast %cst_25 : f32 to vector<64x256xf32>
    %77 = arith.divf %76, %75 : vector<64x256xf32>
    %78 = arith.mulf %70, %77 : vector<64x256xf32>
    %c0_26 = arith.constant 0 : index
    %c0_27 = arith.constant 0 : index
    %79 = vector.load %arg8[%c0_26, %c0_27] : memref<256x288xf32, #tpu.memory_space<vmem>>, vector<256x288xf32>
    %cst_28 = arith.constant dense<0.000000e+00> : vector<64x288xf32>
    %80 = tpu.matmul %78, %79, %cst_28 {dimension_numbers = #tpu.dot_dimension_numbers<[1], [0], [0], [1], [0, 0, 1, 1], [], []>} : vector<64x256xf32>, vector<256x288xf32>, vector<64x288xf32> -> vector<64x288xf32>
    %81 = vector.extract_strided_slice %80 {offsets = [0, 0], sizes = [64, 256], strides = [1, 1]} : vector<64x288xf32> to vector<64x256xf32>
    %c0_29 = arith.constant 0 : index
    %c0_30 = arith.constant 0 : index
    %82 = vector.load %arg9[%c0_29, %c0_30] : memref<1x256xf32, #tpu.memory_space<vmem>>, vector<1x256xf32>
    %83 = vector.broadcast %82 : vector<1x256xf32> to vector<64x256xf32>
    %84 = arith.addf %81, %83 : vector<64x256xf32>
    %cst_31 = arith.constant 2.000000e+01 : f32
    %85 = vector.broadcast %cst_31 : f32 to vector<64x256xf32>
    %86 = arith.cmpf ogt, %84, %85 : vector<64x256xf32>
    %87 = math.exp %84 : vector<64x256xf32>
    %cst_32 = arith.constant 1.000000e+00 : f32
    %88 = vector.broadcast %cst_32 : f32 to vector<64x256xf32>
    %89 = arith.addf %88, %87 : vector<64x256xf32>
    %90 = math.log %89 : vector<64x256xf32>
    %91 = arith.select %86, %84, %90 : vector<64x256xi1>, vector<64x256xf32>
    %92 = vector.extract_strided_slice %80 {offsets = [0, 256], sizes = [64, 16], strides = [1, 1]} : vector<64x288xf32> to vector<64x16xf32>
    %93 = vector.extract_strided_slice %80 {offsets = [0, 272], sizes = [64, 16], strides = [1, 1]} : vector<64x288xf32> to vector<64x16xf32>
    %94 = arith.mulf %91, %78 : vector<64x256xf32>
    %c7_i32_33 = arith.constant 7 : i32
    %95 = vector.broadcast %c7_i32_33 : i32 to vector<64x1xi32>
    %96 = arith.cmpi eq, %28, %95 : vector<64x1xi32>
    %cst_34 = arith.constant 0.000000e+00 : f32
    %97 = vector.shape_cast %96 : vector<64x1xi1> to vector<64x1xi1>
    %98 = vector.broadcast %97 : vector<64x1xi1> to vector<64x16xi1>
    %99 = vector.broadcast %cst_34 : f32 to vector<64x16xf32>
    %100 = arith.select %98, %93, %99 : vector<64x16xi1>, vector<64x16xf32>
    %c7_i32_35 = arith.constant 7 : i32
    %101 = vector.broadcast %c7_i32_35 : i32 to vector<64x1xi32>
    %102 = arith.cmpi slt, %28, %101 : vector<64x1xi32>
    %c63_i32 = arith.constant 63 : i32
    %103 = tpu.dynamic_rotate %91 by %c63_i32 dim 0 : vector<64x256xf32>, i32 -> vector<64x256xf32>
    %cst_36 = arith.constant 0.000000e+00 : f32
    %104 = vector.shape_cast %102 : vector<64x1xi1> to vector<64x1xi1>
    %105 = vector.broadcast %104 : vector<64x1xi1> to vector<64x256xi1>
    %106 = vector.broadcast %cst_36 : f32 to vector<64x256xf32>
    %107 = arith.select %105, %103, %106 : vector<64x256xi1>, vector<64x256xf32>
    %108 = arith.addf %91, %107 : vector<64x256xf32>
    %c63_i32_37 = arith.constant 63 : i32
    %109 = tpu.dynamic_rotate %100 by %c63_i32_37 dim 0 : vector<64x16xf32>, i32 -> vector<64x16xf32>
    %cst_38 = arith.constant 0.000000e+00 : f32
    %110 = vector.shape_cast %102 : vector<64x1xi1> to vector<64x1xi1>
    %111 = vector.broadcast %110 : vector<64x1xi1> to vector<64x16xi1>
    %112 = vector.broadcast %cst_38 : f32 to vector<64x16xf32>
    %113 = arith.select %111, %109, %112 : vector<64x16xi1>, vector<64x16xf32>
    %114 = arith.addf %100, %113 : vector<64x16xf32>
    %c6_i32 = arith.constant 6 : i32
    %115 = vector.broadcast %c6_i32 : i32 to vector<64x1xi32>
    %116 = arith.cmpi slt, %28, %115 : vector<64x1xi32>
    %c62_i32 = arith.constant 62 : i32
    %117 = tpu.dynamic_rotate %108 by %c62_i32 dim 0 : vector<64x256xf32>, i32 -> vector<64x256xf32>
    %cst_39 = arith.constant 0.000000e+00 : f32
    %118 = vector.shape_cast %116 : vector<64x1xi1> to vector<64x1xi1>
    %119 = vector.broadcast %118 : vector<64x1xi1> to vector<64x256xi1>
    %120 = vector.broadcast %cst_39 : f32 to vector<64x256xf32>
    %121 = arith.select %119, %117, %120 : vector<64x256xi1>, vector<64x256xf32>
    %122 = arith.addf %108, %121 : vector<64x256xf32>
    %c62_i32_40 = arith.constant 62 : i32
    %123 = tpu.dynamic_rotate %114 by %c62_i32_40 dim 0 : vector<64x16xf32>, i32 -> vector<64x16xf32>
    %cst_41 = arith.constant 0.000000e+00 : f32
    %124 = vector.shape_cast %116 : vector<64x1xi1> to vector<64x1xi1>
    %125 = vector.broadcast %124 : vector<64x1xi1> to vector<64x16xi1>
    %126 = vector.broadcast %cst_41 : f32 to vector<64x16xf32>
    %127 = arith.select %125, %123, %126 : vector<64x16xi1>, vector<64x16xf32>
    %128 = arith.addf %114, %127 : vector<64x16xf32>
    %c4_i32 = arith.constant 4 : i32
    %129 = vector.broadcast %c4_i32 : i32 to vector<64x1xi32>
    %130 = arith.cmpi slt, %28, %129 : vector<64x1xi32>
    %c60_i32 = arith.constant 60 : i32
    %131 = tpu.dynamic_rotate %122 by %c60_i32 dim 0 : vector<64x256xf32>, i32 -> vector<64x256xf32>
    %cst_42 = arith.constant 0.000000e+00 : f32
    %132 = vector.shape_cast %130 : vector<64x1xi1> to vector<64x1xi1>
    %133 = vector.broadcast %132 : vector<64x1xi1> to vector<64x256xi1>
    %134 = vector.broadcast %cst_42 : f32 to vector<64x256xf32>
    %135 = arith.select %133, %131, %134 : vector<64x256xi1>, vector<64x256xf32>
    %136 = arith.addf %122, %135 : vector<64x256xf32>
    %c60_i32_43 = arith.constant 60 : i32
    %137 = tpu.dynamic_rotate %128 by %c60_i32_43 dim 0 : vector<64x16xf32>, i32 -> vector<64x16xf32>
    %cst_44 = arith.constant 0.000000e+00 : f32
    %138 = vector.shape_cast %130 : vector<64x1xi1> to vector<64x1xi1>
    %139 = vector.broadcast %138 : vector<64x1xi1> to vector<64x16xi1>
    %140 = vector.broadcast %cst_44 : f32 to vector<64x16xf32>
    %141 = arith.select %139, %137, %140 : vector<64x16xi1>, vector<64x16xf32>
    %142 = arith.addf %128, %141 : vector<64x16xf32>
    %143 = arith.subf %136, %91 : vector<64x256xf32>
    %144 = arith.mulf %142, %92 : vector<64x16xf32>
    %cst_45 = arith.constant 0.000000e+00 : f32
    %145 = vector.broadcast %cst_45 : f32 to vector<64x256xf32>
    %146 = arith.subf %145, %143 : vector<64x256xf32>
    %147 = math.exp %146 : vector<64x256xf32>
    %148 = vector.extract_strided_slice %144 {offsets = [0, 0], sizes = [64, 1], strides = [1, 1]} : vector<64x16xf32> to vector<64x1xf32>
    %149 = vector.broadcast %148 : vector<64x1xf32> to vector<64x256xf32>
    %150 = arith.mulf %149, %147 : vector<64x256xf32>
    %151 = arith.mulf %147, %147 : vector<64x256xf32>
    %152 = vector.extract_strided_slice %144 {offsets = [0, 1], sizes = [64, 1], strides = [1, 1]} : vector<64x16xf32> to vector<64x1xf32>
    %153 = vector.broadcast %152 : vector<64x1xf32> to vector<64x256xf32>
    %154 = arith.mulf %153, %151 : vector<64x256xf32>
    %155 = arith.addf %150, %154 : vector<64x256xf32>
    %156 = arith.mulf %151, %147 : vector<64x256xf32>
    %157 = vector.extract_strided_slice %144 {offsets = [0, 2], sizes = [64, 1], strides = [1, 1]} : vector<64x16xf32> to vector<64x1xf32>
    %158 = vector.broadcast %157 : vector<64x1xf32> to vector<64x256xf32>
    %159 = arith.mulf %158, %156 : vector<64x256xf32>
    %160 = arith.addf %155, %159 : vector<64x256xf32>
    %161 = arith.mulf %156, %147 : vector<64x256xf32>
    %162 = vector.extract_strided_slice %144 {offsets = [0, 3], sizes = [64, 1], strides = [1, 1]} : vector<64x16xf32> to vector<64x1xf32>
    %163 = vector.broadcast %162 : vector<64x1xf32> to vector<64x256xf32>
    %164 = arith.mulf %163, %161 : vector<64x256xf32>
    %165 = arith.addf %160, %164 : vector<64x256xf32>
    %166 = arith.mulf %161, %147 : vector<64x256xf32>
    %167 = vector.extract_strided_slice %144 {offsets = [0, 4], sizes = [64, 1], strides = [1, 1]} : vector<64x16xf32> to vector<64x1xf32>
    %168 = vector.broadcast %167 : vector<64x1xf32> to vector<64x256xf32>
    %169 = arith.mulf %168, %166 : vector<64x256xf32>
    %170 = arith.addf %165, %169 : vector<64x256xf32>
    %171 = arith.mulf %166, %147 : vector<64x256xf32>
    %172 = vector.extract_strided_slice %144 {offsets = [0, 5], sizes = [64, 1], strides = [1, 1]} : vector<64x16xf32> to vector<64x1xf32>
    %173 = vector.broadcast %172 : vector<64x1xf32> to vector<64x256xf32>
    %174 = arith.mulf %173, %171 : vector<64x256xf32>
    %175 = arith.addf %170, %174 : vector<64x256xf32>
    %176 = arith.mulf %171, %147 : vector<64x256xf32>
    %177 = vector.extract_strided_slice %144 {offsets = [0, 6], sizes = [64, 1], strides = [1, 1]} : vector<64x16xf32> to vector<64x1xf32>
    %178 = vector.broadcast %177 : vector<64x1xf32> to vector<64x256xf32>
    %179 = arith.mulf %178, %176 : vector<64x256xf32>
    %180 = arith.addf %175, %179 : vector<64x256xf32>
    %181 = arith.mulf %176, %147 : vector<64x256xf32>
    %182 = vector.extract_strided_slice %144 {offsets = [0, 7], sizes = [64, 1], strides = [1, 1]} : vector<64x16xf32> to vector<64x1xf32>
    %183 = vector.broadcast %182 : vector<64x1xf32> to vector<64x256xf32>
    %184 = arith.mulf %183, %181 : vector<64x256xf32>
    %185 = arith.addf %180, %184 : vector<64x256xf32>
    %186 = arith.mulf %181, %147 : vector<64x256xf32>
    %187 = vector.extract_strided_slice %144 {offsets = [0, 8], sizes = [64, 1], strides = [1, 1]} : vector<64x16xf32> to vector<64x1xf32>
    %188 = vector.broadcast %187 : vector<64x1xf32> to vector<64x256xf32>
    %189 = arith.mulf %188, %186 : vector<64x256xf32>
    %190 = arith.addf %185, %189 : vector<64x256xf32>
    %191 = arith.mulf %186, %147 : vector<64x256xf32>
    %192 = vector.extract_strided_slice %144 {offsets = [0, 9], sizes = [64, 1], strides = [1, 1]} : vector<64x16xf32> to vector<64x1xf32>
    %193 = vector.broadcast %192 : vector<64x1xf32> to vector<64x256xf32>
    %194 = arith.mulf %193, %191 : vector<64x256xf32>
    %195 = arith.addf %190, %194 : vector<64x256xf32>
    %196 = arith.mulf %191, %147 : vector<64x256xf32>
    %197 = vector.extract_strided_slice %144 {offsets = [0, 10], sizes = [64, 1], strides = [1, 1]} : vector<64x16xf32> to vector<64x1xf32>
    %198 = vector.broadcast %197 : vector<64x1xf32> to vector<64x256xf32>
    %199 = arith.mulf %198, %196 : vector<64x256xf32>
    %200 = arith.addf %195, %199 : vector<64x256xf32>
    %201 = arith.mulf %196, %147 : vector<64x256xf32>
    %202 = vector.extract_strided_slice %144 {offsets = [0, 11], sizes = [64, 1], strides = [1, 1]} : vector<64x16xf32> to vector<64x1xf32>
    %203 = vector.broadcast %202 : vector<64x1xf32> to vector<64x256xf32>
    %204 = arith.mulf %203, %201 : vector<64x256xf32>
    %205 = arith.addf %200, %204 : vector<64x256xf32>
    %206 = arith.mulf %201, %147 : vector<64x256xf32>
    %207 = vector.extract_strided_slice %144 {offsets = [0, 12], sizes = [64, 1], strides = [1, 1]} : vector<64x16xf32> to vector<64x1xf32>
    %208 = vector.broadcast %207 : vector<64x1xf32> to vector<64x256xf32>
    %209 = arith.mulf %208, %206 : vector<64x256xf32>
    %210 = arith.addf %205, %209 : vector<64x256xf32>
    %211 = arith.mulf %206, %147 : vector<64x256xf32>
    %212 = vector.extract_strided_slice %144 {offsets = [0, 13], sizes = [64, 1], strides = [1, 1]} : vector<64x16xf32> to vector<64x1xf32>
    %213 = vector.broadcast %212 : vector<64x1xf32> to vector<64x256xf32>
    %214 = arith.mulf %213, %211 : vector<64x256xf32>
    %215 = arith.addf %210, %214 : vector<64x256xf32>
    %216 = arith.mulf %211, %147 : vector<64x256xf32>
    %217 = vector.extract_strided_slice %144 {offsets = [0, 14], sizes = [64, 1], strides = [1, 1]} : vector<64x16xf32> to vector<64x1xf32>
    %218 = vector.broadcast %217 : vector<64x1xf32> to vector<64x256xf32>
    %219 = arith.mulf %218, %216 : vector<64x256xf32>
    %220 = arith.addf %215, %219 : vector<64x256xf32>
    %221 = arith.mulf %216, %147 : vector<64x256xf32>
    %222 = vector.extract_strided_slice %144 {offsets = [0, 15], sizes = [64, 1], strides = [1, 1]} : vector<64x16xf32> to vector<64x1xf32>
    %223 = vector.broadcast %222 : vector<64x1xf32> to vector<64x256xf32>
    %224 = arith.mulf %223, %221 : vector<64x256xf32>
    %225 = arith.addf %220, %224 : vector<64x256xf32>
    %226 = arith.mulf %225, %94 : vector<64x256xf32>
    %c0_46 = arith.constant 0 : index
    %c0_47 = arith.constant 0 : index
    %227 = vector.load %arg11[%c0_46, %c0_47] : memref<1x256xf32, #tpu.memory_space<vmem>>, vector<1x256xf32>
    %228 = vector.broadcast %227 : vector<1x256xf32> to vector<64x256xf32>
    %229 = arith.mulf %78, %228 : vector<64x256xf32>
    %cst_48 = arith.constant 0.000000e+00 : f32
    %230 = vector.shape_cast %96 : vector<64x1xi1> to vector<64x1xi1>
    %231 = vector.broadcast %230 : vector<64x1xi1> to vector<64x256xi1>
    %232 = vector.broadcast %cst_48 : f32 to vector<64x256xf32>
    %233 = arith.select %231, %229, %232 : vector<64x256xi1>, vector<64x256xf32>
    %234 = arith.addf %226, %233 : vector<64x256xf32>
    %cst_49 = arith.constant 0.000000e+00 : f32
    %235 = vector.shape_cast %96 : vector<64x1xi1> to vector<64x1xi1>
    %236 = vector.broadcast %235 : vector<64x1xi1> to vector<64x256xi1>
    %237 = vector.broadcast %cst_49 : f32 to vector<64x256xf32>
    %238 = arith.select %236, %25, %237 : vector<64x256xi1>, vector<64x256xf32>
    %c0_50 = arith.constant 0 : index
    %c0_51 = arith.constant 0 : index
    %239 = vector.load %arg15[%c0_50, %c0_51] : memref<8x64xf32, #tpu.memory_space<vmem>>, vector<8x64xf32>
    %cst_52 = arith.constant dense<0.000000e+00> : vector<8x256xf32>
    %240 = tpu.matmul %239, %234, %cst_52 {dimension_numbers = #tpu.dot_dimension_numbers<[1], [0], [0], [1], [0, 0, 1, 1], [], []>} : vector<8x64xf32>, vector<64x256xf32>, vector<8x256xf32> -> vector<8x256xf32>
    %cst_53 = arith.constant dense<0.000000e+00> : vector<8x256xf32>
    %241 = tpu.matmul %239, %238, %cst_53 {dimension_numbers = #tpu.dot_dimension_numbers<[1], [0], [0], [1], [0, 0, 1, 1], [], []>} : vector<8x64xf32>, vector<64x256xf32>, vector<8x256xf32> -> vector<8x256xf32>
    %cst_54 = arith.constant 0.000000e+00 : f32
    %242 = vector.broadcast %cst_54 : f32 to vector<8x256xf32>
    %243 = arith.subf %242, %241 : vector<8x256xf32>
    %244 = math.exp %243 : vector<8x256xf32>
    %cst_55 = arith.constant 1.000000e+00 : f32
    %245 = vector.broadcast %cst_55 : f32 to vector<8x256xf32>
    %246 = arith.addf %245, %244 : vector<8x256xf32>
    %cst_56 = arith.constant 1.000000e+00 : f32
    %247 = vector.broadcast %cst_56 : f32 to vector<8x256xf32>
    %248 = arith.divf %247, %246 : vector<8x256xf32>
    %249 = arith.mulf %241, %248 : vector<8x256xf32>
    %250 = arith.mulf %240, %249 : vector<8x256xf32>
    %c0_57 = arith.constant 0 : index
    %c0_58 = arith.constant 0 : index
    %251 = vector.load %arg12[%c0_57, %c0_58] : memref<256x128xf32, #tpu.memory_space<vmem>>, vector<256x128xf32>
    %cst_59 = arith.constant dense<0.000000e+00> : vector<8x128xf32>
    %252 = tpu.matmul %250, %251, %cst_59 {dimension_numbers = #tpu.dot_dimension_numbers<[1], [0], [0], [1], [0, 0, 1, 1], [], []>} : vector<8x256xf32>, vector<256x128xf32>, vector<8x128xf32> -> vector<8x128xf32>
    %c0_60 = arith.constant 0 : index
    %c0_61 = arith.constant 0 : index
    %253 = vector.load %arg13[%c0_60, %c0_61] : memref<128x128xf32, #tpu.memory_space<vmem>>, vector<128x128xf32>
    %cst_62 = arith.constant dense<0.000000e+00> : vector<8x128xf32>
    %254 = tpu.matmul %252, %253, %cst_62 {dimension_numbers = #tpu.dot_dimension_numbers<[1], [0], [0], [1], [0, 0, 1, 1], [], []>} : vector<8x128xf32>, vector<128x128xf32>, vector<8x128xf32> -> vector<8x128xf32>
    %c0_63 = arith.constant 0 : index
    %c0_64 = arith.constant 0 : index
    %255 = vector.load %arg14[%c0_63, %c0_64] : memref<1x128xf32, #tpu.memory_space<vmem>>, vector<1x128xf32>
    %256 = vector.broadcast %255 : vector<1x128xf32> to vector<8x128xf32>
    %257 = arith.addf %254, %256 : vector<8x128xf32>
    %cst_65 = arith.constant 1.000000e+00 : f32
    %258 = vector.broadcast %cst_65 : f32 to vector<8x128xf32>
    %259 = arith.mulf %257, %258 : vector<8x128xf32>
    %cst_66 = arith.constant dense<0xFF800000> : vector<8xf32>
    %260 = vector.multi_reduction <maximumf>, %259, %cst_66 [1] : vector<8x128xf32> to vector<8xf32>
    %261 = vector.shape_cast %260 : vector<8xf32> to vector<8x1xf32>
    %262 = vector.broadcast %261 : vector<8x1xf32> to vector<8x128xf32>
    %263 = arith.subf %259, %262 : vector<8x128xf32>
    %264 = math.exp %263 : vector<8x128xf32>
    %cst_67 = arith.constant dense<0.000000e+00> : vector<8xf32>
    %265 = vector.multi_reduction <add>, %264, %cst_67 [1] : vector<8x128xf32> to vector<8xf32>
    %266 = vector.shape_cast %265 : vector<8xf32> to vector<8x1xf32>
    %267 = vector.broadcast %266 : vector<8x1xf32> to vector<8x128xf32>
    %268 = arith.divf %264, %267 : vector<8x128xf32>
    %c0_68 = arith.constant 0 : index
    %c0_69 = arith.constant 0 : index
    %269 = vector.load %arg16[%c0_68, %c0_69] : memref<8x128xf32, #tpu.memory_space<vmem>>, vector<8x128xf32>
    tpu.vector_store %arg16[%c0_68, %c0_69], %268 {strides = array<i32>} : memref<8x128xf32, #tpu.memory_space<vmem>>, vector<8x128xf32>,
    return
  }
  func.func @transform_0(%arg0: i32) -> (i32, i32) {
    %c0_i32 = arith.constant 0 : i32
    %c0_i32_0 = arith.constant 0 : i32
    return %arg0, %c0_i32 : i32, i32
  }
  func.func @transform_1(%arg0: i32) -> (i32, i32) {
    %c0_i32 = arith.constant 0 : i32
    %c0_i32_0 = arith.constant 0 : i32
    %c0_i32_1 = arith.constant 0 : i32
    return %c0_i32, %c0_i32_0 : i32, i32
  }
  func.func @transform_2(%arg0: i32) -> (i32, i32) {
    %c0_i32 = arith.constant 0 : i32
    %c0_i32_0 = arith.constant 0 : i32
    %c0_i32_1 = arith.constant 0 : i32
    return %c0_i32, %c0_i32_0 : i32, i32
  }
  func.func @transform_3(%arg0: i32) -> (i32, i32) {
    %c0_i32 = arith.constant 0 : i32
    %c0_i32_0 = arith.constant 0 : i32
    %c0_i32_1 = arith.constant 0 : i32
    return %c0_i32, %c0_i32_0 : i32, i32
  }
  func.func @transform_4(%arg0: i32) -> (i32, i32) {
    %c0_i32 = arith.constant 0 : i32
    %c0_i32_0 = arith.constant 0 : i32
    %c0_i32_1 = arith.constant 0 : i32
    return %c0_i32, %c0_i32_0 : i32, i32
  }
  func.func @transform_5(%arg0: i32) -> (i32, i32) {
    %c0_i32 = arith.constant 0 : i32
    %c0_i32_0 = arith.constant 0 : i32
    %c0_i32_1 = arith.constant 0 : i32
    return %c0_i32, %c0_i32_0 : i32, i32
  }
  func.func @transform_6(%arg0: i32) -> (i32, i32) {
    %c0_i32 = arith.constant 0 : i32
    %c0_i32_0 = arith.constant 0 : i32
    %c0_i32_1 = arith.constant 0 : i32
    return %c0_i32, %c0_i32_0 : i32, i32
  }
  func.func @transform_7(%arg0: i32) -> (i32, i32) {
    %c0_i32 = arith.constant 0 : i32
    %c0_i32_0 = arith.constant 0 : i32
    %c0_i32_1 = arith.constant 0 : i32
    return %c0_i32, %c0_i32_0 : i32, i32
  }
  func.func @transform_8(%arg0: i32) -> (i32, i32) {
    %c0_i32 = arith.constant 0 : i32
    %c0_i32_0 = arith.constant 0 : i32
    %c0_i32_1 = arith.constant 0 : i32
    return %c0_i32, %c0_i32_0 : i32, i32
  }
  func.func @transform_9(%arg0: i32) -> (i32, i32) {
    %c0_i32 = arith.constant 0 : i32
    %c0_i32_0 = arith.constant 0 : i32
    %c0_i32_1 = arith.constant 0 : i32
    return %c0_i32, %c0_i32_0 : i32, i32
  }
  func.func @transform_10(%arg0: i32) -> (i32, i32) {
    %c0_i32 = arith.constant 0 : i32
    %c0_i32_0 = arith.constant 0 : i32
    %c0_i32_1 = arith.constant 0 : i32
    return %c0_i32, %c0_i32_0 : i32, i32
  }
  func.func @transform_11(%arg0: i32) -> (i32, i32) {
    %c0_i32 = arith.constant 0 : i32
    %c0_i32_0 = arith.constant 0 : i32
    %c0_i32_1 = arith.constant 0 : i32
    return %c0_i32, %c0_i32_0 : i32, i32
  }
  func.func @transform_12(%arg0: i32) -> (i32, i32) {
    %c0_i32 = arith.constant 0 : i32
    %c0_i32_0 = arith.constant 0 : i32
    %c0_i32_1 = arith.constant 0 : i32
    return %c0_i32, %c0_i32_0 : i32, i32
  }
  func.func @transform_13(%arg0: i32) -> (i32, i32) {
    %c0_i32 = arith.constant 0 : i32
    %c0_i32_0 = arith.constant 0 : i32
    %c0_i32_1 = arith.constant 0 : i32
    return %c0_i32, %c0_i32_0 : i32, i32
  }
  func.func @transform_14(%arg0: i32) -> (i32, i32) {
    %c0_i32 = arith.constant 0 : i32
    %c0_i32_0 = arith.constant 0 : i32
    %c0_i32_1 = arith.constant 0 : i32
    return %c0_i32, %c0_i32_0 : i32, i32
  }
  func.func @transform_15(%arg0: i32) -> (i32, i32) {
    %c0_i32 = arith.constant 0 : i32
    %c0_i32_0 = arith.constant 0 : i32
    return %arg0, %c0_i32 : i32, i32
  }
}

</mosaic_0001>

<llo_original>
// kernel: tpu_custom_call.1
$region0: #{tpu_custom_call.1}
  #allocation0 [shape = 'u32[]', space=smem, size = 0x4, offset = 0x4, fixed_abs, tag = 'smem constant byte address 0x4 - core index']
  #allocation1 [shape = 'u32[144,128]{1,0:T(1,128)}', space=vmem, size = 0x12000, scoped, tag = 'internal scratch']
  %s0 = inlined_call_operand.vmem [shape: f32[192,3], index: 0, kind: input, shape index: {}]
  %s1 = inlined_call_operand.vmem [shape: f32[1,128], index: 1, kind: input, shape index: {}]
  %s2 = inlined_call_operand.vmem [shape: f32[1,128], index: 2, kind: input, shape index: {}]
  %s3 = inlined_call_operand.vmem [shape: f32[1,128], index: 3, kind: input, shape index: {}]
  %s4 = inlined_call_operand.vmem [shape: f32[128,512], index: 4, kind: input, shape index: {}]
  %s5 = inlined_call_operand.vmem [shape: f32[4,256], index: 5, kind: input, shape index: {}]
  %s6 = inlined_call_operand.vmem [shape: f32[1,256], index: 6, kind: input, shape index: {}]
  %s7 = inlined_call_operand.vmem [shape: f32[256,288], index: 7, kind: input, shape index: {}]
  %s8 = inlined_call_operand.vmem [shape: f32[1,256], index: 8, kind: input, shape index: {}]
  %s9 = inlined_call_operand.vmem [shape: f32[16,256], index: 9, kind: input, shape index: {}]
  %s10 = inlined_call_operand.vmem [shape: f32[1,256], index: 10, kind: input, shape index: {}]
  %s11 = inlined_call_operand.vmem [shape: f32[256,128], index: 11, kind: input, shape index: {}]
  %s12 = inlined_call_operand.vmem [shape: f32[128,128], index: 12, kind: input, shape index: {}]
  %s13 = inlined_call_operand.vmem [shape: f32[1,128], index: 13, kind: input, shape index: {}]
  %s14 = inlined_call_operand.vmem [shape: f32[8,64], index: 14, kind: input, shape index: {}]
  %s15 = inlined_call_operand.hbm [shape: f32[24,128], index: 15, kind: output, shape index: {}]
  %s16 = sld [smem:[#allocation0]]
  $region93: #{tpu_custom_call.1} parent=0
    _
  %s18 = ssub.s32 1, %s16
  %s19 = scalar_select 0, %s18, %s16
  $region1: #{tpu_custom_call.1} parent=0
    #allocation2 [shape = 'u8[8192]{0}', space=vmem, size = 0x2000, scoped, tag = 'output window, operand 0']
    #allocation3 [shape = 's32[2]{0}', space=sflag, size = 0x8, scoped, tag = 'scoped memory for tpu_custom_call.1']
    %20 = vsyncpa [#allocation3], 0
    %s21 = scalar_lea.sflag [#allocation3], 1
    %22 = vsyncpa %s21, 0
    loop: start=0, step=1, limit=5
    $region2: #{tpu_custom_call.1} parent=1 // loop_pre_header
      _
    $region3: #{tpu_custom_call.1} parent=1 // loop_header
      %s24 = sphi 0, %s28
      %p25 = scmp.ge.s32.totalorder %s24, 5
      %s34 = sphi 0, %s36
      %s37 = sphi 0, %s34
      %s38 = sphi 0, %s37
      %s54 = sphi 0, %s38
      %s58 = sphi 0, %s58
      %s60 = sphi 0, %s58
      %s61 = sphi 0, %s60
      %s75 = sphi 0, %s61
      %s79 = sphi 0, %s79
      %s81 = sphi 0, %s79
      %s82 = sphi 0, %s81
      %s96 = sphi 0, %s82
      %s100 = sphi 0, %s100
      %s102 = sphi 0, %s100
      %s103 = sphi 0, %s102
      %s117 = sphi 0, %s103
      %s121 = sphi 0, %s121
      %s123 = sphi 0, %s121
      %s124 = sphi 0, %s123
      %s138 = sphi 0, %s124
      %s142 = sphi 0, %s142
      %s144 = sphi 0, %s142
      %s145 = sphi 0, %s144
      %s159 = sphi 0, %s145
      %s163 = sphi 0, %s163
      %s165 = sphi 0, %s163
      %s166 = sphi 0, %s165
      %s180 = sphi 0, %s166
      %s184 = sphi 0, %s184
      %s186 = sphi 0, %s184
      %s187 = sphi 0, %s186
      %s201 = sphi 0, %s187
      %s205 = sphi 0, %s205
      %s207 = sphi 0, %s205
      %s208 = sphi 0, %s207
      %s222 = sphi 0, %s208
      %s226 = sphi 0, %s226
      %s228 = sphi 0, %s226
      %s229 = sphi 0, %s228
      %s243 = sphi 0, %s229
      %s247 = sphi 0, %s247
      %s249 = sphi 0, %s247
      %s250 = sphi 0, %s249
      %s264 = sphi 0, %s250
      %s268 = sphi 0, %s268
      %s270 = sphi 0, %s268
      %s271 = sphi 0, %s270
      %s285 = sphi 0, %s271
      %s289 = sphi 0, %s289
      %s291 = sphi 0, %s289
      %s292 = sphi 0, %s291
      %s306 = sphi 0, %s292
      %s310 = sphi 0, %s310
      %s312 = sphi 0, %s310
      %s313 = sphi 0, %s312
      %s327 = sphi 0, %s313
      %s331 = sphi 0, %s331
      %s333 = sphi 0, %s331
      %s334 = sphi 0, %s333
      %s348 = sphi 0, %s334
      %s354 = sphi 0, %s356
      %s357 = sphi 0, %s354
      %s358 = sphi 0, %s357
      %s374 = sphi 0, %s358
    $region4: #{tpu_custom_call.1} parent=1 // loop_header_branch
      %27 = sbr.rel (%p25) target = $region8
    $region5: #{tpu_custom_call.1} parent=1 // loop_body
      %s29 = ssub.s32 %s24, 1
      %s30 = ssub.s32 %s24, 2
      %s31 = sadd.s32 %s24, 1
      %s32 = ssub.s32 %s24, %s31
      %p33 = scmp.eq.s32.totalorder %s32, 0
      %s35 = sadd.s32 %s34, 1
      %s36 = scalar_select %p33, %s34, %s35
      %p39 = pneg %p33
      %p40 = scmp.eq.s32.totalorder %s24, 2
      %p41 = por %p39, %p40
      %p42 = scmp.ne.s32.totalorder %s34, %s37
      %p43 = scmp.eq.s32.totalorder %s24, 0
      %p44 = por %p42, %p43
      %p45 = scmp.ne.s32.totalorder %s34, %s37
      %p46 = scmp.eq.s32.totalorder %s29, 2
      %p47 = por %p45, %p46
      %p48 = scmp.ne.s32.totalorder %s37, %s38
      %p49 = scmp.eq.s32.totalorder %s29, 0
      %p50 = por %p48, %p49
      %p51 = scmp.ne.s32.totalorder %s37, %s38
      %p52 = scmp.eq.s32.totalorder %s30, 2
      %p53 = por %p51, %p52
      %p55 = scmp.ne.s32.totalorder %s38, %s54
      %p56 = scmp.eq.s32.totalorder %s30, 0
      %p57 = por %p55, %p56
      %s59 = sadd.s32 %s58, 1
      %p62 = scmp.eq.s32.totalorder %s24, 2
      %p63 = scmp.ne.s32.totalorder %s58, %s60
      %p64 = scmp.eq.s32.totalorder %s24, 0
      %p65 = por %p63, %p64
      %p66 = scmp.ne.s32.totalorder %s58, %s60
      %p67 = scmp.eq.s32.totalorder %s29, 2
      %p68 = por %p66, %p67
      %p69 = scmp.ne.s32.totalorder %s60, %s61
      %p70 = scmp.eq.s32.totalorder %s29, 0
      %p71 = por %p69, %p70
      %p72 = scmp.ne.s32.totalorder %s60, %s61
      %p73 = scmp.eq.s32.totalorder %s30, 2
      %p74 = por %p72, %p73
      %p76 = scmp.ne.s32.totalorder %s61, %s75
      %p77 = scmp.eq.s32.totalorder %s30, 0
      %p78 = por %p76, %p77
      %s80 = sadd.s32 %s79, 1
      %p83 = scmp.eq.s32.totalorder %s24, 2
      %p84 = scmp.ne.s32.totalorder %s79, %s81
      %p85 = scmp.eq.s32.totalorder %s24, 0
      %p86 = por %p84, %p85
      %p87 = scmp.ne.s32.totalorder %s79, %s81
      %p88 = scmp.eq.s32.totalorder %s29, 2
      %p89 = por %p87, %p88
      %p90 = scmp.ne.s32.totalorder %s81, %s82
      %p91 = scmp.eq.s32.totalorder %s29, 0
      %p92 = por %p90, %p91
      %p93 = scmp.ne.s32.totalorder %s81, %s82
      %p94 = scmp.eq.s32.totalorder %s30, 2
      %p95 = por %p93, %p94
      %p97 = scmp.ne.s32.totalorder %s82, %s96
      %p98 = scmp.eq.s32.totalorder %s30, 0
      %p99 = por %p97, %p98
      %s101 = sadd.s32 %s100, 1
      %p104 = scmp.eq.s32.totalorder %s24, 2
      %p105 = scmp.ne.s32.totalorder %s100, %s102
      %p106 = scmp.eq.s32.totalorder %s24, 0
      %p107 = por %p105, %p106
      %p108 = scmp.ne.s32.totalorder %s100, %s102
      %p109 = scmp.eq.s32.totalorder %s29, 2
      %p110 = por %p108, %p109
      %p111 = scmp.ne.s32.totalorder %s102, %s103
      %p112 = scmp.eq.s32.totalorder %s29, 0
      %p113 = por %p111, %p112
      %p114 = scmp.ne.s32.totalorder %s102, %s103
      %p115 = scmp.eq.s32.totalorder %s30, 2
      %p116 = por %p114, %p115
      %p118 = scmp.ne.s32.totalorder %s103, %s117
      %p119 = scmp.eq.s32.totalorder %s30, 0
      %p120 = por %p118, %p119
      %s122 = sadd.s32 %s121, 1
      %p125 = scmp.eq.s32.totalorder %s24, 2
      %p126 = scmp.ne.s32.totalorder %s121, %s123
      %p127 = scmp.eq.s32.totalorder %s24, 0
      %p128 = por %p126, %p127
      %p129 = scmp.ne.s32.totalorder %s121, %s123
      %p130 = scmp.eq.s32.totalorder %s29, 2
      %p131 = por %p129, %p130
      %p132 = scmp.ne.s32.totalorder %s123, %s124
      %p133 = scmp.eq.s32.totalorder %s29, 0
      %p134 = por %p132, %p133
      %p135 = scmp.ne.s32.totalorder %s123, %s124
      %p136 = scmp.eq.s32.totalorder %s30, 2
      %p137 = por %p135, %p136
      %p139 = scmp.ne.s32.totalorder %s124, %s138
      %p140 = scmp.eq.s32.totalorder %s30, 0
      %p141 = por %p139, %p140
      %s143 = sadd.s32 %s142, 1
      %p146 = scmp.eq.s32.totalorder %s24, 2
      %p147 = scmp.ne.s32.totalorder %s142, %s144
      %p148 = scmp.eq.s32.totalorder %s24, 0
      %p149 = por %p147, %p148
      %p150 = scmp.ne.s32.totalorder %s142, %s144
      %p151 = scmp.eq.s32.totalorder %s29, 2
      %p152 = por %p150, %p151
      %p153 = scmp.ne.s32.totalorder %s144, %s145
      %p154 = scmp.eq.s32.totalorder %s29, 0
      %p155 = por %p153, %p154
      %p156 = scmp.ne.s32.totalorder %s144, %s145
      %p157 = scmp.eq.s32.totalorder %s30, 2
      %p158 = por %p156, %p157
      %p160 = scmp.ne.s32.totalorder %s145, %s159
      %p161 = scmp.eq.s32.totalorder %s30, 0
      %p162 = por %p160, %p161
      %s164 = sadd.s32 %s163, 1
      %p167 = scmp.eq.s32.totalorder %s24, 2
      %p168 = scmp.ne.s32.totalorder %s163, %s165
      %p169 = scmp.eq.s32.totalorder %s24, 0
      %p170 = por %p168, %p169
      %p171 = scmp.ne.s32.totalorder %s163, %s165
      %p172 = scmp.eq.s32.totalorder %s29, 2
      %p173 = por %p171, %p172
      %p174 = scmp.ne.s32.totalorder %s165, %s166
      %p175 = scmp.eq.s32.totalorder %s29, 0
      %p176 = por %p174, %p175
      %p177 = scmp.ne.s32.totalorder %s165, %s166
      %p178 = scmp.eq.s32.totalorder %s30, 2
      %p179 = por %p177, %p178
      %p181 = scmp.ne.s32.totalorder %s166, %s180
      %p182 = scmp.eq.s32.totalorder %s30, 0
      %p183 = por %p181, %p182
      %s185 = sadd.s32 %s184, 1
      %p188 = scmp.eq.s32.totalorder %s24, 2
      %p189 = scmp.ne.s32.totalorder %s184, %s186
      %p190 = scmp.eq.s32.totalorder %s24, 0
      %p191 = por %p189, %p190
      %p192 = scmp.ne.s32.totalorder %s184, %s186
      %p193 = scmp.eq.s32.totalorder %s29, 2
      %p194 = por %p192, %p193
      %p195 = scmp.ne.s32.totalorder %s186, %s187
      %p196 = scmp.eq.s32.totalorder %s29, 0
      %p197 = por %p195, %p196
      %p198 = scmp.ne.s32.totalorder %s186, %s187
      %p199 = scmp.eq.s32.totalorder %s30, 2
      %p200 = por %p198, %p199
      %p202 = scmp.ne.s32.totalorder %s187, %s201
      %p203 = scmp.eq.s32.totalorder %s30, 0
      %p204 = por %p202, %p203
      %s206 = sadd.s32 %s205, 1
      %p209 = scmp.eq.s32.totalorder %s24, 2
      %p210 = scmp.ne.s32.totalorder %s205, %s207
      %p211 = scmp.eq.s32.totalorder %s24, 0
      %p212 = por %p210, %p211
      %p213 = scmp.ne.s32.totalorder %s205, %s207
      %p214 = scmp.eq.s32.totalorder %s29, 2
      %p215 = por %p213, %p214
      %p216 = scmp.ne.s32.totalorder %s207, %s208
      %p217 = scmp.eq.s32.totalorder %s29, 0
      %p218 = por %p216, %p217
      %p219 = scmp.ne.s32.totalorder %s207, %s208
      %p220 = scmp.eq.s32.totalorder %s30, 2
      %p221 = por %p219, %p220
      %p223 = scmp.ne.s32.totalorder %s208, %s222
      %p224 = scmp.eq.s32.totalorder %s30, 0
      %p225 = por %p223, %p224
      %s227 = sadd.s32 %s226, 1
      %p230 = scmp.eq.s32.totalorder %s24, 2
      %p231 = scmp.ne.s32.totalorder %s226, %s228
      %p232 = scmp.eq.s32.totalorder %s24, 0
      %p233 = por %p231, %p232
      %p234 = scmp.ne.s32.totalorder %s226, %s228
      %p235 = scmp.eq.s32.totalorder %s29, 2
      %p236 = por %p234, %p235
      %p237 = scmp.ne.s32.totalorder %s228, %s229
      %p238 = scmp.eq.s32.totalorder %s29, 0
      %p239 = por %p237, %p238
      %p240 = scmp.ne.s32.totalorder %s228, %s229
      %p241 = scmp.eq.s32.totalorder %s30, 2
      %p242 = por %p240, %p241
      %p244 = scmp.ne.s32.totalorder %s229, %s243
      %p245 = scmp.eq.s32.totalorder %s30, 0
      %p246 = por %p244, %p245
      %s248 = sadd.s32 %s247, 1
      %p251 = scmp.eq.s32.totalorder %s24, 2
      %p252 = scmp.ne.s32.totalorder %s247, %s249
      %p253 = scmp.eq.s32.totalorder %s24, 0
      %p254 = por %p252, %p253
      %p255 = scmp.ne.s32.totalorder %s247, %s249
      %p256 = scmp.eq.s32.totalorder %s29, 2
      %p257 = por %p255, %p256
      %p258 = scmp.ne.s32.totalorder %s249, %s250
      %p259 = scmp.eq.s32.totalorder %s29, 0
      %p260 = por %p258, %p259
      %p261 = scmp.ne.s32.totalorder %s249, %s250
      %p262 = scmp.eq.s32.totalorder %s30, 2
      %p263 = por %p261, %p262
      %p265 = scmp.ne.s32.totalorder %s250, %s264
      %p266 = scmp.eq.s32.totalorder %s30, 0
      %p267 = por %p265, %p266
      %s269 = sadd.s32 %s268, 1
      %p272 = scmp.eq.s32.totalorder %s24, 2
      %p273 = scmp.ne.s32.totalorder %s268, %s270
      %p274 = scmp.eq.s32.totalorder %s24, 0
      %p275 = por %p273, %p274
      %p276 = scmp.ne.s32.totalorder %s268, %s270
      %p277 = scmp.eq.s32.totalorder %s29, 2
      %p278 = por %p276, %p277
      %p279 = scmp.ne.s32.totalorder %s270, %s271
      %p280 = scmp.eq.s32.totalorder %s29, 0
      %p281 = por %p279, %p280
      %p282 = scmp.ne.s32.totalorder %s270, %s271
      %p283 = scmp.eq.s32.totalorder %s30, 2
      %p284 = por %p282, %p283
      %p286 = scmp.ne.s32.totalorder %s271, %s285
      %p287 = scmp.eq.s32.totalorder %s30, 0
      %p288 = por %p286, %p287
      %s290 = sadd.s32 %s289, 1
      %p293 = scmp.eq.s32.totalorder %s24, 2
      %p294 = scmp.ne.s32.totalorder %s289, %s291
      %p295 = scmp.eq.s32.totalorder %s24, 0
      %p296 = por %p294, %p295
      %p297 = scmp.ne.s32.totalorder %s289, %s291
      %p298 = scmp.eq.s32.totalorder %s29, 2
      %p299 = por %p297, %p298
      %p300 = scmp.ne.s32.totalorder %s291, %s292
      %p301 = scmp.eq.s32.totalorder %s29, 0
      %p302 = por %p300, %p301
      %p303 = scmp.ne.s32.totalorder %s291, %s292
      %p304 = scmp.eq.s32.totalorder %s30, 2
      %p305 = por %p303, %p304
      %p307 = scmp.ne.s32.totalorder %s292, %s306
      %p308 = scmp.eq.s32.totalorder %s30, 0
      %p309 = por %p307, %p308
      %s311 = sadd.s32 %s310, 1
      %p314 = scmp.eq.s32.totalorder %s24, 2
      %p315 = scmp.ne.s32.totalorder %s310, %s312
      %p316 = scmp.eq.s32.totalorder %s24, 0
      %p317 = por %p315, %p316
      %p318 = scmp.ne.s32.totalorder %s310, %s312
      %p319 = scmp.eq.s32.totalorder %s29, 2
      %p320 = por %p318, %p319
      %p321 = scmp.ne.s32.totalorder %s312, %s313
      %p322 = scmp.eq.s32.totalorder %s29, 0
      %p323 = por %p321, %p322
      %p324 = scmp.ne.s32.totalorder %s312, %s313
      %p325 = scmp.eq.s32.totalorder %s30, 2
      %p326 = por %p324, %p325
      %p328 = scmp.ne.s32.totalorder %s313, %s327
      %p329 = scmp.eq.s32.totalorder %s30, 0
      %p330 = por %p328, %p329
      %s332 = sadd.s32 %s331, 1
      %p335 = scmp.eq.s32.totalorder %s24, 2
      %p336 = scmp.ne.s32.totalorder %s331, %s333
      %p337 = scmp.eq.s32.totalorder %s24, 0
      %p338 = por %p336, %p337
      %p339 = scmp.ne.s32.totalorder %s331, %s333
      %p340 = scmp.eq.s32.totalorder %s29, 2
      %p341 = por %p339, %p340
      %p342 = scmp.ne.s32.totalorder %s333, %s334
      %p343 = scmp.eq.s32.totalorder %s29, 0
      %p344 = por %p342, %p343
      %p345 = scmp.ne.s32.totalorder %s333, %s334
      %p346 = scmp.eq.s32.totalorder %s30, 2
      %p347 = por %p345, %p346
      %p349 = scmp.ne.s32.totalorder %s334, %s348
      %p350 = scmp.eq.s32.totalorder %s30, 0
      %p351 = por %p349, %p350
      %s352 = ssub.s32 %s24, %s31
      %p353 = scmp.eq.s32.totalorder %s352, 0
      %s355 = sadd.s32 %s354, 1
      %s356 = scalar_select %p353, %s354, %s355
      %p359 = pneg %p353
      %p360 = scmp.eq.s32.totalorder %s24, 2
      %p361 = por %p359, %p360
      %p362 = scmp.ne.s32.totalorder %s354, %s357
      %p363 = scmp.eq.s32.totalorder %s24, 0
      %p364 = por %p362, %p363
      %p365 = scmp.ne.s32.totalorder %s354, %s357
      %p366 = scmp.eq.s32.totalorder %s29, 2
      %p367 = por %p365, %p366
      %p368 = scmp.ne.s32.totalorder %s357, %s358
      %p369 = scmp.eq.s32.totalorder %s29, 0
      %p370 = por %p368, %p369
      %p371 = scmp.ne.s32.totalorder %s357, %s358
      %p372 = scmp.eq.s32.totalorder %s30, 2
      %p373 = por %p371, %p372
      %p375 = scmp.ne.s32.totalorder %s358, %s374
      %p376 = scmp.eq.s32.totalorder %s30, 0
      %p377 = por %p375, %p376
      %p378 = scmp.le.s32.totalorder 1, %s24
      %p379 = scmp.lt.s32.totalorder %s24, 4
      %p380 = pnand %p378, %p379
      %p381 = pneg %p380
      // Predicated region
      $region9: #{tpu_custom_call.1} parent=5 // pred_check
        _
      $region10: #{tpu_custom_call.1} parent=5 // pred_check_branch
        %383 = sbr.rel (%p380) target = $region12
      $region11: #{tpu_custom_call.1} parent=5 // pred_region
        %s384 = ssub.s32 %s24, 1
        // Predicated region
        $region13: #{tpu_custom_call.1} parent=11 // pred_check
          %p385 = pneg %p71
        $region14: #{tpu_custom_call.1} parent=11 // pred_check_branch
          %387 = sbr.rel (%p385) target = $region16
        $region15: #{tpu_custom_call.1} parent=11 // pred_region
          _
        $region16: #{tpu_custom_call.1} parent=11 // pred_fallthru
          _
        // Predicated region
        $region17: #{tpu_custom_call.1} parent=11 // pred_check
          %p388 = pneg %p92
        $region18: #{tpu_custom_call.1} parent=11 // pred_check_branch
          %390 = sbr.rel (%p388) target = $region20
        $region19: #{tpu_custom_call.1} parent=11 // pred_region
          _
        $region20: #{tpu_custom_call.1} parent=11 // pred_fallthru
          _
        // Predicated region
        $region21: #{tpu_custom_call.1} parent=11 // pred_check
          %p391 = pneg %p113
        $region22: #{tpu_custom_call.1} parent=11 // pred_check_branch
          %393 = sbr.rel (%p391) target = $region24
        $region23: #{tpu_custom_call.1} parent=11 // pred_region
          _
        $region24: #{tpu_custom_call.1} parent=11 // pred_fallthru
          _
        // Predicated region
        $region25: #{tpu_custom_call.1} parent=11 // pred_check
          %p394 = pneg %p134
        $region26: #{tpu_custom_call.1} parent=11 // pred_check_branch
          %396 = sbr.rel (%p394) target = $region28
        $region27: #{tpu_custom_call.1} parent=11 // pred_region
          _
        $region28: #{tpu_custom_call.1} parent=11 // pred_fallthru
          _
        // Predicated region
        $region29: #{tpu_custom_call.1} parent=11 // pred_check
          %p397 = pneg %p155
        $region30: #{tpu_custom_call.1} parent=11 // pred_check_branch
          %399 = sbr.rel (%p397) target = $region32
        $region31: #{tpu_custom_call.1} parent=11 // pred_region
          _
        $region32: #{tpu_custom_call.1} parent=11 // pred_fallthru
          _
        // Predicated region
        $region33: #{tpu_custom_call.1} parent=11 // pred_check
          %p400 = pneg %p176
        $region34: #{tpu_custom_call.1} parent=11 // pred_check_branch
          %402 = sbr.rel (%p400) target = $region36
        $region35: #{tpu_custom_call.1} parent=11 // pred_region
          _
        $region36: #{tpu_custom_call.1} parent=11 // pred_fallthru
          _
        // Predicated region
        $region37: #{tpu_custom_call.1} parent=11 // pred_check
          %p403 = pneg %p197
        $region38: #{tpu_custom_call.1} parent=11 // pred_check_branch
          %405 = sbr.rel (%p403) target = $region40
        $region39: #{tpu_custom_call.1} parent=11 // pred_region
          _
        $region40: #{tpu_custom_call.1} parent=11 // pred_fallthru
          _
        // Predicated region
        $region41: #{tpu_custom_call.1} parent=11 // pred_check
          %p406 = pneg %p218
        $region42: #{tpu_custom_call.1} parent=11 // pred_check_branch
          %408 = sbr.rel (%p406) target = $region44
        $region43: #{tpu_custom_call.1} parent=11 // pred_region
          _
        $region44: #{tpu_custom_call.1} parent=11 // pred_fallthru
          _
        // Predicated region
        $region45: #{tpu_custom_call.1} parent=11 // pred_check
          %p409 = pneg %p239
        $region46: #{tpu_custom_call.1} parent=11 // pred_check_branch
          %411 = sbr.rel (%p409) target = $region48
        $region47: #{tpu_custom_call.1} parent=11 // pred_region
          _
        $region48: #{tpu_custom_call.1} parent=11 // pred_fallthru
          _
        // Predicated region
        $region49: #{tpu_custom_call.1} parent=11 // pred_check
          %p412 = pneg %p260
        $region50: #{tpu_custom_call.1} parent=11 // pred_check_branch
          %414 = sbr.rel (%p412) target = $region52
        $region51: #{tpu_custom_call.1} parent=11 // pred_region
          _
        $region52: #{tpu_custom_call.1} parent=11 // pred_fallthru
          _
        // Predicated region
        $region53: #{tpu_custom_call.1} parent=11 // pred_check
          %p415 = pneg %p281
        $region54: #{tpu_custom_call.1} parent=11 // pred_check_branch
          %417 = sbr.rel (%p415) target = $region56
        $region55: #{tpu_custom_call.1} parent=11 // pred_region
          _
        $region56: #{tpu_custom_call.1} parent=11 // pred_fallthru
          _
        // Predicated region
        $region57: #{tpu_custom_call.1} parent=11 // pred_check
          %p418 = pneg %p302
        $region58: #{tpu_custom_call.1} parent=11 // pred_check_branch
          %420 = sbr.rel (%p418) target = $region60
        $region59: #{tpu_custom_call.1} parent=11 // pred_region
          _
        $region60: #{tpu_custom_call.1} parent=11 // pred_fallthru
          _
        // Predicated region
        $region61: #{tpu_custom_call.1} parent=11 // pred_check
          %p421 = pneg %p323
        $region62: #{tpu_custom_call.1} parent=11 // pred_check_branch
          %423 = sbr.rel (%p421) target = $region64
        $region63: #{tpu_custom_call.1} parent=11 // pred_region
          _
        $region64: #{tpu_custom_call.1} parent=11 // pred_fallthru
          _
        // Predicated region
        $region65: #{tpu_custom_call.1} parent=11 // pred_check
          %p424 = pneg %p344
        $region66: #{tpu_custom_call.1} parent=11 // pred_check_branch
          %426 = sbr.rel (%p424) target = $region68
        $region67: #{tpu_custom_call.1} parent=11 // pred_region
          _
        $region68: #{tpu_custom_call.1} parent=11 // pred_fallthru
          _
      $region12: #{tpu_custom_call.1} parent=5 // pred_fallthru
        _
      %p427 = scmp.lt.s32.totalorder %s24, 3
      // Predicated region
      $region69: #{tpu_custom_call.1} parent=5 // pred_check
        %p428 = pneg %p427
      $region70: #{tpu_custom_call.1} parent=5 // pred_check_branch
        %430 = sbr.rel (%p428) target = $region72
      $region71: #{tpu_custom_call.1} parent=5 // pred_region
        // Predicated region
        $region73: #{tpu_custom_call.1} parent=71 // pred_check
          %p431 = pneg %p44
        $region74: #{tpu_custom_call.1} parent=71 // pred_check_branch
          %433 = sbr.rel (%p431) target = $region76
        $region75: #{tpu_custom_call.1} parent=71 // pred_region
          %s434 = smul.u32 8, %s24
          %p435 = scmp.lt.s32.totalorder %s434, 23
          %s436 = scalar_select %p435, %s434, 23
          %s437 = smul.addr %s436, 8
          %s438 = scalar_lea.vmem %s0, %s437
          %s439 = smul.u32 8, %s24
        $region76: #{tpu_custom_call.1} parent=71 // pred_fallthru
          _
      $region72: #{tpu_custom_call.1} parent=5 // pred_fallthru
        _
      %p440 = scmp.le.s32.totalorder 1, %s24
      %p441 = scmp.lt.s32.totalorder %s24, 4
      %p442 = pnand %p440, %p441
      %p443 = pneg %p442
      // Predicated region
      $region77: #{tpu_custom_call.1} parent=5 // pred_check
        _
      $region78: #{tpu_custom_call.1} parent=5 // pred_check_branch
        %445 = sbr.rel (%p442) target = $region80
      $region79: #{tpu_custom_call.1} parent=5 // pred_region
        %s446 = ssub.s32 %s24, 1
        %s447 = smul.u32 8, %s29
        %p448 = scmp.lt.s32.totalorder %s447, 23
        %s449 = scalar_select %p448, %s447, 23
        %s450 = smul.addr %s449, 8
        %s451 = scalar_lea.vmem %s0, %s450
        %p452 = pneg %p50
        %p453 = pneg %p47
        %p454 = pneg %p71
        %p455 = pneg %p68
        %p456 = pneg %p92
        %p457 = pneg %p89
        %p458 = pneg %p113
        %p459 = pneg %p110
        %p460 = pneg %p134
        %p461 = pneg %p131
        %p462 = pneg %p155
        %p463 = pneg %p152
        %p464 = pneg %p176
        %p465 = pneg %p173
        %p466 = pneg %p197
        %p467 = pneg %p194
        %p468 = pneg %p218
        %p469 = pneg %p215
        %p470 = pneg %p239
        %p471 = pneg %p236
        %p472 = pneg %p260
        %p473 = pneg %p257
        %p474 = pneg %p281
        %p475 = pneg %p278
        %p476 = pneg %p302
        %p477 = pneg %p299
        %p478 = pneg %p323
        %p479 = pneg %p320
        %p480 = pneg %p344
        %p481 = pneg %p341
        %p482 = pneg %p370
        %p483 = pneg %p367
        %s484 = sand.u32 %s357, 1
        %s485 = scalar_lea.sflag [#allocation3], %s484
        %s486 = sand.u32 %s357, 1
        %s487 = smul.addr %s486, 8
        %s488 = scalar_lea.vmem [#allocation2], %s487
        %s489 = smul.u32 8, %s29
        %p490 = scmp.lt.s32.totalorder %s489, 23
        %s491 = scalar_select %p490, %s489, 23
        %s492 = smul.addr %s491, 8
        %s493 = scalar_lea.vmem %s0, %s492
        %s494 = smul.u32 8, %s29
        %v495 = vld [vmem:[%s493] sm:$0xff]
        %v496 = vld [vmem:[%s493 + $0x8] sm:$0xff]
        %v497 = vld [vmem:[%s493 + $0x10] sm:$0xff]
        %v498 = vld [vmem:[%s493 + $0x18] sm:$0xff]
        %v499 = vld [vmem:[%s493 + $0x20] sm:$0xff]
        %v500 = vld [vmem:[%s493 + $0x28] sm:$0xff]
        %v501 = vld [vmem:[%s493 + $0x30] sm:$0xff]
        %v502 = vld [vmem:[%s493 + $0x38] sm:$0xff]
        %v503 = vld [vmem:[%s1] sm:$0x1]
        %505 = vset.pattern.permute.xlu0 0
        %506 = vperm.xlu0 %505, %v495
        %v507 = vpop.permute.xlu0 %506
        %510 = vset.pattern.permute.xlu0 0
        %511 = vperm.xlu0 %510, %v496
        %v512 = vpop.permute.xlu0 %511
        %515 = vset.pattern.permute.xlu0 0
        %516 = vperm.xlu0 %515, %v497
        %v517 = vpop.permute.xlu0 %516
        %520 = vset.pattern.permute.xlu0 0
        %521 = vperm.xlu0 %520, %v498
        %v522 = vpop.permute.xlu0 %521
        %525 = vset.pattern.permute.xlu0 0
        %526 = vperm.xlu0 %525, %v499
        %v527 = vpop.permute.xlu0 %526
        %530 = vset.pattern.permute.xlu0 0
        %531 = vperm.xlu0 %530, %v500
        %v532 = vpop.permute.xlu0 %531
        %535 = vset.pattern.permute.xlu0 0
        %536 = vperm.xlu0 %535, %v501
        %v537 = vpop.permute.xlu0 %536
        %540 = vset.pattern.permute.xlu0 0
        %541 = vperm.xlu0 %540, %v502
        %v542 = vpop.permute.xlu0 %541
        %v545 = vlaneseq
        %v546 = vshrl.u32 %v545, 7
        %v547 = vsub.s32 0, %v546
        %v548 = vrot.slane %v503, %v547
        %v550 = vmul.f32 %v507, %v548
        %v551 = vmul.f32 %v512, %v548
        %v552 = vmul.f32 %v517, %v548
        %v553 = vmul.f32 %v522, %v548
        %v554 = vmul.f32 %v527, %v548
        %v555 = vmul.f32 %v532, %v548
        %v556 = vmul.f32 %v537, %v548
        %v557 = vmul.f32 %v542, %v548
        %v558 = vld [vmem:[%s2] sm:$0x1]
        %559 = vset.pattern.permute.xlu0 1
        %560 = vperm.xlu0 %559, %v495
        %v561 = vpop.permute.xlu0 %560
        %563 = vset.pattern.permute.xlu0 1
        %564 = vperm.xlu0 %563, %v496
        %v565 = vpop.permute.xlu0 %564
        %567 = vset.pattern.permute.xlu0 1
        %568 = vperm.xlu0 %567, %v497
        %v569 = vpop.permute.xlu0 %568
        %571 = vset.pattern.permute.xlu0 1
        %572 = vperm.xlu0 %571, %v498
        %v573 = vpop.permute.xlu0 %572
        %575 = vset.pattern.permute.xlu0 1
        %576 = vperm.xlu0 %575, %v499
        %v577 = vpop.permute.xlu0 %576
        %579 = vset.pattern.permute.xlu0 1
        %580 = vperm.xlu0 %579, %v500
        %v581 = vpop.permute.xlu0 %580
        %583 = vset.pattern.permute.xlu0 1
        %584 = vperm.xlu0 %583, %v501
        %v585 = vpop.permute.xlu0 %584
        %587 = vset.pattern.permute.xlu0 1
        %588 = vperm.xlu0 %587, %v502
        %v589 = vpop.permute.xlu0 %588
        %v592 = vlaneseq
        %v593 = vshrl.u32 %v592, 7
        %v594 = vsub.s32 0, %v593
        %v595 = vrot.slane %v558, %v594
        %v597 = vmul.f32 %v561, %v595
        %v598 = vmul.f32 %v565, %v595
        %v599 = vmul.f32 %v569, %v595
        %v600 = vmul.f32 %v573, %v595
        %v601 = vmul.f32 %v577, %v595
        %v602 = vmul.f32 %v581, %v595
        %v603 = vmul.f32 %v585, %v595
        %v604 = vmul.f32 %v589, %v595
        %v605 = vadd.f32 %v550, %v597
        %v606 = vadd.f32 %v551, %v598
        %v607 = vadd.f32 %v552, %v599
        %v608 = vadd.f32 %v553, %v600
        %v609 = vadd.f32 %v554, %v601
        %v610 = vadd.f32 %v555, %v602
        %v611 = vadd.f32 %v556, %v603
        %v612 = vadd.f32 %v557, %v604
        %v613 = vld [vmem:[%s3] sm:$0x1]
        %v615 = vlaneseq
        %v616 = vshrl.u32 %v615, 7
        %v617 = vsub.s32 0, %v616
        %v618 = vrot.slane %v613, %v617
        %v620 = vadd.f32 %v605, %v618
        %v621 = vadd.f32 %v606, %v618
        %v622 = vadd.f32 %v607, %v618
        %v623 = vadd.f32 %v608, %v618
        %v624 = vadd.f32 %v609, %v618
        %v625 = vadd.f32 %v610, %v618
        %v626 = vadd.f32 %v611, %v618
        %v627 = vadd.f32 %v612, %v618
        %v628 = vsub.f32 0.0, %v620
        %v629 = vsub.f32 0.0, %v621
        %v630 = vsub.f32 0.0, %v622
        %v631 = vsub.f32 0.0, %v623
        %v632 = vsub.f32 0.0, %v624
        %v633 = vsub.f32 0.0, %v625
        %v634 = vsub.f32 0.0, %v626
        %v635 = vsub.f32 0.0, %v627
        %v636 = vmul.f32 %v628, 1.442695
        %v637 = vpow.pop %v636
        %v638 = vmul.f32 %v629, 1.442695
        %v639 = vpow.pop %v638
        %v640 = vmul.f32 %v630, 1.442695
        %v641 = vpow.pop %v640
        %v642 = vmul.f32 %v631, 1.442695
        %v643 = vpow.pop %v642
        %v644 = vmul.f32 %v632, 1.442695
        %v645 = vpow.pop %v644
        %v646 = vmul.f32 %v633, 1.442695
        %v647 = vpow.pop %v646
        %v648 = vmul.f32 %v634, 1.442695
        %v649 = vpow.pop %v648
        %v650 = vmul.f32 %v635, 1.442695
        %v651 = vpow.pop %v650
        %v652 = vadd.f32 %v637, 1.0
        %v653 = vadd.f32 %v639, 1.0
        %v654 = vadd.f32 %v641, 1.0
        %v655 = vadd.f32 %v643, 1.0
        %v656 = vadd.f32 %v645, 1.0
        %v657 = vadd.f32 %v647, 1.0
        %v658 = vadd.f32 %v649, 1.0
        %v659 = vadd.f32 %v651, 1.0
        %v660 = vrcp.pop %v652
        %v661 = vmul.f32 1.0, %v660
        %v662 = vrcp.pop %v653
        %v663 = vmul.f32 1.0, %v662
        %v664 = vrcp.pop %v654
        %v665 = vmul.f32 1.0, %v664
        %v666 = vrcp.pop %v655
        %v667 = vmul.f32 1.0, %v666
        %v668 = vrcp.pop %v656
        %v669 = vmul.f32 1.0, %v668
        %v670 = vrcp.pop %v657
        %v671 = vmul.f32 1.0, %v670
        %v672 = vrcp.pop %v658
        %v673 = vmul.f32 1.0, %v672
        %v674 = vrcp.pop %v659
        %v675 = vmul.f32 1.0, %v674
        %v676 = vld [vmem:[%s4] sm:$0xff]
        %v677 = vld [vmem:[%s4 + $0x8] sm:$0xff]
        %v678 = vld [vmem:[%s4 + $0x10] sm:$0xff]
        %v679 = vld [vmem:[%s4 + $0x18] sm:$0xff]
        %v680 = vld [vmem:[%s4 + $0x20] sm:$0xff]
        %v681 = vld [vmem:[%s4 + $0x28] sm:$0xff]
        %v682 = vld [vmem:[%s4 + $0x30] sm:$0xff]
        %v683 = vld [vmem:[%s4 + $0x38] sm:$0xff]
        %v684 = vld [vmem:[%s4 + $0x40] sm:$0xff]
        %v685 = vld [vmem:[%s4 + $0x48] sm:$0xff]
        %v686 = vld [vmem:[%s4 + $0x50] sm:$0xff]
        %v687 = vld [vmem:[%s4 + $0x58] sm:$0xff]
        %v688 = vld [vmem:[%s4 + $0x60] sm:$0xff]
        %v689 = vld [vmem:[%s4 + $0x68] sm:$0xff]
        %v690 = vld [vmem:[%s4 + $0x70] sm:$0xff]
        %v691 = vld [vmem:[%s4 + $0x78] sm:$0xff]
        %v692 = vld [vmem:[%s4 + $0x80] sm:$0xff]
        %v693 = vld [vmem:[%s4 + $0x88] sm:$0xff]
        %v694 = vld [vmem:[%s4 + $0x90] sm:$0xff]
        %v695 = vld [vmem:[%s4 + $0x98] sm:$0xff]
        %v696 = vld [vmem:[%s4 + $0xa0] sm:$0xff]
        %v697 = vld [vmem:[%s4 + $0xa8] sm:$0xff]
        %v698 = vld [vmem:[%s4 + $0xb0] sm:$0xff]
        %v699 = vld [vmem:[%s4 + $0xb8] sm:$0xff]
        %v700 = vld [vmem:[%s4 + $0xc0] sm:$0xff]
        %v701 = vld [vmem:[%s4 + $0xc8] sm:$0xff]
        %v702 = vld [vmem:[%s4 + $0xd0] sm:$0xff]
        %v703 = vld [vmem:[%s4 + $0xd8] sm:$0xff]
        %v704 = vld [vmem:[%s4 + $0xe0] sm:$0xff]
        %v705 = vld [vmem:[%s4 + $0xe8] sm:$0xff]
        %v706 = vld [vmem:[%s4 + $0xf0] sm:$0xff]
        %v707 = vld [vmem:[%s4 + $0xf8] sm:$0xff]
        %v708 = vld [vmem:[%s4 + $0x100] sm:$0xff]
        %v709 = vld [vmem:[%s4 + $0x108] sm:$0xff]
        %v710 = vld [vmem:[%s4 + $0x110] sm:$0xff]
        %v711 = vld [vmem:[%s4 + $0x118] sm:$0xff]
        %v712 = vld [vmem:[%s4 + $0x120] sm:$0xff]
        %v713 = vld [vmem:[%s4 + $0x128] sm:$0xff]
        %v714 = vld [vmem:[%s4 + $0x130] sm:$0xff]
        %v715 = vld [vmem:[%s4 + $0x138] sm:$0xff]
        %v716 = vld [vmem:[%s4 + $0x140] sm:$0xff]
        %v717 = vld [vmem:[%s4 + $0x148] sm:$0xff]
        %v718 = vld [vmem:[%s4 + $0x150] sm:$0xff]
        %v719 = vld [vmem:[%s4 + $0x158] sm:$0xff]
        %v720 = vld [vmem:[%s4 + $0x160] sm:$0xff]
        %v721 = vld [vmem:[%s4 + $0x168] sm:$0xff]
        %v722 = vld [vmem:[%s4 + $0x170] sm:$0xff]
        %v723 = vld [vmem:[%s4 + $0x178] sm:$0xff]
        %v724 = vld [vmem:[%s4 + $0x180] sm:$0xff]
        %v725 = vld [vmem:[%s4 + $0x188] sm:$0xff]
        %v726 = vld [vmem:[%s4 + $0x190] sm:$0xff]
        %v727 = vld [vmem:[%s4 + $0x198] sm:$0xff]
        %v728 = vld [vmem:[%s4 + $0x1a0] sm:$0xff]
        %v729 = vld [vmem:[%s4 + $0x1a8] sm:$0xff]
        %v730 = vld [vmem:[%s4 + $0x1b0] sm:$0xff]
        %v731 = vld [vmem:[%s4 + $0x1b8] sm:$0xff]
        %v732 = vld [vmem:[%s4 + $0x1c0] sm:$0xff]
        %v733 = vld [vmem:[%s4 + $0x1c8] sm:$0xff]
        %v734 = vld [vmem:[%s4 + $0x1d0] sm:$0xff]
        %v735 = vld [vmem:[%s4 + $0x1d8] sm:$0xff]
        %v736 = vld [vmem:[%s4 + $0x1e0] sm:$0xff]
        %v737 = vld [vmem:[%s4 + $0x1e8] sm:$0xff]
        %v738 = vld [vmem:[%s4 + $0x1f0] sm:$0xff]
        %v739 = vld [vmem:[%s4 + $0x1f8] sm:$0xff]
        %740 = vmatprep.subr.mxu0 %v677
        %741 = vmatpush1.msra.mxu0 %v676
        %742 = vmatprep.subr.mxu0 %v681
        %743 = vmatpush1.msra.mxu0 %v680
        %744 = vmatprep.subr.mxu0 %v685
        %745 = vmatpush1.msra.mxu0 %v684
        %746 = vmatprep.subr.mxu0 %v689
        %747 = vmatpush1.msra.mxu0 %v688
        %748 = vmatprep.subr.mxu0 %v693
        %749 = vmatpush1.msra.mxu0 %v692
        %750 = vmatprep.subr.mxu0 %v697
        %751 = vmatpush1.msra.mxu0 %v696
        %752 = vmatprep.subr.mxu0 %v701
        %753 = vmatpush1.msra.mxu0 %v700
        %754 = vmatprep.subr.mxu0 %v705
        %755 = vmatpush1.msra.mxu0 %v704
        %756 = vmatprep.subr.mxu0 %v709
        %757 = vmatpush1.msra.mxu0 %v708
        %758 = vmatprep.subr.mxu0 %v713
        %759 = vmatpush1.msra.mxu0 %v712
        %760 = vmatprep.subr.mxu0 %v717
        %761 = vmatpush1.msra.mxu0 %v716
        %762 = vmatprep.subr.mxu0 %v721
        %763 = vmatpush1.msra.mxu0 %v720
        %764 = vmatprep.subr.mxu0 %v725
        %765 = vmatpush1.msra.mxu0 %v724
        %766 = vmatprep.subr.mxu0 %v729
        %767 = vmatpush1.msra.mxu0 %v728
        %768 = vmatprep.subr.mxu0 %v733
        %769 = vmatpush1.msra.mxu0 %v732
        %770 = vmatprep.subr.mxu0 %v737
        %771 = vmatpush1.msra.mxu0 %v736
        %772 = vmatprep.subr.mxu0 0.0
        %773 = vmatpush1.msra.mxu0 0.0
        %774 = vmatprep.subr.mxu0 0.0
        %775 = vmatpush1.msra.mxu0 0.0
        %776 = vmatprep.subr.mxu0 0.0
        %777 = vmatpush1.msra.mxu0 0.0
        %778 = vmatprep.subr.mxu0 0.0
        %779 = vmatpush1.msra.mxu0 0.0
        %780 = vmatprep.subr.mxu0 0.0
        %781 = vmatpush1.msra.mxu0 0.0
        %782 = vmatprep.subr.mxu0 0.0
        %783 = vmatpush1.msra.mxu0 0.0
        %784 = vmatprep.subr.mxu0 0.0
        %785 = vmatpush1.msra.mxu0 0.0
        %786 = vmatprep.subr.mxu0 0.0
        %787 = vmatpush1.msra.mxu0 0.0
        %788 = vmatprep.subr.mxu0 0.0
        %789 = vmatpush1.msra.mxu0 0.0
        %790 = vmatprep.subr.mxu0 0.0
        %791 = vmatpush1.msra.mxu0 0.0
        %792 = vmatprep.subr.mxu0 0.0
        %793 = vmatpush1.msra.mxu0 0.0
        %794 = vmatprep.subr.mxu0 0.0
        %795 = vmatpush1.msra.mxu0 0.0
        %796 = vmatprep.subr.mxu0 0.0
        %797 = vmatpush1.msra.mxu0 0.0
        %798 = vmatprep.subr.mxu0 0.0
        %799 = vmatpush1.msra.mxu0 0.0
        %800 = vmatprep.subr.mxu0 0.0
        %801 = vmatpush1.msra.mxu0 0.0
        %802 = vmatprep.subr.mxu0 0.0
        %803 = vmatpush1.msra.mxu0 0.0
        %804 = vmatprep.mubr.f32.mxu0 0.0
        %805 = vmatmul.mubr.f32.gmra.mrb[0].mxu0 %v661
        %v806 = vpop.f32.mrb[0].mxu0
        %v807 = vadd.f32 0.0, %v806
        %v808 = vpop.f32.mrb[0].mxu0
        %v809 = vadd.f32 0.0, %v808
        %810 = vmatprep.mubr.f32.mxu0 0.0
        %811 = vmatmul.mubr.f32.gmra.mrb[0].mxu0 %v663
        %v812 = vpop.f32.mrb[0].mxu0
        %v813 = vadd.f32 0.0, %v812
        %v814 = vpop.f32.mrb[0].mxu0
        %v815 = vadd.f32 0.0, %v814
        %816 = vmatprep.mubr.f32.mxu0 0.0
        %817 = vmatmul.mubr.f32.gmra.mrb[0].mxu0 %v665
        %v818 = vpop.f32.mrb[0].mxu0
        %v819 = vadd.f32 0.0, %v818
        %v820 = vpop.f32.mrb[0].mxu0
        %v821 = vadd.f32 0.0, %v820
        %822 = vmatprep.mubr.f32.mxu0 0.0
        %823 = vmatmul.mubr.f32.gmra.mrb[0].mxu0 %v667
        %v824 = vpop.f32.mrb[0].mxu0
        %v825 = vadd.f32 0.0, %v824
        %v826 = vpop.f32.mrb[0].mxu0
        %v827 = vadd.f32 0.0, %v826
        %828 = vmatprep.mubr.f32.mxu0 0.0
        %829 = vmatmul.mubr.f32.gmra.mrb[0].mxu0 %v669
        %v830 = vpop.f32.mrb[0].mxu0
        %v831 = vadd.f32 0.0, %v830
        %v832 = vpop.f32.mrb[0].mxu0
        %v833 = vadd.f32 0.0, %v832
        %834 = vmatprep.mubr.f32.mxu0 0.0
        %835 = vmatmul.mubr.f32.gmra.mrb[0].mxu0 %v671
        %v836 = vpop.f32.mrb[0].mxu0
        %v837 = vadd.f32 0.0, %v836
        %v838 = vpop.f32.mrb[0].mxu0
        %v839 = vadd.f32 0.0, %v838
        %840 = vmatprep.mubr.f32.mxu0 0.0
        %841 = vmatmul.mubr.f32.gmra.mrb[0].mxu0 %v673
        %v842 = vpop.f32.mrb[0].mxu0
        %v843 = vadd.f32 0.0, %v842
        %v844 = vpop.f32.mrb[0].mxu0
        %v845 = vadd.f32 0.0, %v844
        %846 = vmatprep.mubr.f32.mxu0 0.0
        %847 = vmatmul.mubr.f32.gmra.mrb[0].mxu0 %v675
        %v848 = vpop.f32.mrb[0].mxu0
        %v849 = vadd.f32 0.0, %v848
        %v850 = vpop.f32.mrb[0].mxu0
        %v851 = vadd.f32 0.0, %v850
        %852 = vdwg.mxu0
        %853 = vmatprep.subr.mxu0 %v679
        %854 = vmatpush1.msra.mxu0 %v678
        %855 = vmatprep.subr.mxu0 %v683
        %856 = vmatpush1.msra.mxu0 %v682
        %857 = vmatprep.subr.mxu0 %v687
        %858 = vmatpush1.msra.mxu0 %v686
        %859 = vmatprep.subr.mxu0 %v691
        %860 = vmatpush1.msra.mxu0 %v690
        %861 = vmatprep.subr.mxu0 %v695
        %862 = vmatpush1.msra.mxu0 %v694
        %863 = vmatprep.subr.mxu0 %v699
        %864 = vmatpush1.msra.mxu0 %v698
        %865 = vmatprep.subr.mxu0 %v703
        %866 = vmatpush1.msra.mxu0 %v702
        %867 = vmatprep.subr.mxu0 %v707
        %868 = vmatpush1.msra.mxu0 %v706
        %869 = vmatprep.subr.mxu0 %v711
        %870 = vmatpush1.msra.mxu0 %v710
        %871 = vmatprep.subr.mxu0 %v715
        %872 = vmatpush1.msra.mxu0 %v714
        %873 = vmatprep.subr.mxu0 %v719
        %874 = vmatpush1.msra.mxu0 %v718
        %875 = vmatprep.subr.mxu0 %v723
        %876 = vmatpush1.msra.mxu0 %v722
        %877 = vmatprep.subr.mxu0 %v727
        %878 = vmatpush1.msra.mxu0 %v726
        %879 = vmatprep.subr.mxu0 %v731
        %880 = vmatpush1.msra.mxu0 %v730
        %881 = vmatprep.subr.mxu0 %v735
        %882 = vmatpush1.msra.mxu0 %v734
        %883 = vmatprep.subr.mxu0 %v739
        %884 = vmatpush1.msra.mxu0 %v738
        %885 = vmatprep.subr.mxu0 0.0
        %886 = vmatpush1.msra.mxu0 0.0
        %887 = vmatprep.subr.mxu0 0.0
        %888 = vmatpush1.msra.mxu0 0.0
        %889 = vmatprep.subr.mxu0 0.0
        %890 = vmatpush1.msra.mxu0 0.0
        %891 = vmatprep.subr.mxu0 0.0
        %892 = vmatpush1.msra.mxu0 0.0
        %893 = vmatprep.subr.mxu0 0.0
        %894 = vmatpush1.msra.mxu0 0.0
        %895 = vmatprep.subr.mxu0 0.0
        %896 = vmatpush1.msra.mxu0 0.0
        %897 = vmatprep.subr.mxu0 0.0
        %898 = vmatpush1.msra.mxu0 0.0
        %899 = vmatprep.subr.mxu0 0.0
        %900 = vmatpush1.msra.mxu0 0.0
        %901 = vmatprep.subr.mxu0 0.0
        %902 = vmatpush1.msra.mxu0 0.0
        %903 = vmatprep.subr.mxu0 0.0
        %904 = vmatpush1.msra.mxu0 0.0
        %905 = vmatprep.subr.mxu0 0.0
        %906 = vmatpush1.msra.mxu0 0.0
        %907 = vmatprep.subr.mxu0 0.0
        %908 = vmatpush1.msra.mxu0 0.0
        %909 = vmatprep.subr.mxu0 0.0
        %910 = vmatpush1.msra.mxu0 0.0
        %911 = vmatprep.subr.mxu0 0.0
        %912 = vmatpush1.msra.mxu0 0.0
        %913 = vmatprep.subr.mxu0 0.0
        %914 = vmatpush1.msra.mxu0 0.0
        %915 = vmatprep.subr.mxu0 0.0
        %916 = vmatpush1.msra.mxu0 0.0
        %917 = vmatprep.mubr.f32.mxu0 0.0
        %918 = vmatmul.mubr.f32.gmra.mrb[0].mxu0 %v661
        %v919 = vpop.f32.mrb[0].mxu0
        %v920 = vadd.f32 0.0, %v919
        %v921 = vpop.f32.mrb[0].mxu0
        %v922 = vadd.f32 0.0, %v921
        %923 = vmatprep.mubr.f32.mxu0 0.0
        %924 = vmatmul.mubr.f32.gmra.mrb[0].mxu0 %v663
        %v925 = vpop.f32.mrb[0].mxu0
        %v926 = vadd.f32 0.0, %v925
        %v927 = vpop.f32.mrb[0].mxu0
        %v928 = vadd.f32 0.0, %v927
        %929 = vmatprep.mubr.f32.mxu0 0.0
        %930 = vmatmul.mubr.f32.gmra.mrb[0].mxu0 %v665
        %v931 = vpop.f32.mrb[0].mxu0
        %v932 = vadd.f32 0.0, %v931
        %v933 = vpop.f32.mrb[0].mxu0
        %v934 = vadd.f32 0.0, %v933
        %935 = vmatprep.mubr.f32.mxu0 0.0
        %936 = vmatmul.mubr.f32.gmra.mrb[0].mxu0 %v667
        %v937 = vpop.f32.mrb[0].mxu0
        %v938 = vadd.f32 0.0, %v937
        %v939 = vpop.f32.mrb[0].mxu0
        %v940 = vadd.f32 0.0, %v939
        %941 = vmatprep.mubr.f32.mxu0 0.0
        %942 = vmatmul.mubr.f32.gmra.mrb[0].mxu0 %v669
        %v943 = vpop.f32.mrb[0].mxu0
        %v944 = vadd.f32 0.0, %v943
        %v945 = vpop.f32.mrb[0].mxu0
        %v946 = vadd.f32 0.0, %v945
        %947 = vmatprep.mubr.f32.mxu0 0.0
        %948 = vmatmul.mubr.f32.gmra.mrb[0].mxu0 %v671
        %v949 = vpop.f32.mrb[0].mxu0
        %v950 = vadd.f32 0.0, %v949
        %v951 = vpop.f32.mrb[0].mxu0
        %v952 = vadd.f32 0.0, %v951
        %953 = vmatprep.mubr.f32.mxu0 0.0
        %954 = vmatmul.mubr.f32.gmra.mrb[0].mxu0 %v673
        %v955 = vpop.f32.mrb[0].mxu0
        %v956 = vadd.f32 0.0, %v955
        %v957 = vpop.f32.mrb[0].mxu0
        %v958 = vadd.f32 0.0, %v957
        %959 = vmatprep.mubr.f32.mxu0 0.0
        %960 = vmatmul.mubr.f32.gmra.mrb[0].mxu0 %v675
        %v961 = vpop.f32.mrb[0].mxu0
        %v962 = vadd.f32 0.0, %v961
        %v963 = vpop.f32.mrb[0].mxu0
        %v964 = vadd.f32 0.0, %v963
        %965 = vdwg.mxu0
        %v966 = vlaneseq
        %v967 = vshrl.u32 %v966, 7
        %v968 = vadd.s32 %v967, 8
        %v969 = vadd.s32 %v967, 16
        %v970 = vadd.s32 %v967, 24
        %v971 = vadd.s32 %v967, 32
        %v972 = vadd.s32 %v967, 40
        %v973 = vadd.s32 %v967, 48
        %v974 = vadd.s32 %v967, 56
        %v975 = vand.u32 %v967, 7
        %v976 = vand.u32 %v968, 7
        %v977 = vand.u32 %v969, 7
        %v978 = vand.u32 %v970, 7
        %v979 = vand.u32 %v971, 7
        %v980 = vand.u32 %v972, 7
        %v981 = vand.u32 %v973, 7
        %v982 = vand.u32 %v974, 7
        %v983 = vld [vmem:[%s5] sm:$0xff]
        %v984 = vld [vmem:[%s6] sm:$0x3]
        %v986 = vlaneseq
        %v987 = vshrl.u32 %v986, 7
        %v988 = vsub.s32 0, %v987
        %v989 = vrot.slane %v984, %v988
        %v990 = vlaneseq
        %v991 = vshrl.u32 %v990, 7
        %v992 = vsub.s32 1, %v991
        %v993 = vrot.slane %v984, %v992
        %v996 = vadd.f32 %v989, 0.0
        %v997 = vadd.f32 %v993, 0.0
        %vm998 = vcmp.ge.s32.totalorder %v975, 3
        %vm999 = vcmp.ge.s32.totalorder %v976, 3
        %vm1000 = vcmp.ge.s32.totalorder %v977, 3
        %vm1001 = vcmp.ge.s32.totalorder %v978, 3
        %vm1002 = vcmp.ge.s32.totalorder %v979, 3
        %vm1003 = vcmp.ge.s32.totalorder %v980, 3
        %vm1004 = vcmp.ge.s32.totalorder %v981, 3
        %vm1005 = vcmp.ge.s32.totalorder %v982, 3
        %v1006 = vrot.slane %v807, 5
        %v1007 = vrot.slane %v809, 5
        %v1008 = vrot.slane %v813, 5
        %v1009 = vrot.slane %v815, 5
        %v1010 = vrot.slane %v819, 5
        %v1011 = vrot.slane %v821, 5
        %v1012 = vrot.slane %v825, 5
        %v1013 = vrot.slane %v827, 5
        %v1014 = vrot.slane %v831, 5
        %v1015 = vrot.slane %v833, 5
        %v1016 = vrot.slane %v837, 5
        %v1017 = vrot.slane %v839, 5
        %v1018 = vrot.slane %v843, 5
        %v1019 = vrot.slane %v845, 5
        %v1020 = vrot.slane %v849, 5
        %v1021 = vrot.slane %v851, 5
        %vm1022 = vcmp.lt.s32.totalorder %v967, 3
        %v1023 = vsel %vm1022, %v1018, %v1020
        %v1024 = vsel %vm1022, %v1019, %v1021
        %v1025 = vsel %vm1022, %v1016, %v1018
        %v1026 = vsel %vm1022, %v1017, %v1019
        %v1027 = vsel %vm1022, %v1014, %v1016
        %v1028 = vsel %vm1022, %v1015, %v1017
        %v1029 = vsel %vm1022, %v1012, %v1014
        %v1030 = vsel %vm1022, %v1013, %v1015
        %v1031 = vsel %vm1022, %v1010, %v1012
        %v1032 = vsel %vm1022, %v1011, %v1013
        %v1033 = vsel %vm1022, %v1008, %v1010
        %v1034 = vsel %vm1022, %v1009, %v1011
        %v1035 = vsel %vm1022, %v1006, %v1008
        %v1036 = vsel %vm1022, %v1007, %v1009
        %v1037 = vsel %vm1022, %v1020, %v1006
        %v1038 = vsel %vm1022, %v1021, %v1007
        %v1039 = vsel %vm998, 1, 0
        %v1040 = vsel %vm999, 1, 0
        %v1041 = vsel %vm1000, 1, 0
        %v1042 = vsel %vm1001, 1, 0
        %v1043 = vsel %vm1002, 1, 0
        %v1044 = vsel %vm1003, 1, 0
        %v1045 = vsel %vm1004, 1, 0
        %v1046 = vsel %vm1005, 1, 0
        %vm1047 = vcmp.eq.s32.totalorder %v1039, 1
        %vm1048 = vcmp.eq.s32.totalorder %v1040, 1
        %vm1049 = vcmp.eq.s32.totalorder %v1041, 1
        %vm1050 = vcmp.eq.s32.totalorder %v1042, 1
        %vm1051 = vcmp.eq.s32.totalorder %v1043, 1
        %vm1052 = vcmp.eq.s32.totalorder %v1044, 1
        %vm1053 = vcmp.eq.s32.totalorder %v1045, 1
        %vm1054 = vcmp.eq.s32.totalorder %v1046, 1
        %v1055 = vsel %vm1047, %v1037, 0.0
        %v1056 = vsel %vm1047, %v1038, 0.0
        %v1057 = vsel %vm1048, %v1035, 0.0
        %v1058 = vsel %vm1048, %v1036, 0.0
        %v1059 = vsel %vm1049, %v1033, 0.0
        %v1060 = vsel %vm1049, %v1034, 0.0
        %v1061 = vsel %vm1050, %v1031, 0.0
        %v1062 = vsel %vm1050, %v1032, 0.0
        %v1063 = vsel %vm1051, %v1029, 0.0
        %v1064 = vsel %vm1051, %v1030, 0.0
        %v1065 = vsel %vm1052, %v1027, 0.0
        %v1066 = vsel %vm1052, %v1028, 0.0
        %v1067 = vsel %vm1053, %v1025, 0.0
        %v1068 = vsel %vm1053, %v1026, 0.0
        %v1069 = vsel %vm1054, %v1023, 0.0
        %v1070 = vsel %vm1054, %v1024, 0.0
        %v1072 = vlaneseq
        %v1073 = vshrl.u32 %v1072, 7
        %v1074 = vsub.s32 0, %v1073
        %v1075 = vrot.slane %v983, %v1074
        %v1076 = vlaneseq
        %v1077 = vshrl.u32 %v1076, 7
        %v1078 = vsub.s32 4, %v1077
        %v1079 = vrot.slane %v983, %v1078
        %v1082 = vlaneseq
        %v1083 = vshrl.u32 %v1082, 7
        %v1084 = vsub.s32 0, %v1083
        %v1085 = vrot.slane %v1075, %v1084
        %v1086 = vlaneseq
        %v1087 = vshrl.u32 %v1086, 7
        %v1088 = vsub.s32 0, %v1087
        %v1089 = vrot.slane %v1079, %v1088
        %v1090 = vmul.f32 %v1055, %v1085
        %v1091 = vmul.f32 %v1056, %v1089
        %v1092 = vmul.f32 %v1057, %v1085
        %v1093 = vmul.f32 %v1058, %v1089
        %v1094 = vmul.f32 %v1059, %v1085
        %v1095 = vmul.f32 %v1060, %v1089
        %v1096 = vmul.f32 %v1061, %v1085
        %v1097 = vmul.f32 %v1062, %v1089
        %v1098 = vmul.f32 %v1063, %v1085
        %v1099 = vmul.f32 %v1064, %v1089
        %v1100 = vmul.f32 %v1065, %v1085
        %v1101 = vmul.f32 %v1066, %v1089
        %v1102 = vmul.f32 %v1067, %v1085
        %v1103 = vmul.f32 %v1068, %v1089
        %v1104 = vmul.f32 %v1069, %v1085
        %v1105 = vmul.f32 %v1070, %v1089
        %v1106 = vadd.f32 %v996, %v1090
        %v1107 = vadd.f32 %v997, %v1091
        %v1108 = vadd.f32 %v996, %v1092
        %v1109 = vadd.f32 %v997, %v1093
        %v1110 = vadd.f32 %v996, %v1094
        %v1111 = vadd.f32 %v997, %v1095
        %v1112 = vadd.f32 %v996, %v1096
        %v1113 = vadd.f32 %v997, %v1097
        %v1114 = vadd.f32 %v996, %v1098
        %v1115 = vadd.f32 %v997, %v1099
        %v1116 = vadd.f32 %v996, %v1100
        %v1117 = vadd.f32 %v997, %v1101
        %v1118 = vadd.f32 %v996, %v1102
        %v1119 = vadd.f32 %v997, %v1103
        %v1120 = vadd.f32 %v996, %v1104
        %v1121 = vadd.f32 %v997, %v1105
        %vm1122 = vcmp.ge.s32.totalorder %v975, 2
        %vm1123 = vcmp.ge.s32.totalorder %v976, 2
        %vm1124 = vcmp.ge.s32.totalorder %v977, 2
        %vm1125 = vcmp.ge.s32.totalorder %v978, 2
        %vm1126 = vcmp.ge.s32.totalorder %v979, 2
        %vm1127 = vcmp.ge.s32.totalorder %v980, 2
        %vm1128 = vcmp.ge.s32.totalorder %v981, 2
        %vm1129 = vcmp.ge.s32.totalorder %v982, 2
        %v1130 = vrot.slane %v807, 6
        %v1131 = vrot.slane %v809, 6
        %v1132 = vrot.slane %v813, 6
        %v1133 = vrot.slane %v815, 6
        %v1134 = vrot.slane %v819, 6
        %v1135 = vrot.slane %v821, 6
        %v1136 = vrot.slane %v825, 6
        %v1137 = vrot.slane %v827, 6
        %v1138 = vrot.slane %v831, 6
        %v1139 = vrot.slane %v833, 6
        %v1140 = vrot.slane %v837, 6
        %v1141 = vrot.slane %v839, 6
        %v1142 = vrot.slane %v843, 6
        %v1143 = vrot.slane %v845, 6
        %v1144 = vrot.slane %v849, 6
        %v1145 = vrot.slane %v851, 6
        %vm1146 = vcmp.lt.s32.totalorder %v967, 2
        %v1147 = vsel %vm1146, %v1142, %v1144
        %v1148 = vsel %vm1146, %v1143, %v1145
        %v1149 = vsel %vm1146, %v1140, %v1142
        %v1150 = vsel %vm1146, %v1141, %v1143
        %v1151 = vsel %vm1146, %v1138, %v1140
        %v1152 = vsel %vm1146, %v1139, %v1141
        %v1153 = vsel %vm1146, %v1136, %v1138
        %v1154 = vsel %vm1146, %v1137, %v1139
        %v1155 = vsel %vm1146, %v1134, %v1136
        %v1156 = vsel %vm1146, %v1135, %v1137
        %v1157 = vsel %vm1146, %v1132, %v1134
        %v1158 = vsel %vm1146, %v1133, %v1135
        %v1159 = vsel %vm1146, %v1130, %v1132
        %v1160 = vsel %vm1146, %v1131, %v1133
        %v1161 = vsel %vm1146, %v1144, %v1130
        %v1162 = vsel %vm1146, %v1145, %v1131
        %v1163 = vsel %vm1122, 1, 0
        %v1164 = vsel %vm1123, 1, 0
        %v1165 = vsel %vm1124, 1, 0
        %v1166 = vsel %vm1125, 1, 0
        %v1167 = vsel %vm1126, 1, 0
        %v1168 = vsel %vm1127, 1, 0
        %v1169 = vsel %vm1128, 1, 0
        %v1170 = vsel %vm1129, 1, 0
        %vm1171 = vcmp.eq.s32.totalorder %v1163, 1
        %vm1172 = vcmp.eq.s32.totalorder %v1164, 1
        %vm1173 = vcmp.eq.s32.totalorder %v1165, 1
        %vm1174 = vcmp.eq.s32.totalorder %v1166, 1
        %vm1175 = vcmp.eq.s32.totalorder %v1167, 1
        %vm1176 = vcmp.eq.s32.totalorder %v1168, 1
        %vm1177 = vcmp.eq.s32.totalorder %v1169, 1
        %vm1178 = vcmp.eq.s32.totalorder %v1170, 1
        %v1179 = vsel %vm1171, %v1161, 0.0
        %v1180 = vsel %vm1171, %v1162, 0.0
        %v1181 = vsel %vm1172, %v1159, 0.0
        %v1182 = vsel %vm1172, %v1160, 0.0
        %v1183 = vsel %vm1173, %v1157, 0.0
        %v1184 = vsel %vm1173, %v1158, 0.0
        %v1185 = vsel %vm1174, %v1155, 0.0
        %v1186 = vsel %vm1174, %v1156, 0.0
        %v1187 = vsel %vm1175, %v1153, 0.0
        %v1188 = vsel %vm1175, %v1154, 0.0
        %v1189 = vsel %vm1176, %v1151, 0.0
        %v1190 = vsel %vm1176, %v1152, 0.0
        %v1191 = vsel %vm1177, %v1149, 0.0
        %v1192 = vsel %vm1177, %v1150, 0.0
        %v1193 = vsel %vm1178, %v1147, 0.0
        %v1194 = vsel %vm1178, %v1148, 0.0
        %v1195 = vlaneseq
        %v1196 = vshrl.u32 %v1195, 7
        %v1197 = vsub.s32 1, %v1196
        %v1198 = vrot.slane %v983, %v1197
        %v1199 = vlaneseq
        %v1200 = vshrl.u32 %v1199, 7
        %v1201 = vsub.s32 5, %v1200
        %v1202 = vrot.slane %v983, %v1201
        %v1205 = vlaneseq
        %v1206 = vshrl.u32 %v1205, 7
        %v1207 = vsub.s32 1, %v1206
        %v1208 = vrot.slane %v1198, %v1207
        %v1209 = vlaneseq
        %v1210 = vshrl.u32 %v1209, 7
        %v1211 = vsub.s32 1, %v1210
        %v1212 = vrot.slane %v1202, %v1211
        %v1213 = vmul.f32 %v1179, %v1208
        %v1214 = vmul.f32 %v1180, %v1212
        %v1215 = vmul.f32 %v1181, %v1208
        %v1216 = vmul.f32 %v1182, %v1212
        %v1217 = vmul.f32 %v1183, %v1208
        %v1218 = vmul.f32 %v1184, %v1212
        %v1219 = vmul.f32 %v1185, %v1208
        %v1220 = vmul.f32 %v1186, %v1212
        %v1221 = vmul.f32 %v1187, %v1208
        %v1222 = vmul.f32 %v1188, %v1212
        %v1223 = vmul.f32 %v1189, %v1208
        %v1224 = vmul.f32 %v1190, %v1212
        %v1225 = vmul.f32 %v1191, %v1208
        %v1226 = vmul.f32 %v1192, %v1212
        %v1227 = vmul.f32 %v1193, %v1208
        %v1228 = vmul.f32 %v1194, %v1212
        %v1229 = vadd.f32 %v1106, %v1213
        %v1230 = vadd.f32 %v1107, %v1214
        %v1231 = vadd.f32 %v1108, %v1215
        %v1232 = vadd.f32 %v1109, %v1216
        %v1233 = vadd.f32 %v1110, %v1217
        %v1234 = vadd.f32 %v1111, %v1218
        %v1235 = vadd.f32 %v1112, %v1219
        %v1236 = vadd.f32 %v1113, %v1220
        %v1237 = vadd.f32 %v1114, %v1221
        %v1238 = vadd.f32 %v1115, %v1222
        %v1239 = vadd.f32 %v1116, %v1223
        %v1240 = vadd.f32 %v1117, %v1224
        %v1241 = vadd.f32 %v1118, %v1225
        %v1242 = vadd.f32 %v1119, %v1226
        %v1243 = vadd.f32 %v1120, %v1227
        %v1244 = vadd.f32 %v1121, %v1228
        %vm1245 = vcmp.ge.s32.totalorder %v975, 1
        %vm1246 = vcmp.ge.s32.totalorder %v976, 1
        %vm1247 = vcmp.ge.s32.totalorder %v977, 1
        %vm1248 = vcmp.ge.s32.totalorder %v978, 1
        %vm1249 = vcmp.ge.s32.totalorder %v979, 1
        %vm1250 = vcmp.ge.s32.totalorder %v980, 1
        %vm1251 = vcmp.ge.s32.totalorder %v981, 1
        %vm1252 = vcmp.ge.s32.totalorder %v982, 1
        %v1253 = vrot.slane %v807, 7
        %v1254 = vrot.slane %v809, 7
        %v1255 = vrot.slane %v813, 7
        %v1256 = vrot.slane %v815, 7
        %v1257 = vrot.slane %v819, 7
        %v1258 = vrot.slane %v821, 7
        %v1259 = vrot.slane %v825, 7
        %v1260 = vrot.slane %v827, 7
        %v1261 = vrot.slane %v831, 7
        %v1262 = vrot.slane %v833, 7
        %v1263 = vrot.slane %v837, 7
        %v1264 = vrot.slane %v839, 7
        %v1265 = vrot.slane %v843, 7
        %v1266 = vrot.slane %v845, 7
        %v1267 = vrot.slane %v849, 7
        %v1268 = vrot.slane %v851, 7
        %vm1269 = vcmp.lt.s32.totalorder %v967, 1
        %v1270 = vsel %vm1269, %v1265, %v1267
        %v1271 = vsel %vm1269, %v1266, %v1268
        %v1272 = vsel %vm1269, %v1263, %v1265
        %v1273 = vsel %vm1269, %v1264, %v1266
        %v1274 = vsel %vm1269, %v1261, %v1263
        %v1275 = vsel %vm1269, %v1262, %v1264
        %v1276 = vsel %vm1269, %v1259, %v1261
        %v1277 = vsel %vm1269, %v1260, %v1262
        %v1278 = vsel %vm1269, %v1257, %v1259
        %v1279 = vsel %vm1269, %v1258, %v1260
        %v1280 = vsel %vm1269, %v1255, %v1257
        %v1281 = vsel %vm1269, %v1256, %v1258
        %v1282 = vsel %vm1269, %v1253, %v1255
        %v1283 = vsel %vm1269, %v1254, %v1256
        %v1284 = vsel %vm1269, %v1267, %v1253
        %v1285 = vsel %vm1269, %v1268, %v1254
        %v1286 = vsel %vm1245, 1, 0
        %v1287 = vsel %vm1246, 1, 0
        %v1288 = vsel %vm1247, 1, 0
        %v1289 = vsel %vm1248, 1, 0
        %v1290 = vsel %vm1249, 1, 0
        %v1291 = vsel %vm1250, 1, 0
        %v1292 = vsel %vm1251, 1, 0
        %v1293 = vsel %vm1252, 1, 0
        %vm1294 = vcmp.eq.s32.totalorder %v1286, 1
        %vm1295 = vcmp.eq.s32.totalorder %v1287, 1
        %vm1296 = vcmp.eq.s32.totalorder %v1288, 1
        %vm1297 = vcmp.eq.s32.totalorder %v1289, 1
        %vm1298 = vcmp.eq.s32.totalorder %v1290, 1
        %vm1299 = vcmp.eq.s32.totalorder %v1291, 1
        %vm1300 = vcmp.eq.s32.totalorder %v1292, 1
        %vm1301 = vcmp.eq.s32.totalorder %v1293, 1
        %v1302 = vsel %vm1294, %v1284, 0.0
        %v1303 = vsel %vm1294, %v1285, 0.0
        %v1304 = vsel %vm1295, %v1282, 0.0
        %v1305 = vsel %vm1295, %v1283, 0.0
        %v1306 = vsel %vm1296, %v1280, 0.0
        %v1307 = vsel %vm1296, %v1281, 0.0
        %v1308 = vsel %vm1297, %v1278, 0.0
        %v1309 = vsel %vm1297, %v1279, 0.0
        %v1310 = vsel %vm1298, %v1276, 0.0
        %v1311 = vsel %vm1298, %v1277, 0.0
        %v1312 = vsel %vm1299, %v1274, 0.0
        %v1313 = vsel %vm1299, %v1275, 0.0
        %v1314 = vsel %vm1300, %v1272, 0.0
        %v1315 = vsel %vm1300, %v1273, 0.0
        %v1316 = vsel %vm1301, %v1270, 0.0
        %v1317 = vsel %vm1301, %v1271, 0.0
        %v1318 = vlaneseq
        %v1319 = vshrl.u32 %v1318, 7
        %v1320 = vsub.s32 2, %v1319
        %v1321 = vrot.slane %v983, %v1320
        %v1322 = vlaneseq
        %v1323 = vshrl.u32 %v1322, 7
        %v1324 = vsub.s32 6, %v1323
        %v1325 = vrot.slane %v983, %v1324
        %v1328 = vlaneseq
        %v1329 = vshrl.u32 %v1328, 7
        %v1330 = vsub.s32 2, %v1329
        %v1331 = vrot.slane %v1321, %v1330
        %v1332 = vlaneseq
        %v1333 = vshrl.u32 %v1332, 7
        %v1334 = vsub.s32 2, %v1333
        %v1335 = vrot.slane %v1325, %v1334
        %v1336 = vmul.f32 %v1302, %v1331
        %v1337 = vmul.f32 %v1303, %v1335
        %v1338 = vmul.f32 %v1304, %v1331
        %v1339 = vmul.f32 %v1305, %v1335
        %v1340 = vmul.f32 %v1306, %v1331
        %v1341 = vmul.f32 %v1307, %v1335
        %v1342 = vmul.f32 %v1308, %v1331
        %v1343 = vmul.f32 %v1309, %v1335
        %v1344 = vmul.f32 %v1310, %v1331
        %v1345 = vmul.f32 %v1311, %v1335
        %v1346 = vmul.f32 %v1312, %v1331
        %v1347 = vmul.f32 %v1313, %v1335
        %v1348 = vmul.f32 %v1314, %v1331
        %v1349 = vmul.f32 %v1315, %v1335
        %v1350 = vmul.f32 %v1316, %v1331
        %v1351 = vmul.f32 %v1317, %v1335
        %v1352 = vadd.f32 %v1229, %v1336
        %v1353 = vadd.f32 %v1230, %v1337
        %v1354 = vadd.f32 %v1231, %v1338
        %v1355 = vadd.f32 %v1232, %v1339
        %v1356 = vadd.f32 %v1233, %v1340
        %v1357 = vadd.f32 %v1234, %v1341
        %v1358 = vadd.f32 %v1235, %v1342
        %v1359 = vadd.f32 %v1236, %v1343
        %v1360 = vadd.f32 %v1237, %v1344
        %v1361 = vadd.f32 %v1238, %v1345
        %v1362 = vadd.f32 %v1239, %v1346
        %v1363 = vadd.f32 %v1240, %v1347
        %v1364 = vadd.f32 %v1241, %v1348
        %v1365 = vadd.f32 %v1242, %v1349
        %v1366 = vadd.f32 %v1243, %v1350
        %v1367 = vadd.f32 %v1244, %v1351
        %v1368 = vlaneseq
        %v1369 = vshrl.u32 %v1368, 7
        %v1370 = vsub.s32 3, %v1369
        %v1371 = vrot.slane %v983, %v1370
        %v1372 = vlaneseq
        %v1373 = vshrl.u32 %v1372, 7
        %v1374 = vsub.s32 7, %v1373
        %v1375 = vrot.slane %v983, %v1374
        %v1378 = vlaneseq
        %v1379 = vshrl.u32 %v1378, 7
        %v1380 = vsub.s32 3, %v1379
        %v1381 = vrot.slane %v1371, %v1380
        %v1382 = vlaneseq
        %v1383 = vshrl.u32 %v1382, 7
        %v1384 = vsub.s32 3, %v1383
        %v1385 = vrot.slane %v1375, %v1384
        %v1386 = vmul.f32 %v807, %v1381
        %v1387 = vmul.f32 %v809, %v1385
        %v1388 = vmul.f32 %v813, %v1381
        %v1389 = vmul.f32 %v815, %v1385
        %v1390 = vmul.f32 %v819, %v1381
        %v1391 = vmul.f32 %v821, %v1385
        %v1392 = vmul.f32 %v825, %v1381
        %v1393 = vmul.f32 %v827, %v1385
        %v1394 = vmul.f32 %v831, %v1381
        %v1395 = vmul.f32 %v833, %v1385
        %v1396 = vmul.f32 %v837, %v1381
        %v1397 = vmul.f32 %v839, %v1385
        %v1398 = vmul.f32 %v843, %v1381
        %v1399 = vmul.f32 %v845, %v1385
        %v1400 = vmul.f32 %v849, %v1381
        %v1401 = vmul.f32 %v851, %v1385
        %v1402 = vadd.f32 %v1352, %v1386
        %v1403 = vadd.f32 %v1353, %v1387
        %v1404 = vadd.f32 %v1354, %v1388
        %v1405 = vadd.f32 %v1355, %v1389
        %v1406 = vadd.f32 %v1356, %v1390
        %v1407 = vadd.f32 %v1357, %v1391
        %v1408 = vadd.f32 %v1358, %v1392
        %v1409 = vadd.f32 %v1359, %v1393
        %v1410 = vadd.f32 %v1360, %v1394
        %v1411 = vadd.f32 %v1361, %v1395
        %v1412 = vadd.f32 %v1362, %v1396
        %v1413 = vadd.f32 %v1363, %v1397
        %v1414 = vadd.f32 %v1364, %v1398
        %v1415 = vadd.f32 %v1365, %v1399
        %v1416 = vadd.f32 %v1366, %v1400
        %v1417 = vadd.f32 %v1367, %v1401
        %v1418 = vsub.f32 0.0, %v1402
        %v1419 = vsub.f32 0.0, %v1403
        %v1420 = vsub.f32 0.0, %v1404
        %v1421 = vsub.f32 0.0, %v1405
        %v1422 = vsub.f32 0.0, %v1406
        %v1423 = vsub.f32 0.0, %v1407
        %v1424 = vsub.f32 0.0, %v1408
        %v1425 = vsub.f32 0.0, %v1409
        %v1426 = vsub.f32 0.0, %v1410
        %v1427 = vsub.f32 0.0, %v1411
        %v1428 = vsub.f32 0.0, %v1412
        %v1429 = vsub.f32 0.0, %v1413
        %v1430 = vsub.f32 0.0, %v1414
        %v1431 = vsub.f32 0.0, %v1415
        %v1432 = vsub.f32 0.0, %v1416
        %v1433 = vsub.f32 0.0, %v1417
        %v1434 = vmul.f32 %v1418, 1.442695
        %v1435 = vpow.pop %v1434
        %v1436 = vmul.f32 %v1419, 1.442695
        %v1437 = vpow.pop %v1436
        %v1438 = vmul.f32 %v1420, 1.442695
        %v1439 = vpow.pop %v1438
        %v1440 = vmul.f32 %v1421, 1.442695
        %v1441 = vpow.pop %v1440
        %v1442 = vmul.f32 %v1422, 1.442695
        %v1443 = vpow.pop %v1442
        %v1444 = vmul.f32 %v1423, 1.442695
        %v1445 = vpow.pop %v1444
        %v1446 = vmul.f32 %v1424, 1.442695
        %v1447 = vpow.pop %v1446
        %v1448 = vmul.f32 %v1425, 1.442695
        %v1449 = vpow.pop %v1448
        %v1450 = vmul.f32 %v1426, 1.442695
        %v1451 = vpow.pop %v1450
        %v1452 = vmul.f32 %v1427, 1.442695
        %v1453 = vpow.pop %v1452
        %v1454 = vmul.f32 %v1428, 1.442695
        %v1455 = vpow.pop %v1454
        %v1456 = vmul.f32 %v1429, 1.442695
        %v1457 = vpow.pop %v1456
        %v1458 = vmul.f32 %v1430, 1.442695
        %v1459 = vpow.pop %v1458
        %v1460 = vmul.f32 %v1431, 1.442695
        %v1461 = vpow.pop %v1460
        %v1462 = vmul.f32 %v1432, 1.442695
        %v1463 = vpow.pop %v1462
        %v1464 = vmul.f32 %v1433, 1.442695
        %v1465 = vpow.pop %v1464
        %v1466 = vadd.f32 %v1435, 1.0
        %v1467 = vadd.f32 %v1437, 1.0
        %v1468 = vadd.f32 %v1439, 1.0
        %v1469 = vadd.f32 %v1441, 1.0
        %v1470 = vadd.f32 %v1443, 1.0
        %v1471 = vadd.f32 %v1445, 1.0
        %v1472 = vadd.f32 %v1447, 1.0
        %v1473 = vadd.f32 %v1449, 1.0
        %v1474 = vadd.f32 %v1451, 1.0
        %v1475 = vadd.f32 %v1453, 1.0
        %v1476 = vadd.f32 %v1455, 1.0
        %v1477 = vadd.f32 %v1457, 1.0
        %v1478 = vadd.f32 %v1459, 1.0
        %v1479 = vadd.f32 %v1461, 1.0
        %v1480 = vadd.f32 %v1463, 1.0
        %v1481 = vadd.f32 %v1465, 1.0
        %v1482 = vrcp.pop %v1466
        %v1483 = vmul.f32 1.0, %v1482
        %v1484 = vrcp.pop %v1467
        %v1485 = vmul.f32 1.0, %v1484
        %v1486 = vrcp.pop %v1468
        %v1487 = vmul.f32 1.0, %v1486
        %v1488 = vrcp.pop %v1469
        %v1489 = vmul.f32 1.0, %v1488
        %v1490 = vrcp.pop %v1470
        %v1491 = vmul.f32 1.0, %v1490
        %v1492 = vrcp.pop %v1471
        %v1493 = vmul.f32 1.0, %v1492
        %v1494 = vrcp.pop %v1472
        %v1495 = vmul.f32 1.0, %v1494
        %v1496 = vrcp.pop %v1473
        %v1497 = vmul.f32 1.0, %v1496
        %v1498 = vrcp.pop %v1474
        %v1499 = vmul.f32 1.0, %v1498
        %v1500 = vrcp.pop %v1475
        %v1501 = vmul.f32 1.0, %v1500
        %v1502 = vrcp.pop %v1476
        %v1503 = vmul.f32 1.0, %v1502
        %v1504 = vrcp.pop %v1477
        %v1505 = vmul.f32 1.0, %v1504
        %v1506 = vrcp.pop %v1478
        %v1507 = vmul.f32 1.0, %v1506
        %v1508 = vrcp.pop %v1479
        %v1509 = vmul.f32 1.0, %v1508
        %v1510 = vrcp.pop %v1480
        %v1511 = vmul.f32 1.0, %v1510
        %v1512 = vrcp.pop %v1481
        %v1513 = vmul.f32 1.0, %v1512
        %v1514 = vmul.f32 %v1402, %v1483
        %v1515 = vmul.f32 %v1403, %v1485
        %v1516 = vmul.f32 %v1404, %v1487
        %v1517 = vmul.f32 %v1405, %v1489
        %v1518 = vmul.f32 %v1406, %v1491
        %v1519 = vmul.f32 %v1407, %v1493
        %v1520 = vmul.f32 %v1408, %v1495
        %v1521 = vmul.f32 %v1409, %v1497
        %v1522 = vmul.f32 %v1410, %v1499
        %v1523 = vmul.f32 %v1411, %v1501
        %v1524 = vmul.f32 %v1412, %v1503
        %v1525 = vmul.f32 %v1413, %v1505
        %v1526 = vmul.f32 %v1414, %v1507
        %v1527 = vmul.f32 %v1415, %v1509
        %v1528 = vmul.f32 %v1416, %v1511
        %v1529 = vmul.f32 %v1417, %v1513
        %v1530 = vld [vmem:[%s7] sm:$0xff]
        %v1531 = vld [vmem:[%s7 + $0x8] sm:$0xff]
        %v1532 = vld [vmem:[%s7 + $0x10] sm:$0xff]
        %v1533 = vld [vmem:[%s7 + $0x18] sm:$0xff]
        %v1534 = vld [vmem:[%s7 + $0x20] sm:$0xff]
        %v1535 = vld [vmem:[%s7 + $0x28] sm:$0xff]
        %v1536 = vld [vmem:[%s7 + $0x30] sm:$0xff]
        %v1537 = vld [vmem:[%s7 + $0x38] sm:$0xff]
        %v1538 = vld [vmem:[%s7 + $0x40] sm:$0xff]
        %v1539 = vld [vmem:[%s7 + $0x48] sm:$0xff]
        %v1540 = vld [vmem:[%s7 + $0x50] sm:$0xff]
        %v1541 = vld [vmem:[%s7 + $0x58] sm:$0xff]
        %v1542 = vld [vmem:[%s7 + $0x60] sm:$0xff]
        %v1543 = vld [vmem:[%s7 + $0x68] sm:$0xff]
        %v1544 = vld [vmem:[%s7 + $0x70] sm:$0xff]
        %v1545 = vld [vmem:[%s7 + $0x78] sm:$0xff]
        %v1546 = vld [vmem:[%s7 + $0x80] sm:$0xff]
        %v1547 = vld [vmem:[%s7 + $0x88] sm:$0xff]
        %v1548 = vld [vmem:[%s7 + $0x90] sm:$0xff]
        %v1549 = vld [vmem:[%s7 + $0x98] sm:$0xff]
        %v1550 = vld [vmem:[%s7 + $0xa0] sm:$0xff]
        %v1551 = vld [vmem:[%s7 + $0xa8] sm:$0xff]
        %v1552 = vld [vmem:[%s7 + $0xb0] sm:$0xff]
        %v1553 = vld [vmem:[%s7 + $0xb8] sm:$0xff]
        %v1554 = vld [vmem:[%s7 + $0xc0] sm:$0xff]
        %v1555 = vld [vmem:[%s7 + $0xc8] sm:$0xff]
        %v1556 = vld [vmem:[%s7 + $0xd0] sm:$0xff]
        %v1557 = vld [vmem:[%s7 + $0xd8] sm:$0xff]
        %v1558 = vld [vmem:[%s7 + $0xe0] sm:$0xff]
        %v1559 = vld [vmem:[%s7 + $0xe8] sm:$0xff]
        %v1560 = vld [vmem:[%s7 + $0xf0] sm:$0xff]
        %v1561 = vld [vmem:[%s7 + $0xf8] sm:$0xff]
        %v1562 = vld [vmem:[%s7 + $0x100] sm:$0xff]
        %v1563 = vld [vmem:[%s7 + $0x108] sm:$0xff]
        %v1564 = vld [vmem:[%s7 + $0x110] sm:$0xff]
        %v1565 = vld [vmem:[%s7 + $0x118] sm:$0xff]
        %v1566 = vld [vmem:[%s7 + $0x120] sm:$0xff]
        %v1567 = vld [vmem:[%s7 + $0x128] sm:$0xff]
        %v1568 = vld [vmem:[%s7 + $0x130] sm:$0xff]
        %v1569 = vld [vmem:[%s7 + $0x138] sm:$0xff]
        %v1570 = vld [vmem:[%s7 + $0x140] sm:$0xff]
        %v1571 = vld [vmem:[%s7 + $0x148] sm:$0xff]
        %v1572 = vld [vmem:[%s7 + $0x150] sm:$0xff]
        %v1573 = vld [vmem:[%s7 + $0x158] sm:$0xff]
        %v1574 = vld [vmem:[%s7 + $0x160] sm:$0xff]
        %v1575 = vld [vmem:[%s7 + $0x168] sm:$0xff]
        %v1576 = vld [vmem:[%s7 + $0x170] sm:$0xff]
        %v1577 = vld [vmem:[%s7 + $0x178] sm:$0xff]
        %v1578 = vld [vmem:[%s7 + $0x180] sm:$0xff]
        %v1579 = vld [vmem:[%s7 + $0x188] sm:$0xff]
        %v1580 = vld [vmem:[%s7 + $0x190] sm:$0xff]
        %v1581 = vld [vmem:[%s7 + $0x198] sm:$0xff]
        %v1582 = vld [vmem:[%s7 + $0x1a0] sm:$0xff]
        %v1583 = vld [vmem:[%s7 + $0x1a8] sm:$0xff]
        %v1584 = vld [vmem:[%s7 + $0x1b0] sm:$0xff]
        %v1585 = vld [vmem:[%s7 + $0x1b8] sm:$0xff]
        %v1586 = vld [vmem:[%s7 + $0x1c0] sm:$0xff]
        %v1587 = vld [vmem:[%s7 + $0x1c8] sm:$0xff]
        %v1588 = vld [vmem:[%s7 + $0x1d0] sm:$0xff]
        %v1589 = vld [vmem:[%s7 + $0x1d8] sm:$0xff]
        %v1590 = vld [vmem:[%s7 + $0x1e0] sm:$0xff]
        %v1591 = vld [vmem:[%s7 + $0x1e8] sm:$0xff]
        %v1592 = vld [vmem:[%s7 + $0x1f0] sm:$0xff]
        %v1593 = vld [vmem:[%s7 + $0x1f8] sm:$0xff]
        %v1594 = vld [vmem:[%s7 + $0x200] sm:$0xff]
        %v1595 = vld [vmem:[%s7 + $0x208] sm:$0xff]
        %v1596 = vld [vmem:[%s7 + $0x210] sm:$0xff]
        %v1597 = vld [vmem:[%s7 + $0x218] sm:$0xff]
        %v1598 = vld [vmem:[%s7 + $0x220] sm:$0xff]
        %v1599 = vld [vmem:[%s7 + $0x228] sm:$0xff]
        %v1600 = vld [vmem:[%s7 + $0x230] sm:$0xff]
        %v1601 = vld [vmem:[%s7 + $0x238] sm:$0xff]
        %v1602 = vld [vmem:[%s7 + $0x240] sm:$0xff]
        %v1603 = vld [vmem:[%s7 + $0x248] sm:$0xff]
        %v1604 = vld [vmem:[%s7 + $0x250] sm:$0xff]
        %v1605 = vld [vmem:[%s7 + $0x258] sm:$0xff]
        %v1606 = vld [vmem:[%s7 + $0x260] sm:$0xff]
        %v1607 = vld [vmem:[%s7 + $0x268] sm:$0xff]
        %v1608 = vld [vmem:[%s7 + $0x270] sm:$0xff]
        %v1609 = vld [vmem:[%s7 + $0x278] sm:$0xff]
        %v1610 = vld [vmem:[%s7 + $0x280] sm:$0xff]
        %v1611 = vld [vmem:[%s7 + $0x288] sm:$0xff]
        %v1612 = vld [vmem:[%s7 + $0x290] sm:$0xff]
        %v1613 = vld [vmem:[%s7 + $0x298] sm:$0xff]
        %v1614 = vld [vmem:[%s7 + $0x2a0] sm:$0xff]
        %v1615 = vld [vmem:[%s7 + $0x2a8] sm:$0xff]
        %v1616 = vld [vmem:[%s7 + $0x2b0] sm:$0xff]
        %v1617 = vld [vmem:[%s7 + $0x2b8] sm:$0xff]
        %v1618 = vld [vmem:[%s7 + $0x2c0] sm:$0xff]
        %v1619 = vld [vmem:[%s7 + $0x2c8] sm:$0xff]
        %v1620 = vld [vmem:[%s7 + $0x2d0] sm:$0xff]
        %v1621 = vld [vmem:[%s7 + $0x2d8] sm:$0xff]
        %v1622 = vld [vmem:[%s7 + $0x2e0] sm:$0xff]
        %v1623 = vld [vmem:[%s7 + $0x2e8] sm:$0xff]
        %v1624 = vld [vmem:[%s7 + $0x2f0] sm:$0xff]
        %v1625 = vld [vmem:[%s7 + $0x2f8] sm:$0xff]
        %1626 = vmatprep.subr.mxu0 %v1531
        %1627 = vmatpush1.msra.mxu0 %v1530
        %1628 = vmatprep.subr.mxu0 %v1534
        %1629 = vmatpush1.msra.mxu0 %v1533
        %1630 = vmatprep.subr.mxu0 %v1537
        %1631 = vmatpush1.msra.mxu0 %v1536
        %1632 = vmatprep.subr.mxu0 %v1540
        %1633 = vmatpush1.msra.mxu0 %v1539
        %1634 = vmatprep.subr.mxu0 %v1543
        %1635 = vmatpush1.msra.mxu0 %v1542
        %1636 = vmatprep.subr.mxu0 %v1546
        %1637 = vmatpush1.msra.mxu0 %v1545
        %1638 = vmatprep.subr.mxu0 %v1549
        %1639 = vmatpush1.msra.mxu0 %v1548
        %1640 = vmatprep.subr.mxu0 %v1552
        %1641 = vmatpush1.msra.mxu0 %v1551
        %1642 = vmatprep.subr.mxu0 %v1555
        %1643 = vmatpush1.msra.mxu0 %v1554
        %1644 = vmatprep.subr.mxu0 %v1558
        %1645 = vmatpush1.msra.mxu0 %v1557
        %1646 = vmatprep.subr.mxu0 %v1561
        %1647 = vmatpush1.msra.mxu0 %v1560
        %1648 = vmatprep.subr.mxu0 %v1564
        %1649 = vmatpush1.msra.mxu0 %v1563
        %1650 = vmatprep.subr.mxu0 %v1567
        %1651 = vmatpush1.msra.mxu0 %v1566
        %1652 = vmatprep.subr.mxu0 %v1570
        %1653 = vmatpush1.msra.mxu0 %v1569
        %1654 = vmatprep.subr.mxu0 %v1573
        %1655 = vmatpush1.msra.mxu0 %v1572
        %1656 = vmatprep.subr.mxu0 %v1576
        %1657 = vmatpush1.msra.mxu0 %v1575
        %1658 = vmatprep.subr.mxu0 %v1579
        %1659 = vmatpush1.msra.mxu0 %v1578
        %1660 = vmatprep.subr.mxu0 %v1582
        %1661 = vmatpush1.msra.mxu0 %v1581
        %1662 = vmatprep.subr.mxu0 %v1585
        %1663 = vmatpush1.msra.mxu0 %v1584
        %1664 = vmatprep.subr.mxu0 %v1588
        %1665 = vmatpush1.msra.mxu0 %v1587
        %1666 = vmatprep.subr.mxu0 %v1591
        %1667 = vmatpush1.msra.mxu0 %v1590
        %1668 = vmatprep.subr.mxu0 %v1594
        %1669 = vmatpush1.msra.mxu0 %v1593
        %1670 = vmatprep.subr.mxu0 %v1597
        %1671 = vmatpush1.msra.mxu0 %v1596
        %1672 = vmatprep.subr.mxu0 %v1600
        %1673 = vmatpush1.msra.mxu0 %v1599
        %1674 = vmatprep.subr.mxu0 %v1603
        %1675 = vmatpush1.msra.mxu0 %v1602
        %1676 = vmatprep.subr.mxu0 %v1606
        %1677 = vmatpush1.msra.mxu0 %v1605
        %1678 = vmatprep.subr.mxu0 %v1609
        %1679 = vmatpush1.msra.mxu0 %v1608
        %1680 = vmatprep.subr.mxu0 %v1612
        %1681 = vmatpush1.msra.mxu0 %v1611
        %1682 = vmatprep.subr.mxu0 %v1615
        %1683 = vmatpush1.msra.mxu0 %v1614
        %1684 = vmatprep.subr.mxu0 %v1618
        %1685 = vmatpush1.msra.mxu0 %v1617
        %1686 = vmatprep.subr.mxu0 %v1621
        %1687 = vmatpush1.msra.mxu0 %v1620
        %1688 = vmatprep.subr.mxu0 %v1624
        %1689 = vmatpush1.msra.mxu0 %v1623
        %1690 = vmatprep.mubr.f32.mxu0 %v1515
        %1691 = vmatmul.mubr.f32.gmra.mrb[0].mxu0 %v1514
        %v1692 = vpop.f32.mrb[0].mxu0
        %v1693 = vadd.f32 0.0, %v1692
        %v1694 = vpop.f32.mrb[0].mxu0
        %v1695 = vadd.f32 0.0, %v1694
        %1696 = vmatprep.mubr.f32.mxu0 %v1517
        %1697 = vmatmul.mubr.f32.gmra.mrb[0].mxu0 %v1516
        %v1698 = vpop.f32.mrb[0].mxu0
        %v1699 = vadd.f32 0.0, %v1698
        %v1700 = vpop.f32.mrb[0].mxu0
        %v1701 = vadd.f32 0.0, %v1700
        %1702 = vmatprep.mubr.f32.mxu0 %v1519
        %1703 = vmatmul.mubr.f32.gmra.mrb[0].mxu0 %v1518
        %v1704 = vpop.f32.mrb[0].mxu0
        %v1705 = vadd.f32 0.0, %v1704
        %v1706 = vpop.f32.mrb[0].mxu0
        %v1707 = vadd.f32 0.0, %v1706
        %1708 = vmatprep.mubr.f32.mxu0 %v1521
        %1709 = vmatmul.mubr.f32.gmra.mrb[0].mxu0 %v1520
        %v1710 = vpop.f32.mrb[0].mxu0
        %v1711 = vadd.f32 0.0, %v1710
        %v1712 = vpop.f32.mrb[0].mxu0
        %v1713 = vadd.f32 0.0, %v1712
        %1714 = vmatprep.mubr.f32.mxu0 %v1523
        %1715 = vmatmul.mubr.f32.gmra.mrb[0].mxu0 %v1522
        %v1716 = vpop.f32.mrb[0].mxu0
        %v1717 = vadd.f32 0.0, %v1716
        %v1718 = vpop.f32.mrb[0].mxu0
        %v1719 = vadd.f32 0.0, %v1718
        %1720 = vmatprep.mubr.f32.mxu0 %v1525
        %1721 = vmatmul.mubr.f32.gmra.mrb[0].mxu0 %v1524
        %v1722 = vpop.f32.mrb[0].mxu0
        %v1723 = vadd.f32 0.0, %v1722
        %v1724 = vpop.f32.mrb[0].mxu0
        %v1725 = vadd.f32 0.0, %v1724
        %1726 = vmatprep.mubr.f32.mxu0 %v1527
        %1727 = vmatmul.mubr.f32.gmra.mrb[0].mxu0 %v1526
        %v1728 = vpop.f32.mrb[0].mxu0
        %v1729 = vadd.f32 0.0, %v1728
        %v1730 = vpop.f32.mrb[0].mxu0
        %v1731 = vadd.f32 0.0, %v1730
        %1732 = vmatprep.mubr.f32.mxu0 %v1529
        %1733 = vmatmul.mubr.f32.gmra.mrb[0].mxu0 %v1528
        %v1734 = vpop.f32.mrb[0].mxu0
        %v1735 = vadd.f32 0.0, %v1734
        %v1736 = vpop.f32.mrb[0].mxu0
        %v1737 = vadd.f32 0.0, %v1736
        %1738 = vdwg.mxu0
        %1739 = vmatprep.subr.mxu0 0.0
        %1740 = vmatpush1.msra.mxu0 %v1532
        %1741 = vmatprep.subr.mxu0 0.0
        %1742 = vmatpush1.msra.mxu0 %v1535
        %1743 = vmatprep.subr.mxu0 0.0
        %1744 = vmatpush1.msra.mxu0 %v1538
        %1745 = vmatprep.subr.mxu0 0.0
        %1746 = vmatpush1.msra.mxu0 %v1541
        %1747 = vmatprep.subr.mxu0 0.0
        %1748 = vmatpush1.msra.mxu0 %v1544
        %1749 = vmatprep.subr.mxu0 0.0
        %1750 = vmatpush1.msra.mxu0 %v1547
        %1751 = vmatprep.subr.mxu0 0.0
        %1752 = vmatpush1.msra.mxu0 %v1550
        %1753 = vmatprep.subr.mxu0 0.0
        %1754 = vmatpush1.msra.mxu0 %v1553
        %1755 = vmatprep.subr.mxu0 0.0
        %1756 = vmatpush1.msra.mxu0 %v1556
        %1757 = vmatprep.subr.mxu0 0.0
        %1758 = vmatpush1.msra.mxu0 %v1559
        %1759 = vmatprep.subr.mxu0 0.0
        %1760 = vmatpush1.msra.mxu0 %v1562
        %1761 = vmatprep.subr.mxu0 0.0
        %1762 = vmatpush1.msra.mxu0 %v1565
        %1763 = vmatprep.subr.mxu0 0.0
        %1764 = vmatpush1.msra.mxu0 %v1568
        %1765 = vmatprep.subr.mxu0 0.0
        %1766 = vmatpush1.msra.mxu0 %v1571
        %1767 = vmatprep.subr.mxu0 0.0
        %1768 = vmatpush1.msra.mxu0 %v1574
        %1769 = vmatprep.subr.mxu0 0.0
        %1770 = vmatpush1.msra.mxu0 %v1577
        %1771 = vmatprep.subr.mxu0 0.0
        %1772 = vmatpush1.msra.mxu0 %v1580
        %1773 = vmatprep.subr.mxu0 0.0
        %1774 = vmatpush1.msra.mxu0 %v1583
        %1775 = vmatprep.subr.mxu0 0.0
        %1776 = vmatpush1.msra.mxu0 %v1586
        %1777 = vmatprep.subr.mxu0 0.0
        %1778 = vmatpush1.msra.mxu0 %v1589
        %1779 = vmatprep.subr.mxu0 0.0
        %1780 = vmatpush1.msra.mxu0 %v1592
        %1781 = vmatprep.subr.mxu0 0.0
        %1782 = vmatpush1.msra.mxu0 %v1595
        %1783 = vmatprep.subr.mxu0 0.0
        %1784 = vmatpush1.msra.mxu0 %v1598
        %1785 = vmatprep.subr.mxu0 0.0
        %1786 = vmatpush1.msra.mxu0 %v1601
        %1787 = vmatprep.subr.mxu0 0.0
        %1788 = vmatpush1.msra.mxu0 %v1604
        %1789 = vmatprep.subr.mxu0 0.0
        %1790 = vmatpush1.msra.mxu0 %v1607
        %1791 = vmatprep.subr.mxu0 0.0
        %1792 = vmatpush1.msra.mxu0 %v1610
        %1793 = vmatprep.subr.mxu0 0.0
        %1794 = vmatpush1.msra.mxu0 %v1613
        %1795 = vmatprep.subr.mxu0 0.0
        %1796 = vmatpush1.msra.mxu0 %v1616
        %1797 = vmatprep.subr.mxu0 0.0
        %1798 = vmatpush1.msra.mxu0 %v1619
        %1799 = vmatprep.subr.mxu0 0.0
        %1800 = vmatpush1.msra.mxu0 %v1622
        %1801 = vmatprep.subr.mxu0 0.0
        %1802 = vmatpush1.msra.mxu0 %v1625
        %1803 = vmatprep.mubr.f32.mxu0 %v1515
        %1804 = vmatmul.mubr.f32.gmra.mrb[0].mxu0 %v1514
        %v1805 = vpop.f32.mrb[0].mxu0
        %v1806 = vadd.f32 0.0, %v1805
        %v1807 = vpop.f32.mrb[0].mxu0
        %1808 = vmatprep.mubr.f32.mxu0 %v1517
        %1809 = vmatmul.mubr.f32.gmra.mrb[0].mxu0 %v1516
        %v1810 = vpop.f32.mrb[0].mxu0
        %v1811 = vadd.f32 0.0, %v1810
        %v1812 = vpop.f32.mrb[0].mxu0
        %1813 = vmatprep.mubr.f32.mxu0 %v1519
        %1814 = vmatmul.mubr.f32.gmra.mrb[0].mxu0 %v1518
        %v1815 = vpop.f32.mrb[0].mxu0
        %v1816 = vadd.f32 0.0, %v1815
        %v1817 = vpop.f32.mrb[0].mxu0
        %1818 = vmatprep.mubr.f32.mxu0 %v1521
        %1819 = vmatmul.mubr.f32.gmra.mrb[0].mxu0 %v1520
        %v1820 = vpop.f32.mrb[0].mxu0
        %v1821 = vadd.f32 0.0, %v1820
        %v1822 = vpop.f32.mrb[0].mxu0
        %1823 = vmatprep.mubr.f32.mxu0 %v1523
        %1824 = vmatmul.mubr.f32.gmra.mrb[0].mxu0 %v1522
        %v1825 = vpop.f32.mrb[0].mxu0
        %v1826 = vadd.f32 0.0, %v1825
        %v1827 = vpop.f32.mrb[0].mxu0
        %1828 = vmatprep.mubr.f32.mxu0 %v1525
        %1829 = vmatmul.mubr.f32.gmra.mrb[0].mxu0 %v1524
        %v1830 = vpop.f32.mrb[0].mxu0
        %v1831 = vadd.f32 0.0, %v1830
        %v1832 = vpop.f32.mrb[0].mxu0
        %1833 = vmatprep.mubr.f32.mxu0 %v1527
        %1834 = vmatmul.mubr.f32.gmra.mrb[0].mxu0 %v1526
        %v1835 = vpop.f32.mrb[0].mxu0
        %v1836 = vadd.f32 0.0, %v1835
        %v1837 = vpop.f32.mrb[0].mxu0
        %1838 = vmatprep.mubr.f32.mxu0 %v1529
        %1839 = vmatmul.mubr.f32.gmra.mrb[0].mxu0 %v1528
        %v1840 = vpop.f32.mrb[0].mxu0
        %v1841 = vadd.f32 0.0, %v1840
        %v1842 = vpop.f32.mrb[0].mxu0
        %1843 = vdwg.mxu0
        %v1844 = vld [vmem:[%s8] sm:$0x3]
        %v1846 = vlaneseq
        %v1847 = vshrl.u32 %v1846, 7
        %v1848 = vsub.s32 0, %v1847
        %v1849 = vrot.slane %v1844, %v1848
        %v1850 = vlaneseq
        %v1851 = vshrl.u32 %v1850, 7
        %v1852 = vsub.s32 1, %v1851
        %v1853 = vrot.slane %v1844, %v1852
        %v1856 = vadd.f32 %v1693, %v1849
        %v1857 = vadd.f32 %v1695, %v1853
        %v1858 = vadd.f32 %v1699, %v1849
        %v1859 = vadd.f32 %v1701, %v1853
        %v1860 = vadd.f32 %v1705, %v1849
        %v1861 = vadd.f32 %v1707, %v1853
        %v1862 = vadd.f32 %v1711, %v1849
        %v1863 = vadd.f32 %v1713, %v1853
        %v1864 = vadd.f32 %v1717, %v1849
        %v1865 = vadd.f32 %v1719, %v1853
        %v1866 = vadd.f32 %v1723, %v1849
        %v1867 = vadd.f32 %v1725, %v1853
        %v1868 = vadd.f32 %v1729, %v1849
        %v1869 = vadd.f32 %v1731, %v1853
        %v1870 = vadd.f32 %v1735, %v1849
        %v1871 = vadd.f32 %v1737, %v1853
        %vm1872 = vcmp.gt.f32.partialorder %v1856, 20.0
        %vm1873 = vcmp.gt.f32.partialorder %v1857, 20.0
        %vm1874 = vcmp.gt.f32.partialorder %v1858, 20.0
        %vm1875 = vcmp.gt.f32.partialorder %v1859, 20.0
        %vm1876 = vcmp.gt.f32.partialorder %v1860, 20.0
        %vm1877 = vcmp.gt.f32.partialorder %v1861, 20.0
        %vm1878 = vcmp.gt.f32.partialorder %v1862, 20.0
        %vm1879 = vcmp.gt.f32.partialorder %v1863, 20.0
        %vm1880 = vcmp.gt.f32.partialorder %v1864, 20.0
        %vm1881 = vcmp.gt.f32.partialorder %v1865, 20.0
        %vm1882 = vcmp.gt.f32.partialorder %v1866, 20.0
        %vm1883 = vcmp.gt.f32.partialorder %v1867, 20.0
        %vm1884 = vcmp.gt.f32.partialorder %v1868, 20.0
        %vm1885 = vcmp.gt.f32.partialorder %v1869, 20.0
        %vm1886 = vcmp.gt.f32.partialorder %v1870, 20.0
        %vm1887 = vcmp.gt.f32.partialorder %v1871, 20.0
        %v1888 = vmul.f32 %v1856, 1.442695
        %v1889 = vpow.pop %v1888
        %v1890 = vmul.f32 %v1857, 1.442695
        %v1891 = vpow.pop %v1890
        %v1892 = vmul.f32 %v1858, 1.442695
        %v1893 = vpow.pop %v1892
        %v1894 = vmul.f32 %v1859, 1.442695
        %v1895 = vpow.pop %v1894
        %v1896 = vmul.f32 %v1860, 1.442695
        %v1897 = vpow.pop %v1896
        %v1898 = vmul.f32 %v1861, 1.442695
        %v1899 = vpow.pop %v1898
        %v1900 = vmul.f32 %v1862, 1.442695
        %v1901 = vpow.pop %v1900
        %v1902 = vmul.f32 %v1863, 1.442695
        %v1903 = vpow.pop %v1902
        %v1904 = vmul.f32 %v1864, 1.442695
        %v1905 = vpow.pop %v1904
        %v1906 = vmul.f32 %v1865, 1.442695
        %v1907 = vpow.pop %v1906
        %v1908 = vmul.f32 %v1866, 1.442695
        %v1909 = vpow.pop %v1908
        %v1910 = vmul.f32 %v1867, 1.442695
        %v1911 = vpow.pop %v1910
        %v1912 = vmul.f32 %v1868, 1.442695
        %v1913 = vpow.pop %v1912
        %v1914 = vmul.f32 %v1869, 1.442695
        %v1915 = vpow.pop %v1914
        %v1916 = vmul.f32 %v1870, 1.442695
        %v1917 = vpow.pop %v1916
        %v1918 = vmul.f32 %v1871, 1.442695
        %v1919 = vpow.pop %v1918
        %v1920 = vadd.f32 %v1889, 1.0
        %v1921 = vadd.f32 %v1891, 1.0
        %v1922 = vadd.f32 %v1893, 1.0
        %v1923 = vadd.f32 %v1895, 1.0
        %v1924 = vadd.f32 %v1897, 1.0
        %v1925 = vadd.f32 %v1899, 1.0
        %v1926 = vadd.f32 %v1901, 1.0
        %v1927 = vadd.f32 %v1903, 1.0
        %v1928 = vadd.f32 %v1905, 1.0
        %v1929 = vadd.f32 %v1907, 1.0
        %v1930 = vadd.f32 %v1909, 1.0
        %v1931 = vadd.f32 %v1911, 1.0
        %v1932 = vadd.f32 %v1913, 1.0
        %v1933 = vadd.f32 %v1915, 1.0
        %v1934 = vadd.f32 %v1917, 1.0
        %v1935 = vadd.f32 %v1919, 1.0
        %v1936 = vlog2.pop %v1920
        %v1937 = vmul.f32 %v1936, 0.6931472
        %v1938 = vlog2.pop %v1921
        %v1939 = vmul.f32 %v1938, 0.6931472
        %v1940 = vlog2.pop %v1922
        %v1941 = vmul.f32 %v1940, 0.6931472
        %v1942 = vlog2.pop %v1923
        %v1943 = vmul.f32 %v1942, 0.6931472
        %v1944 = vlog2.pop %v1924
        %v1945 = vmul.f32 %v1944, 0.6931472
        %v1946 = vlog2.pop %v1925
        %v1947 = vmul.f32 %v1946, 0.6931472
        %v1948 = vlog2.pop %v1926
        %v1949 = vmul.f32 %v1948, 0.6931472
        %v1950 = vlog2.pop %v1927
        %v1951 = vmul.f32 %v1950, 0.6931472
        %v1952 = vlog2.pop %v1928
        %v1953 = vmul.f32 %v1952, 0.6931472
        %v1954 = vlog2.pop %v1929
        %v1955 = vmul.f32 %v1954, 0.6931472
        %v1956 = vlog2.pop %v1930
        %v1957 = vmul.f32 %v1956, 0.6931472
        %v1958 = vlog2.pop %v1931
        %v1959 = vmul.f32 %v1958, 0.6931472
        %v1960 = vlog2.pop %v1932
        %v1961 = vmul.f32 %v1960, 0.6931472
        %v1962 = vlog2.pop %v1933
        %v1963 = vmul.f32 %v1962, 0.6931472
        %v1964 = vlog2.pop %v1934
        %v1965 = vmul.f32 %v1964, 0.6931472
        %v1966 = vlog2.pop %v1935
        %v1967 = vmul.f32 %v1966, 0.6931472
        %v1968 = vsel %vm1872, %v1856, %v1937
        %v1969 = vsel %vm1873, %v1857, %v1939
        %v1970 = vsel %vm1874, %v1858, %v1941
        %v1971 = vsel %vm1875, %v1859, %v1943
        %v1972 = vsel %vm1876, %v1860, %v1945
        %v1973 = vsel %vm1877, %v1861, %v1947
        %v1974 = vsel %vm1878, %v1862, %v1949
        %v1975 = vsel %vm1879, %v1863, %v1951
        %v1976 = vsel %vm1880, %v1864, %v1953
        %v1977 = vsel %vm1881, %v1865, %v1955
        %v1978 = vsel %vm1882, %v1866, %v1957
        %v1979 = vsel %vm1883, %v1867, %v1959
        %v1980 = vsel %vm1884, %v1868, %v1961
        %v1981 = vsel %vm1885, %v1869, %v1963
        %v1982 = vsel %vm1886, %v1870, %v1965
        %v1983 = vsel %vm1887, %v1871, %v1967
        %v1984 = vmul.f32 %v1968, %v1514
        %v1985 = vmul.f32 %v1969, %v1515
        %v1986 = vmul.f32 %v1970, %v1516
        %v1987 = vmul.f32 %v1971, %v1517
        %v1988 = vmul.f32 %v1972, %v1518
        %v1989 = vmul.f32 %v1973, %v1519
        %v1990 = vmul.f32 %v1974, %v1520
        %v1991 = vmul.f32 %v1975, %v1521
        %v1992 = vmul.f32 %v1976, %v1522
        %v1993 = vmul.f32 %v1977, %v1523
        %v1994 = vmul.f32 %v1978, %v1524
        %v1995 = vmul.f32 %v1979, %v1525
        %v1996 = vmul.f32 %v1980, %v1526
        %v1997 = vmul.f32 %v1981, %v1527
        %v1998 = vmul.f32 %v1982, %v1528
        %v1999 = vmul.f32 %v1983, %v1529
        %vm2000 = vcmp.eq.s32.totalorder %v975, 7
        %vm2001 = vcmp.eq.s32.totalorder %v976, 7
        %vm2002 = vcmp.eq.s32.totalorder %v977, 7
        %vm2003 = vcmp.eq.s32.totalorder %v978, 7
        %vm2004 = vcmp.eq.s32.totalorder %v979, 7
        %vm2005 = vcmp.eq.s32.totalorder %v980, 7
        %vm2006 = vcmp.eq.s32.totalorder %v981, 7
        %vm2007 = vcmp.eq.s32.totalorder %v982, 7
        %v2008 = vsel %vm2000, 1, 0
        %v2009 = vsel %vm2001, 1, 0
        %v2010 = vsel %vm2002, 1, 0
        %v2011 = vsel %vm2003, 1, 0
        %v2012 = vsel %vm2004, 1, 0
        %v2013 = vsel %vm2005, 1, 0
        %v2014 = vsel %vm2006, 1, 0
        %v2015 = vsel %vm2007, 1, 0
        %vm2016 = vcmp.eq.s32.totalorder %v2008, 1
        %vm2017 = vcmp.eq.s32.totalorder %v2009, 1
        %vm2018 = vcmp.eq.s32.totalorder %v2010, 1
        %vm2019 = vcmp.eq.s32.totalorder %v2011, 1
        %vm2020 = vcmp.eq.s32.totalorder %v2012, 1
        %vm2021 = vcmp.eq.s32.totalorder %v2013, 1
        %vm2022 = vcmp.eq.s32.totalorder %v2014, 1
        %vm2023 = vcmp.eq.s32.totalorder %v2015, 1
        %v2024 = vsel %vm2016, %v1806, 0.0
        %v2025 = vsel %vm2017, %v1811, 0.0
        %v2026 = vsel %vm2018, %v1816, 0.0
        %v2027 = vsel %vm2019, %v1821, 0.0
        %v2028 = vsel %vm2020, %v1826, 0.0
        %v2029 = vsel %vm2021, %v1831, 0.0
        %v2030 = vsel %vm2022, %v1836, 0.0
        %v2031 = vsel %vm2023, %v1841, 0.0
        %vm2032 = vcmp.lt.s32.totalorder %v975, 7
        %vm2033 = vcmp.lt.s32.totalorder %v976, 7
        %vm2034 = vcmp.lt.s32.totalorder %v977, 7
        %vm2035 = vcmp.lt.s32.totalorder %v978, 7
        %vm2036 = vcmp.lt.s32.totalorder %v979, 7
        %vm2037 = vcmp.lt.s32.totalorder %v980, 7
        %vm2038 = vcmp.lt.s32.totalorder %v981, 7
        %vm2039 = vcmp.lt.s32.totalorder %v982, 7
        %v2040 = vrot.slane %v1968, 1
        %v2041 = vrot.slane %v1969, 1
        %v2042 = vrot.slane %v1970, 1
        %v2043 = vrot.slane %v1971, 1
        %v2044 = vrot.slane %v1972, 1
        %v2045 = vrot.slane %v1973, 1
        %v2046 = vrot.slane %v1974, 1
        %v2047 = vrot.slane %v1975, 1
        %v2048 = vrot.slane %v1976, 1
        %v2049 = vrot.slane %v1977, 1
        %v2050 = vrot.slane %v1978, 1
        %v2051 = vrot.slane %v1979, 1
        %v2052 = vrot.slane %v1980, 1
        %v2053 = vrot.slane %v1981, 1
        %v2054 = vrot.slane %v1982, 1
        %v2055 = vrot.slane %v1983, 1
        %vm2056 = vcmp.lt.s32.totalorder %v967, 7
        %v2057 = vsel %vm2056, %v2052, %v2054
        %v2058 = vsel %vm2056, %v2053, %v2055
        %v2059 = vsel %vm2056, %v2050, %v2052
        %v2060 = vsel %vm2056, %v2051, %v2053
        %v2061 = vsel %vm2056, %v2048, %v2050
        %v2062 = vsel %vm2056, %v2049, %v2051
        %v2063 = vsel %vm2056, %v2046, %v2048
        %v2064 = vsel %vm2056, %v2047, %v2049
        %v2065 = vsel %vm2056, %v2044, %v2046
        %v2066 = vsel %vm2056, %v2045, %v2047
        %v2067 = vsel %vm2056, %v2042, %v2044
        %v2068 = vsel %vm2056, %v2043, %v2045
        %v2069 = vsel %vm2056, %v2040, %v2042
        %v2070 = vsel %vm2056, %v2041, %v2043
        %v2071 = vsel %vm2056, %v2054, %v2040
        %v2072 = vsel %vm2056, %v2055, %v2041
        %v2073 = vsel %vm2032, 1, 0
        %v2074 = vsel %vm2033, 1, 0
        %v2075 = vsel %vm2034, 1, 0
        %v2076 = vsel %vm2035, 1, 0
        %v2077 = vsel %vm2036, 1, 0
        %v2078 = vsel %vm2037, 1, 0
        %v2079 = vsel %vm2038, 1, 0
        %v2080 = vsel %vm2039, 1, 0
        %vm2081 = vcmp.eq.s32.totalorder %v2073, 1
        %vm2082 = vcmp.eq.s32.totalorder %v2074, 1
        %vm2083 = vcmp.eq.s32.totalorder %v2075, 1
        %vm2084 = vcmp.eq.s32.totalorder %v2076, 1
        %vm2085 = vcmp.eq.s32.totalorder %v2077, 1
        %vm2086 = vcmp.eq.s32.totalorder %v2078, 1
        %vm2087 = vcmp.eq.s32.totalorder %v2079, 1
        %vm2088 = vcmp.eq.s32.totalorder %v2080, 1
        %v2089 = vsel %vm2081, %v2069, 0.0
        %v2090 = vsel %vm2081, %v2070, 0.0
        %v2091 = vsel %vm2082, %v2067, 0.0
        %v2092 = vsel %vm2082, %v2068, 0.0
        %v2093 = vsel %vm2083, %v2065, 0.0
        %v2094 = vsel %vm2083, %v2066, 0.0
        %v2095 = vsel %vm2084, %v2063, 0.0
        %v2096 = vsel %vm2084, %v2064, 0.0
        %v2097 = vsel %vm2085, %v2061, 0.0
        %v2098 = vsel %vm2085, %v2062, 0.0
        %v2099 = vsel %vm2086, %v2059, 0.0
        %v2100 = vsel %vm2086, %v2060, 0.0
        %v2101 = vsel %vm2087, %v2057, 0.0
        %v2102 = vsel %vm2087, %v2058, 0.0
        %v2103 = vsel %vm2088, %v2071, 0.0
        %v2104 = vsel %vm2088, %v2072, 0.0
        %v2105 = vadd.f32 %v1968, %v2089
        %v2106 = vadd.f32 %v1969, %v2090
        %v2107 = vadd.f32 %v1970, %v2091
        %v2108 = vadd.f32 %v1971, %v2092
        %v2109 = vadd.f32 %v1972, %v2093
        %v2110 = vadd.f32 %v1973, %v2094
        %v2111 = vadd.f32 %v1974, %v2095
        %v2112 = vadd.f32 %v1975, %v2096
        %v2113 = vadd.f32 %v1976, %v2097
        %v2114 = vadd.f32 %v1977, %v2098
        %v2115 = vadd.f32 %v1978, %v2099
        %v2116 = vadd.f32 %v1979, %v2100
        %v2117 = vadd.f32 %v1980, %v2101
        %v2118 = vadd.f32 %v1981, %v2102
        %v2119 = vadd.f32 %v1982, %v2103
        %v2120 = vadd.f32 %v1983, %v2104
        %2129 = vrot.lane.b32.xlu0 %v2024, 112
        %v2130 = vpop.permute.xlu0 %2129
        %2131 = vrot.lane.b32.xlu0 %v2025, 112
        %v2132 = vpop.permute.xlu0 %2131
        %2133 = vrot.lane.b32.xlu0 %v2026, 112
        %v2134 = vpop.permute.xlu0 %2133
        %2135 = vrot.lane.b32.xlu0 %v2027, 112
        %v2136 = vpop.permute.xlu0 %2135
        %2137 = vrot.lane.b32.xlu0 %v2028, 112
        %v2138 = vpop.permute.xlu0 %2137
        %2139 = vrot.lane.b32.xlu0 %v2029, 112
        %v2140 = vpop.permute.xlu0 %2139
        %2141 = vrot.lane.b32.xlu0 %v2030, 112
        %v2142 = vpop.permute.xlu0 %2141
        %2143 = vrot.lane.b32.xlu0 %v2031, 112
        %v2144 = vpop.permute.xlu0 %2143
        %v2153 = vrot.slane %v2130, 1
        %v2154 = vrot.slane %v2132, 1
        %v2155 = vrot.slane %v2134, 1
        %v2156 = vrot.slane %v2136, 1
        %v2157 = vrot.slane %v2138, 1
        %v2158 = vrot.slane %v2140, 1
        %v2159 = vrot.slane %v2142, 1
        %v2160 = vrot.slane %v2144, 1
        %v2161 = vsel %vm2056, %v2159, %v2160
        %v2162 = vsel %vm2056, %v2158, %v2159
        %v2163 = vsel %vm2056, %v2157, %v2158
        %v2164 = vsel %vm2056, %v2156, %v2157
        %v2165 = vsel %vm2056, %v2155, %v2156
        %v2166 = vsel %vm2056, %v2154, %v2155
        %v2167 = vsel %vm2056, %v2153, %v2154
        %v2168 = vsel %vm2056, %v2160, %v2153
        %v2169 = vsel %vm2081, %v2167, 0.0
        %v2170 = vsel %vm2082, %v2166, 0.0
        %v2171 = vsel %vm2083, %v2165, 0.0
        %v2172 = vsel %vm2084, %v2164, 0.0
        %v2173 = vsel %vm2085, %v2163, 0.0
        %v2174 = vsel %vm2086, %v2162, 0.0
        %v2175 = vsel %vm2087, %v2161, 0.0
        %v2176 = vsel %vm2088, %v2168, 0.0
        %2185 = vrot.lane.b32.xlu0 %v2169, 16
        %v2186 = vpop.permute.xlu0 %2185
        %2187 = vrot.lane.b32.xlu0 %v2170, 16
        %v2188 = vpop.permute.xlu0 %2187
        %2189 = vrot.lane.b32.xlu0 %v2171, 16
        %v2190 = vpop.permute.xlu0 %2189
        %2191 = vrot.lane.b32.xlu0 %v2172, 16
        %v2192 = vpop.permute.xlu0 %2191
        %2193 = vrot.lane.b32.xlu0 %v2173, 16
        %v2194 = vpop.permute.xlu0 %2193
        %2195 = vrot.lane.b32.xlu0 %v2174, 16
        %v2196 = vpop.permute.xlu0 %2195
        %2197 = vrot.lane.b32.xlu0 %v2175, 16
        %v2198 = vpop.permute.xlu0 %2197
        %2199 = vrot.lane.b32.xlu0 %v2176, 16
        %v2200 = vpop.permute.xlu0 %2199
        %v2209 = vadd.f32 %v2024, %v2186
        %v2210 = vadd.f32 %v2025, %v2188
        %v2211 = vadd.f32 %v2026, %v2190
        %v2212 = vadd.f32 %v2027, %v2192
        %v2213 = vadd.f32 %v2028, %v2194
        %v2214 = vadd.f32 %v2029, %v2196
        %v2215 = vadd.f32 %v2030, %v2198
        %v2216 = vadd.f32 %v2031, %v2200
        %vm2217 = vcmp.lt.s32.totalorder %v975, 6
        %vm2218 = vcmp.lt.s32.totalorder %v976, 6
        %vm2219 = vcmp.lt.s32.totalorder %v977, 6
        %vm2220 = vcmp.lt.s32.totalorder %v978, 6
        %vm2221 = vcmp.lt.s32.totalorder %v979, 6
        %vm2222 = vcmp.lt.s32.totalorder %v980, 6
        %vm2223 = vcmp.lt.s32.totalorder %v981, 6
        %vm2224 = vcmp.lt.s32.totalorder %v982, 6
        %v2225 = vrot.slane %v2105, 2
        %v2226 = vrot.slane %v2106, 2
        %v2227 = vrot.slane %v2107, 2
        %v2228 = vrot.slane %v2108, 2
        %v2229 = vrot.slane %v2109, 2
        %v2230 = vrot.slane %v2110, 2
        %v2231 = vrot.slane %v2111, 2
        %v2232 = vrot.slane %v2112, 2
        %v2233 = vrot.slane %v2113, 2
        %v2234 = vrot.slane %v2114, 2
        %v2235 = vrot.slane %v2115, 2
        %v2236 = vrot.slane %v2116, 2
        %v2237 = vrot.slane %v2117, 2
        %v2238 = vrot.slane %v2118, 2
        %v2239 = vrot.slane %v2119, 2
        %v2240 = vrot.slane %v2120, 2
        %vm2241 = vcmp.lt.s32.totalorder %v967, 6
        %v2242 = vsel %vm2241, %v2237, %v2239
        %v2243 = vsel %vm2241, %v2238, %v2240
        %v2244 = vsel %vm2241, %v2235, %v2237
        %v2245 = vsel %vm2241, %v2236, %v2238
        %v2246 = vsel %vm2241, %v2233, %v2235
        %v2247 = vsel %vm2241, %v2234, %v2236
        %v2248 = vsel %vm2241, %v2231, %v2233
        %v2249 = vsel %vm2241, %v2232, %v2234
        %v2250 = vsel %vm2241, %v2229, %v2231
        %v2251 = vsel %vm2241, %v2230, %v2232
        %v2252 = vsel %vm2241, %v2227, %v2229
        %v2253 = vsel %vm2241, %v2228, %v2230
        %v2254 = vsel %vm2241, %v2225, %v2227
        %v2255 = vsel %vm2241, %v2226, %v2228
        %v2256 = vsel %vm2241, %v2239, %v2225
        %v2257 = vsel %vm2241, %v2240, %v2226
        %v2258 = vsel %vm2217, 1, 0
        %v2259 = vsel %vm2218, 1, 0
        %v2260 = vsel %vm2219, 1, 0
        %v2261 = vsel %vm2220, 1, 0
        %v2262 = vsel %vm2221, 1, 0
        %v2263 = vsel %vm2222, 1, 0
        %v2264 = vsel %vm2223, 1, 0
        %v2265 = vsel %vm2224, 1, 0
        %vm2266 = vcmp.eq.s32.totalorder %v2258, 1
        %vm2267 = vcmp.eq.s32.totalorder %v2259, 1
        %vm2268 = vcmp.eq.s32.totalorder %v2260, 1
        %vm2269 = vcmp.eq.s32.totalorder %v2261, 1
        %vm2270 = vcmp.eq.s32.totalorder %v2262, 1
        %vm2271 = vcmp.eq.s32.totalorder %v2263, 1
        %vm2272 = vcmp.eq.s32.totalorder %v2264, 1
        %vm2273 = vcmp.eq.s32.totalorder %v2265, 1
        %v2274 = vsel %vm2266, %v2254, 0.0
        %v2275 = vsel %vm2266, %v2255, 0.0
        %v2276 = vsel %vm2267, %v2252, 0.0
        %v2277 = vsel %vm2267, %v2253, 0.0
        %v2278 = vsel %vm2268, %v2250, 0.0
        %v2279 = vsel %vm2268, %v2251, 0.0
        %v2280 = vsel %vm2269, %v2248, 0.0
        %v2281 = vsel %vm2269, %v2249, 0.0
        %v2282 = vsel %vm2270, %v2246, 0.0
        %v2283 = vsel %vm2270, %v2247, 0.0
        %v2284 = vsel %vm2271, %v2244, 0.0
        %v2285 = vsel %vm2271, %v2245, 0.0
        %v2286 = vsel %vm2272, %v2242, 0.0
        %v2287 = vsel %vm2272, %v2243, 0.0
        %v2288 = vsel %vm2273, %v2256, 0.0
        %v2289 = vsel %vm2273, %v2257, 0.0
        %v2290 = vadd.f32 %v2105, %v2274
        %v2291 = vadd.f32 %v2106, %v2275
        %v2292 = vadd.f32 %v2107, %v2276
        %v2293 = vadd.f32 %v2108, %v2277
        %v2294 = vadd.f32 %v2109, %v2278
        %v2295 = vadd.f32 %v2110, %v2279
        %v2296 = vadd.f32 %v2111, %v2280
        %v2297 = vadd.f32 %v2112, %v2281
        %v2298 = vadd.f32 %v2113, %v2282
        %v2299 = vadd.f32 %v2114, %v2283
        %v2300 = vadd.f32 %v2115, %v2284
        %v2301 = vadd.f32 %v2116, %v2285
        %v2302 = vadd.f32 %v2117, %v2286
        %v2303 = vadd.f32 %v2118, %v2287
        %v2304 = vadd.f32 %v2119, %v2288
        %v2305 = vadd.f32 %v2120, %v2289
        %2314 = vrot.lane.b32.xlu0 %v2209, 112
        %v2315 = vpop.permute.xlu0 %2314
        %2316 = vrot.lane.b32.xlu0 %v2210, 112
        %v2317 = vpop.permute.xlu0 %2316
        %2318 = vrot.lane.b32.xlu0 %v2211, 112
        %v2319 = vpop.permute.xlu0 %2318
        %2320 = vrot.lane.b32.xlu0 %v2212, 112
        %v2321 = vpop.permute.xlu0 %2320
        %2322 = vrot.lane.b32.xlu0 %v2213, 112
        %v2323 = vpop.permute.xlu0 %2322
        %2324 = vrot.lane.b32.xlu0 %v2214, 112
        %v2325 = vpop.permute.xlu0 %2324
        %2326 = vrot.lane.b32.xlu0 %v2215, 112
        %v2327 = vpop.permute.xlu0 %2326
        %2328 = vrot.lane.b32.xlu0 %v2216, 112
        %v2329 = vpop.permute.xlu0 %2328
        %v2338 = vrot.slane %v2315, 2
        %v2339 = vrot.slane %v2317, 2
        %v2340 = vrot.slane %v2319, 2
        %v2341 = vrot.slane %v2321, 2
        %v2342 = vrot.slane %v2323, 2
        %v2343 = vrot.slane %v2325, 2
        %v2344 = vrot.slane %v2327, 2
        %v2345 = vrot.slane %v2329, 2
        %v2346 = vsel %vm2241, %v2344, %v2345
        %v2347 = vsel %vm2241, %v2343, %v2344
        %v2348 = vsel %vm2241, %v2342, %v2343
        %v2349 = vsel %vm2241, %v2341, %v2342
        %v2350 = vsel %vm2241, %v2340, %v2341
        %v2351 = vsel %vm2241, %v2339, %v2340
        %v2352 = vsel %vm2241, %v2338, %v2339
        %v2353 = vsel %vm2241, %v2345, %v2338
        %v2354 = vsel %vm2266, %v2352, 0.0
        %v2355 = vsel %vm2267, %v2351, 0.0
        %v2356 = vsel %vm2268, %v2350, 0.0
        %v2357 = vsel %vm2269, %v2349, 0.0
        %v2358 = vsel %vm2270, %v2348, 0.0
        %v2359 = vsel %vm2271, %v2347, 0.0
        %v2360 = vsel %vm2272, %v2346, 0.0
        %v2361 = vsel %vm2273, %v2353, 0.0
        %2370 = vrot.lane.b32.xlu0 %v2354, 16
        %v2371 = vpop.permute.xlu0 %2370
        %2372 = vrot.lane.b32.xlu0 %v2355, 16
        %v2373 = vpop.permute.xlu0 %2372
        %2374 = vrot.lane.b32.xlu0 %v2356, 16
        %v2375 = vpop.permute.xlu0 %2374
        %2376 = vrot.lane.b32.xlu0 %v2357, 16
        %v2377 = vpop.permute.xlu0 %2376
        %2378 = vrot.lane.b32.xlu0 %v2358, 16
        %v2379 = vpop.permute.xlu0 %2378
        %2380 = vrot.lane.b32.xlu0 %v2359, 16
        %v2381 = vpop.permute.xlu0 %2380
        %2382 = vrot.lane.b32.xlu0 %v2360, 16
        %v2383 = vpop.permute.xlu0 %2382
        %2384 = vrot.lane.b32.xlu0 %v2361, 16
        %v2385 = vpop.permute.xlu0 %2384
        %v2394 = vadd.f32 %v2209, %v2371
        %v2395 = vadd.f32 %v2210, %v2373
        %v2396 = vadd.f32 %v2211, %v2375
        %v2397 = vadd.f32 %v2212, %v2377
        %v2398 = vadd.f32 %v2213, %v2379
        %v2399 = vadd.f32 %v2214, %v2381
        %v2400 = vadd.f32 %v2215, %v2383
        %v2401 = vadd.f32 %v2216, %v2385
        %vm2402 = vcmp.lt.s32.totalorder %v975, 4
        %vm2403 = vcmp.lt.s32.totalorder %v976, 4
        %vm2404 = vcmp.lt.s32.totalorder %v977, 4
        %vm2405 = vcmp.lt.s32.totalorder %v978, 4
        %vm2406 = vcmp.lt.s32.totalorder %v979, 4
        %vm2407 = vcmp.lt.s32.totalorder %v980, 4
        %vm2408 = vcmp.lt.s32.totalorder %v981, 4
        %vm2409 = vcmp.lt.s32.totalorder %v982, 4
        %v2410 = vrot.slane %v2290, 4
        %v2411 = vrot.slane %v2291, 4
        %v2412 = vrot.slane %v2292, 4
        %v2413 = vrot.slane %v2293, 4
        %v2414 = vrot.slane %v2294, 4
        %v2415 = vrot.slane %v2295, 4
        %v2416 = vrot.slane %v2296, 4
        %v2417 = vrot.slane %v2297, 4
        %v2418 = vrot.slane %v2298, 4
        %v2419 = vrot.slane %v2299, 4
        %v2420 = vrot.slane %v2300, 4
        %v2421 = vrot.slane %v2301, 4
        %v2422 = vrot.slane %v2302, 4
        %v2423 = vrot.slane %v2303, 4
        %v2424 = vrot.slane %v2304, 4
        %v2425 = vrot.slane %v2305, 4
        %vm2426 = vcmp.lt.s32.totalorder %v967, 4
        %v2427 = vsel %vm2426, %v2422, %v2424
        %v2428 = vsel %vm2426, %v2423, %v2425
        %v2429 = vsel %vm2426, %v2420, %v2422
        %v2430 = vsel %vm2426, %v2421, %v2423
        %v2431 = vsel %vm2426, %v2418, %v2420
        %v2432 = vsel %vm2426, %v2419, %v2421
        %v2433 = vsel %vm2426, %v2416, %v2418
        %v2434 = vsel %vm2426, %v2417, %v2419
        %v2435 = vsel %vm2426, %v2414, %v2416
        %v2436 = vsel %vm2426, %v2415, %v2417
        %v2437 = vsel %vm2426, %v2412, %v2414
        %v2438 = vsel %vm2426, %v2413, %v2415
        %v2439 = vsel %vm2426, %v2410, %v2412
        %v2440 = vsel %vm2426, %v2411, %v2413
        %v2441 = vsel %vm2426, %v2424, %v2410
        %v2442 = vsel %vm2426, %v2425, %v2411
        %v2443 = vsel %vm2402, 1, 0
        %v2444 = vsel %vm2403, 1, 0
        %v2445 = vsel %vm2404, 1, 0
        %v2446 = vsel %vm2405, 1, 0
        %v2447 = vsel %vm2406, 1, 0
        %v2448 = vsel %vm2407, 1, 0
        %v2449 = vsel %vm2408, 1, 0
        %v2450 = vsel %vm2409, 1, 0
        %vm2451 = vcmp.eq.s32.totalorder %v2443, 1
        %vm2452 = vcmp.eq.s32.totalorder %v2444, 1
        %vm2453 = vcmp.eq.s32.totalorder %v2445, 1
        %vm2454 = vcmp.eq.s32.totalorder %v2446, 1
        %vm2455 = vcmp.eq.s32.totalorder %v2447, 1
        %vm2456 = vcmp.eq.s32.totalorder %v2448, 1
        %vm2457 = vcmp.eq.s32.totalorder %v2449, 1
        %vm2458 = vcmp.eq.s32.totalorder %v2450, 1
        %v2459 = vsel %vm2451, %v2439, 0.0
        %v2460 = vsel %vm2451, %v2440, 0.0
        %v2461 = vsel %vm2452, %v2437, 0.0
        %v2462 = vsel %vm2452, %v2438, 0.0
        %v2463 = vsel %vm2453, %v2435, 0.0
        %v2464 = vsel %vm2453, %v2436, 0.0
        %v2465 = vsel %vm2454, %v2433, 0.0
        %v2466 = vsel %vm2454, %v2434, 0.0
        %v2467 = vsel %vm2455, %v2431, 0.0
        %v2468 = vsel %vm2455, %v2432, 0.0
        %v2469 = vsel %vm2456, %v2429, 0.0
        %v2470 = vsel %vm2456, %v2430, 0.0
        %v2471 = vsel %vm2457, %v2427, 0.0
        %v2472 = vsel %vm2457, %v2428, 0.0
        %v2473 = vsel %vm2458, %v2441, 0.0
        %v2474 = vsel %vm2458, %v2442, 0.0
        %v2475 = vadd.f32 %v2290, %v2459
        %v2476 = vadd.f32 %v2291, %v2460
        %v2477 = vadd.f32 %v2292, %v2461
        %v2478 = vadd.f32 %v2293, %v2462
        %v2479 = vadd.f32 %v2294, %v2463
        %v2480 = vadd.f32 %v2295, %v2464
        %v2481 = vadd.f32 %v2296, %v2465
        %v2482 = vadd.f32 %v2297, %v2466
        %v2483 = vadd.f32 %v2298, %v2467
        %v2484 = vadd.f32 %v2299, %v2468
        %v2485 = vadd.f32 %v2300, %v2469
        %v2486 = vadd.f32 %v2301, %v2470
        %v2487 = vadd.f32 %v2302, %v2471
        %v2488 = vadd.f32 %v2303, %v2472
        %v2489 = vadd.f32 %v2304, %v2473
        %v2490 = vadd.f32 %v2305, %v2474
        %2499 = vrot.lane.b32.xlu0 %v2394, 112
        %v2500 = vpop.permute.xlu0 %2499
        %2501 = vrot.lane.b32.xlu0 %v2395, 112
        %v2502 = vpop.permute.xlu0 %2501
        %2503 = vrot.lane.b32.xlu0 %v2396, 112
        %v2504 = vpop.permute.xlu0 %2503
        %2505 = vrot.lane.b32.xlu0 %v2397, 112
        %v2506 = vpop.permute.xlu0 %2505
        %2507 = vrot.lane.b32.xlu0 %v2398, 112
        %v2508 = vpop.permute.xlu0 %2507
        %2509 = vrot.lane.b32.xlu0 %v2399, 112
        %v2510 = vpop.permute.xlu0 %2509
        %2511 = vrot.lane.b32.xlu0 %v2400, 112
        %v2512 = vpop.permute.xlu0 %2511
        %2513 = vrot.lane.b32.xlu0 %v2401, 112
        %v2514 = vpop.permute.xlu0 %2513
        %v2523 = vrot.slane %v2500, 4
        %v2524 = vrot.slane %v2502, 4
        %v2525 = vrot.slane %v2504, 4
        %v2526 = vrot.slane %v2506, 4
        %v2527 = vrot.slane %v2508, 4
        %v2528 = vrot.slane %v2510, 4
        %v2529 = vrot.slane %v2512, 4
        %v2530 = vrot.slane %v2514, 4
        %v2531 = vsel %vm2426, %v2529, %v2530
        %v2532 = vsel %vm2426, %v2528, %v2529
        %v2533 = vsel %vm2426, %v2527, %v2528
        %v2534 = vsel %vm2426, %v2526, %v2527
        %v2535 = vsel %vm2426, %v2525, %v2526
        %v2536 = vsel %vm2426, %v2524, %v2525
        %v2537 = vsel %vm2426, %v2523, %v2524
        %v2538 = vsel %vm2426, %v2530, %v2523
        %v2539 = vsel %vm2451, %v2537, 0.0
        %v2540 = vsel %vm2452, %v2536, 0.0
        %v2541 = vsel %vm2453, %v2535, 0.0
        %v2542 = vsel %vm2454, %v2534, 0.0
        %v2543 = vsel %vm2455, %v2533, 0.0
        %v2544 = vsel %vm2456, %v2532, 0.0
        %v2545 = vsel %vm2457, %v2531, 0.0
        %v2546 = vsel %vm2458, %v2538, 0.0
        %2555 = vrot.lane.b32.xlu0 %v2539, 16
        %v2556 = vpop.permute.xlu0 %2555
        %2557 = vrot.lane.b32.xlu0 %v2540, 16
        %v2558 = vpop.permute.xlu0 %2557
        %2559 = vrot.lane.b32.xlu0 %v2541, 16
        %v2560 = vpop.permute.xlu0 %2559
        %2561 = vrot.lane.b32.xlu0 %v2542, 16
        %v2562 = vpop.permute.xlu0 %2561
        %2563 = vrot.lane.b32.xlu0 %v2543, 16
        %v2564 = vpop.permute.xlu0 %2563
        %2565 = vrot.lane.b32.xlu0 %v2544, 16
        %v2566 = vpop.permute.xlu0 %2565
        %2567 = vrot.lane.b32.xlu0 %v2545, 16
        %v2568 = vpop.permute.xlu0 %2567
        %2569 = vrot.lane.b32.xlu0 %v2546, 16
        %v2570 = vpop.permute.xlu0 %2569
        %v2579 = vadd.f32 %v2394, %v2556
        %v2580 = vadd.f32 %v2395, %v2558
        %v2581 = vadd.f32 %v2396, %v2560
        %v2582 = vadd.f32 %v2397, %v2562
        %v2583 = vadd.f32 %v2398, %v2564
        %v2584 = vadd.f32 %v2399, %v2566
        %v2585 = vadd.f32 %v2400, %v2568
        %v2586 = vadd.f32 %v2401, %v2570
        %v2587 = vsub.f32 %v2475, %v1968
        %v2588 = vsub.f32 %v2476, %v1969
        %v2589 = vsub.f32 %v2477, %v1970
        %v2590 = vsub.f32 %v2478, %v1971
        %v2591 = vsub.f32 %v2479, %v1972
        %v2592 = vsub.f32 %v2480, %v1973
        %v2593 = vsub.f32 %v2481, %v1974
        %v2594 = vsub.f32 %v2482, %v1975
        %v2595 = vsub.f32 %v2483, %v1976
        %v2596 = vsub.f32 %v2484, %v1977
        %v2597 = vsub.f32 %v2485, %v1978
        %v2598 = vsub.f32 %v2486, %v1979
        %v2599 = vsub.f32 %v2487, %v1980
        %v2600 = vsub.f32 %v2488, %v1981
        %v2601 = vsub.f32 %v2489, %v1982
        %v2602 = vsub.f32 %v2490, %v1983
        %2611 = vrot.lane.b32.xlu0 %v1806, 16
        %v2612 = vpop.permute.xlu0 %2611
        %2613 = vrot.lane.b32.xlu0 %v1811, 16
        %v2614 = vpop.permute.xlu0 %2613
        %2615 = vrot.lane.b32.xlu0 %v1816, 16
        %v2616 = vpop.permute.xlu0 %2615
        %2617 = vrot.lane.b32.xlu0 %v1821, 16
        %v2618 = vpop.permute.xlu0 %2617
        %2619 = vrot.lane.b32.xlu0 %v1826, 16
        %v2620 = vpop.permute.xlu0 %2619
        %2621 = vrot.lane.b32.xlu0 %v1831, 16
        %v2622 = vpop.permute.xlu0 %2621
        %2623 = vrot.lane.b32.xlu0 %v1836, 16
        %v2624 = vpop.permute.xlu0 %2623
        %2625 = vrot.lane.b32.xlu0 %v1841, 16
        %v2626 = vpop.permute.xlu0 %2625
        %v2635 = vmul.f32 %v2579, %v2612
        %v2636 = vmul.f32 %v2580, %v2614
        %v2637 = vmul.f32 %v2581, %v2616
        %v2638 = vmul.f32 %v2582, %v2618
        %v2639 = vmul.f32 %v2583, %v2620
        %v2640 = vmul.f32 %v2584, %v2622
        %v2641 = vmul.f32 %v2585, %v2624
        %v2642 = vmul.f32 %v2586, %v2626
        %v2643 = vsub.f32 0.0, %v2587
        %v2644 = vsub.f32 0.0, %v2588
        %v2645 = vsub.f32 0.0, %v2589
        %v2646 = vsub.f32 0.0, %v2590
        %v2647 = vsub.f32 0.0, %v2591
        %v2648 = vsub.f32 0.0, %v2592
        %v2649 = vsub.f32 0.0, %v2593
        %v2650 = vsub.f32 0.0, %v2594
        %v2651 = vsub.f32 0.0, %v2595
        %v2652 = vsub.f32 0.0, %v2596
        %v2653 = vsub.f32 0.0, %v2597
        %v2654 = vsub.f32 0.0, %v2598
        %v2655 = vsub.f32 0.0, %v2599
        %v2656 = vsub.f32 0.0, %v2600
        %v2657 = vsub.f32 0.0, %v2601
        %v2658 = vsub.f32 0.0, %v2602
        %v2659 = vmul.f32 %v2643, 1.442695
        %v2660 = vpow.pop %v2659
        %v2661 = vmul.f32 %v2644, 1.442695
        %v2662 = vpow.pop %v2661
        %v2663 = vmul.f32 %v2645, 1.442695
        %v2664 = vpow.pop %v2663
        %v2665 = vmul.f32 %v2646, 1.442695
        %v2666 = vpow.pop %v2665
        %v2667 = vmul.f32 %v2647, 1.442695
        %v2668 = vpow.pop %v2667
        %v2669 = vmul.f32 %v2648, 1.442695
        %v2670 = vpow.pop %v2669
        %v2671 = vmul.f32 %v2649, 1.442695
        %v2672 = vpow.pop %v2671
        %v2673 = vmul.f32 %v2650, 1.442695
        %v2674 = vpow.pop %v2673
        %v2675 = vmul.f32 %v2651, 1.442695
        %v2676 = vpow.pop %v2675
        %v2677 = vmul.f32 %v2652, 1.442695
        %v2678 = vpow.pop %v2677
        %v2679 = vmul.f32 %v2653, 1.442695
        %v2680 = vpow.pop %v2679
        %v2681 = vmul.f32 %v2654, 1.442695
        %v2682 = vpow.pop %v2681
        %v2683 = vmul.f32 %v2655, 1.442695
        %v2684 = vpow.pop %v2683
        %v2685 = vmul.f32 %v2656, 1.442695
        %v2686 = vpow.pop %v2685
        %v2687 = vmul.f32 %v2657, 1.442695
        %v2688 = vpow.pop %v2687
        %v2689 = vmul.f32 %v2658, 1.442695
        %v2690 = vpow.pop %v2689
        %2692 = vset.pattern.permute.xlu0 16
        %2693 = vperm.xlu0 %2692, %v2635
        %v2694 = vpop.permute.xlu0 %2693
        %2697 = vset.pattern.permute.xlu0 16
        %2698 = vperm.xlu0 %2697, %v2636
        %v2699 = vpop.permute.xlu0 %2698
        %2702 = vset.pattern.permute.xlu0 16
        %2703 = vperm.xlu0 %2702, %v2637
        %v2704 = vpop.permute.xlu0 %2703
        %2707 = vset.pattern.permute.xlu0 16
        %2708 = vperm.xlu0 %2707, %v2638
        %v2709 = vpop.permute.xlu0 %2708
        %2712 = vset.pattern.permute.xlu0 16
        %2713 = vperm.xlu0 %2712, %v2639
        %v2714 = vpop.permute.xlu0 %2713
        %2717 = vset.pattern.permute.xlu0 16
        %2718 = vperm.xlu0 %2717, %v2640
        %v2719 = vpop.permute.xlu0 %2718
        %2722 = vset.pattern.permute.xlu0 16
        %2723 = vperm.xlu0 %2722, %v2641
        %v2724 = vpop.permute.xlu0 %2723
        %2727 = vset.pattern.permute.xlu0 16
        %2728 = vperm.xlu0 %2727, %v2642
        %v2729 = vpop.permute.xlu0 %2728
        %v2731 = vmul.f32 %v2694, %v2660
        %v2732 = vmul.f32 %v2694, %v2662
        %v2733 = vmul.f32 %v2699, %v2664
        %v2734 = vmul.f32 %v2699, %v2666
        %v2735 = vmul.f32 %v2704, %v2668
        %v2736 = vmul.f32 %v2704, %v2670
        %v2737 = vmul.f32 %v2709, %v2672
        %v2738 = vmul.f32 %v2709, %v2674
        %v2739 = vmul.f32 %v2714, %v2676
        %v2740 = vmul.f32 %v2714, %v2678
        %v2741 = vmul.f32 %v2719, %v2680
        %v2742 = vmul.f32 %v2719, %v2682
        %v2743 = vmul.f32 %v2724, %v2684
        %v2744 = vmul.f32 %v2724, %v2686
        %v2745 = vmul.f32 %v2729, %v2688
        %v2746 = vmul.f32 %v2729, %v2690
        %v2747 = vmul.f32 %v2660, %v2660
        %v2748 = vmul.f32 %v2662, %v2662
        %v2749 = vmul.f32 %v2664, %v2664
        %v2750 = vmul.f32 %v2666, %v2666
        %v2751 = vmul.f32 %v2668, %v2668
        %v2752 = vmul.f32 %v2670, %v2670
        %v2753 = vmul.f32 %v2672, %v2672
        %v2754 = vmul.f32 %v2674, %v2674
        %v2755 = vmul.f32 %v2676, %v2676
        %v2756 = vmul.f32 %v2678, %v2678
        %v2757 = vmul.f32 %v2680, %v2680
        %v2758 = vmul.f32 %v2682, %v2682
        %v2759 = vmul.f32 %v2684, %v2684
        %v2760 = vmul.f32 %v2686, %v2686
        %v2761 = vmul.f32 %v2688, %v2688
        %v2762 = vmul.f32 %v2690, %v2690
        %2763 = vset.pattern.permute.xlu0 17
        %2764 = vperm.xlu0 %2763, %v2635
        %v2765 = vpop.permute.xlu0 %2764
        %2767 = vset.pattern.permute.xlu0 17
        %2768 = vperm.xlu0 %2767, %v2636
        %v2769 = vpop.permute.xlu0 %2768
        %2771 = vset.pattern.permute.xlu0 17
        %2772 = vperm.xlu0 %2771, %v2637
        %v2773 = vpop.permute.xlu0 %2772
        %2775 = vset.pattern.permute.xlu0 17
        %2776 = vperm.xlu0 %2775, %v2638
        %v2777 = vpop.permute.xlu0 %2776
        %2779 = vset.pattern.permute.xlu0 17
        %2780 = vperm.xlu0 %2779, %v2639
        %v2781 = vpop.permute.xlu0 %2780
        %2783 = vset.pattern.permute.xlu0 17
        %2784 = vperm.xlu0 %2783, %v2640
        %v2785 = vpop.permute.xlu0 %2784
        %2787 = vset.pattern.permute.xlu0 17
        %2788 = vperm.xlu0 %2787, %v2641
        %v2789 = vpop.permute.xlu0 %2788
        %2791 = vset.pattern.permute.xlu0 17
        %2792 = vperm.xlu0 %2791, %v2642
        %v2793 = vpop.permute.xlu0 %2792
        %v2795 = vmul.f32 %v2765, %v2747
        %v2796 = vmul.f32 %v2765, %v2748
        %v2797 = vmul.f32 %v2769, %v2749
        %v2798 = vmul.f32 %v2769, %v2750
        %v2799 = vmul.f32 %v2773, %v2751
        %v2800 = vmul.f32 %v2773, %v2752
        %v2801 = vmul.f32 %v2777, %v2753
        %v2802 = vmul.f32 %v2777, %v2754
        %v2803 = vmul.f32 %v2781, %v2755
        %v2804 = vmul.f32 %v2781, %v2756
        %v2805 = vmul.f32 %v2785, %v2757
        %v2806 = vmul.f32 %v2785, %v2758
        %v2807 = vmul.f32 %v2789, %v2759
        %v2808 = vmul.f32 %v2789, %v2760
        %v2809 = vmul.f32 %v2793, %v2761
        %v2810 = vmul.f32 %v2793, %v2762
        %v2811 = vadd.f32 %v2731, %v2795
        %v2812 = vadd.f32 %v2732, %v2796
        %v2813 = vadd.f32 %v2733, %v2797
        %v2814 = vadd.f32 %v2734, %v2798
        %v2815 = vadd.f32 %v2735, %v2799
        %v2816 = vadd.f32 %v2736, %v2800
        %v2817 = vadd.f32 %v2737, %v2801
        %v2818 = vadd.f32 %v2738, %v2802
        %v2819 = vadd.f32 %v2739, %v2803
        %v2820 = vadd.f32 %v2740, %v2804
        %v2821 = vadd.f32 %v2741, %v2805
        %v2822 = vadd.f32 %v2742, %v2806
        %v2823 = vadd.f32 %v2743, %v2807
        %v2824 = vadd.f32 %v2744, %v2808
        %v2825 = vadd.f32 %v2745, %v2809
        %v2826 = vadd.f32 %v2746, %v2810
        %v2827 = vmul.f32 %v2747, %v2660
        %v2828 = vmul.f32 %v2748, %v2662
        %v2829 = vmul.f32 %v2749, %v2664
        %v2830 = vmul.f32 %v2750, %v2666
        %v2831 = vmul.f32 %v2751, %v2668
        %v2832 = vmul.f32 %v2752, %v2670
        %v2833 = vmul.f32 %v2753, %v2672
        %v2834 = vmul.f32 %v2754, %v2674
        %v2835 = vmul.f32 %v2755, %v2676
        %v2836 = vmul.f32 %v2756, %v2678
        %v2837 = vmul.f32 %v2757, %v2680
        %v2838 = vmul.f32 %v2758, %v2682
        %v2839 = vmul.f32 %v2759, %v2684
        %v2840 = vmul.f32 %v2760, %v2686
        %v2841 = vmul.f32 %v2761, %v2688
        %v2842 = vmul.f32 %v2762, %v2690
        %2843 = vset.pattern.permute.xlu0 18
        %2844 = vperm.xlu0 %2843, %v2635
        %v2845 = vpop.permute.xlu0 %2844
        %2847 = vset.pattern.permute.xlu0 18
        %2848 = vperm.xlu0 %2847, %v2636
        %v2849 = vpop.permute.xlu0 %2848
        %2851 = vset.pattern.permute.xlu0 18
        %2852 = vperm.xlu0 %2851, %v2637
        %v2853 = vpop.permute.xlu0 %2852
        %2855 = vset.pattern.permute.xlu0 18
        %2856 = vperm.xlu0 %2855, %v2638
        %v2857 = vpop.permute.xlu0 %2856
        %2859 = vset.pattern.permute.xlu0 18
        %2860 = vperm.xlu0 %2859, %v2639
        %v2861 = vpop.permute.xlu0 %2860
        %2863 = vset.pattern.permute.xlu0 18
        %2864 = vperm.xlu0 %2863, %v2640
        %v2865 = vpop.permute.xlu0 %2864
        %2867 = vset.pattern.permute.xlu0 18
        %2868 = vperm.xlu0 %2867, %v2641
        %v2869 = vpop.permute.xlu0 %2868
        %2871 = vset.pattern.permute.xlu0 18
        %2872 = vperm.xlu0 %2871, %v2642
        %v2873 = vpop.permute.xlu0 %2872
        %v2875 = vmul.f32 %v2845, %v2827
        %v2876 = vmul.f32 %v2845, %v2828
        %v2877 = vmul.f32 %v2849, %v2829
        %v2878 = vmul.f32 %v2849, %v2830
        %v2879 = vmul.f32 %v2853, %v2831
        %v2880 = vmul.f32 %v2853, %v2832
        %v2881 = vmul.f32 %v2857, %v2833
        %v2882 = vmul.f32 %v2857, %v2834
        %v2883 = vmul.f32 %v2861, %v2835
        %v2884 = vmul.f32 %v2861, %v2836
        %v2885 = vmul.f32 %v2865, %v2837
        %v2886 = vmul.f32 %v2865, %v2838
        %v2887 = vmul.f32 %v2869, %v2839
        %v2888 = vmul.f32 %v2869, %v2840
        %v2889 = vmul.f32 %v2873, %v2841
        %v2890 = vmul.f32 %v2873, %v2842
        %v2891 = vadd.f32 %v2811, %v2875
        %v2892 = vadd.f32 %v2812, %v2876
        %v2893 = vadd.f32 %v2813, %v2877
        %v2894 = vadd.f32 %v2814, %v2878
        %v2895 = vadd.f32 %v2815, %v2879
        %v2896 = vadd.f32 %v2816, %v2880
        %v2897 = vadd.f32 %v2817, %v2881
        %v2898 = vadd.f32 %v2818, %v2882
        %v2899 = vadd.f32 %v2819, %v2883
        %v2900 = vadd.f32 %v2820, %v2884
        %v2901 = vadd.f32 %v2821, %v2885
        %v2902 = vadd.f32 %v2822, %v2886
        %v2903 = vadd.f32 %v2823, %v2887
        %v2904 = vadd.f32 %v2824, %v2888
        %v2905 = vadd.f32 %v2825, %v2889
        %v2906 = vadd.f32 %v2826, %v2890
        %v2907 = vmul.f32 %v2827, %v2660
        %v2908 = vmul.f32 %v2828, %v2662
        %v2909 = vmul.f32 %v2829, %v2664
        %v2910 = vmul.f32 %v2830, %v2666
        %v2911 = vmul.f32 %v2831, %v2668
        %v2912 = vmul.f32 %v2832, %v2670
        %v2913 = vmul.f32 %v2833, %v2672
        %v2914 = vmul.f32 %v2834, %v2674
        %v2915 = vmul.f32 %v2835, %v2676
        %v2916 = vmul.f32 %v2836, %v2678
        %v2917 = vmul.f32 %v2837, %v2680
        %v2918 = vmul.f32 %v2838, %v2682
        %v2919 = vmul.f32 %v2839, %v2684
        %v2920 = vmul.f32 %v2840, %v2686
        %v2921 = vmul.f32 %v2841, %v2688
        %v2922 = vmul.f32 %v2842, %v2690
        %2923 = vset.pattern.permute.xlu0 19
        %2924 = vperm.xlu0 %2923, %v2635
        %v2925 = vpop.permute.xlu0 %2924
        %2927 = vset.pattern.permute.xlu0 19
        %2928 = vperm.xlu0 %2927, %v2636
        %v2929 = vpop.permute.xlu0 %2928
        %2931 = vset.pattern.permute.xlu0 19
        %2932 = vperm.xlu0 %2931, %v2637
        %v2933 = vpop.permute.xlu0 %2932
        %2935 = vset.pattern.permute.xlu0 19
        %2936 = vperm.xlu0 %2935, %v2638
        %v2937 = vpop.permute.xlu0 %2936
        %2939 = vset.pattern.permute.xlu0 19
        %2940 = vperm.xlu0 %2939, %v2639
        %v2941 = vpop.permute.xlu0 %2940
        %2943 = vset.pattern.permute.xlu0 19
        %2944 = vperm.xlu0 %2943, %v2640
        %v2945 = vpop.permute.xlu0 %2944
        %2947 = vset.pattern.permute.xlu0 19
        %2948 = vperm.xlu0 %2947, %v2641
        %v2949 = vpop.permute.xlu0 %2948
        %2951 = vset.pattern.permute.xlu0 19
        %2952 = vperm.xlu0 %2951, %v2642
        %v2953 = vpop.permute.xlu0 %2952
        %v2955 = vmul.f32 %v2925, %v2907
        %v2956 = vmul.f32 %v2925, %v2908
        %v2957 = vmul.f32 %v2929, %v2909
        %v2958 = vmul.f32 %v2929, %v2910
        %v2959 = vmul.f32 %v2933, %v2911
        %v2960 = vmul.f32 %v2933, %v2912
        %v2961 = vmul.f32 %v2937, %v2913
        %v2962 = vmul.f32 %v2937, %v2914
        %v2963 = vmul.f32 %v2941, %v2915
        %v2964 = vmul.f32 %v2941, %v2916
        %v2965 = vmul.f32 %v2945, %v2917
        %v2966 = vmul.f32 %v2945, %v2918
        %v2967 = vmul.f32 %v2949, %v2919
        %v2968 = vmul.f32 %v2949, %v2920
        %v2969 = vmul.f32 %v2953, %v2921
        %v2970 = vmul.f32 %v2953, %v2922
        %v2971 = vadd.f32 %v2891, %v2955
        %v2972 = vadd.f32 %v2892, %v2956
        %v2973 = vadd.f32 %v2893, %v2957
        %v2974 = vadd.f32 %v2894, %v2958
        %v2975 = vadd.f32 %v2895, %v2959
        %v2976 = vadd.f32 %v2896, %v2960
        %v2977 = vadd.f32 %v2897, %v2961
        %v2978 = vadd.f32 %v2898, %v2962
        %v2979 = vadd.f32 %v2899, %v2963
        %v2980 = vadd.f32 %v2900, %v2964
        %v2981 = vadd.f32 %v2901, %v2965
        %v2982 = vadd.f32 %v2902, %v2966
        %v2983 = vadd.f32 %v2903, %v2967
        %v2984 = vadd.f32 %v2904, %v2968
        %v2985 = vadd.f32 %v2905, %v2969
        %v2986 = vadd.f32 %v2906, %v2970
        %v2987 = vmul.f32 %v2907, %v2660
        %v2988 = vmul.f32 %v2908, %v2662
        %v2989 = vmul.f32 %v2909, %v2664
        %v2990 = vmul.f32 %v2910, %v2666
        %v2991 = vmul.f32 %v2911, %v2668
        %v2992 = vmul.f32 %v2912, %v2670
        %v2993 = vmul.f32 %v2913, %v2672
        %v2994 = vmul.f32 %v2914, %v2674
        %v2995 = vmul.f32 %v2915, %v2676
        %v2996 = vmul.f32 %v2916, %v2678
        %v2997 = vmul.f32 %v2917, %v2680
        %v2998 = vmul.f32 %v2918, %v2682
        %v2999 = vmul.f32 %v2919, %v2684
        %v3000 = vmul.f32 %v2920, %v2686
        %v3001 = vmul.f32 %v2921, %v2688
        %v3002 = vmul.f32 %v2922, %v2690
        %3003 = vset.pattern.permute.xlu0 20
        %3004 = vperm.xlu0 %3003, %v2635
        %v3005 = vpop.permute.xlu0 %3004
        %3007 = vset.pattern.permute.xlu0 20
        %3008 = vperm.xlu0 %3007, %v2636
        %v3009 = vpop.permute.xlu0 %3008
        %3011 = vset.pattern.permute.xlu0 20
        %3012 = vperm.xlu0 %3011, %v2637
        %v3013 = vpop.permute.xlu0 %3012
        %3015 = vset.pattern.permute.xlu0 20
        %3016 = vperm.xlu0 %3015, %v2638
        %v3017 = vpop.permute.xlu0 %3016
        %3019 = vset.pattern.permute.xlu0 20
        %3020 = vperm.xlu0 %3019, %v2639
        %v3021 = vpop.permute.xlu0 %3020
        %3023 = vset.pattern.permute.xlu0 20
        %3024 = vperm.xlu0 %3023, %v2640
        %v3025 = vpop.permute.xlu0 %3024
        %3027 = vset.pattern.permute.xlu0 20
        %3028 = vperm.xlu0 %3027, %v2641
        %v3029 = vpop.permute.xlu0 %3028
        %3031 = vset.pattern.permute.xlu0 20
        %3032 = vperm.xlu0 %3031, %v2642
        %v3033 = vpop.permute.xlu0 %3032
        %v3035 = vmul.f32 %v3005, %v2987
        %v3036 = vmul.f32 %v3005, %v2988
        %v3037 = vmul.f32 %v3009, %v2989
        %v3038 = vmul.f32 %v3009, %v2990
        %v3039 = vmul.f32 %v3013, %v2991
        %v3040 = vmul.f32 %v3013, %v2992
        %v3041 = vmul.f32 %v3017, %v2993
        %v3042 = vmul.f32 %v3017, %v2994
        %v3043 = vmul.f32 %v3021, %v2995
        %v3044 = vmul.f32 %v3021, %v2996
        %v3045 = vmul.f32 %v3025, %v2997
        %v3046 = vmul.f32 %v3025, %v2998
        %v3047 = vmul.f32 %v3029, %v2999
        %v3048 = vmul.f32 %v3029, %v3000
        %v3049 = vmul.f32 %v3033, %v3001
        %v3050 = vmul.f32 %v3033, %v3002
        %v3051 = vadd.f32 %v2971, %v3035
        %v3052 = vadd.f32 %v2972, %v3036
        %v3053 = vadd.f32 %v2973, %v3037
        %v3054 = vadd.f32 %v2974, %v3038
        %v3055 = vadd.f32 %v2975, %v3039
        %v3056 = vadd.f32 %v2976, %v3040
        %v3057 = vadd.f32 %v2977, %v3041
        %v3058 = vadd.f32 %v2978, %v3042
        %v3059 = vadd.f32 %v2979, %v3043
        %v3060 = vadd.f32 %v2980, %v3044
        %v3061 = vadd.f32 %v2981, %v3045
        %v3062 = vadd.f32 %v2982, %v3046
        %v3063 = vadd.f32 %v2983, %v3047
        %v3064 = vadd.f32 %v2984, %v3048
        %v3065 = vadd.f32 %v2985, %v3049
        %v3066 = vadd.f32 %v2986, %v3050
        %v3067 = vmul.f32 %v2987, %v2660
        %v3068 = vmul.f32 %v2988, %v2662
        %v3069 = vmul.f32 %v2989, %v2664
        %v3070 = vmul.f32 %v2990, %v2666
        %v3071 = vmul.f32 %v2991, %v2668
        %v3072 = vmul.f32 %v2992, %v2670
        %v3073 = vmul.f32 %v2993, %v2672
        %v3074 = vmul.f32 %v2994, %v2674
        %v3075 = vmul.f32 %v2995, %v2676
        %v3076 = vmul.f32 %v2996, %v2678
        %v3077 = vmul.f32 %v2997, %v2680
        %v3078 = vmul.f32 %v2998, %v2682
        %v3079 = vmul.f32 %v2999, %v2684
        %v3080 = vmul.f32 %v3000, %v2686
        %v3081 = vmul.f32 %v3001, %v2688
        %v3082 = vmul.f32 %v3002, %v2690
        %3083 = vset.pattern.permute.xlu0 21
        %3084 = vperm.xlu0 %3083, %v2635
        %v3085 = vpop.permute.xlu0 %3084
        %3087 = vset.pattern.permute.xlu0 21
        %3088 = vperm.xlu0 %3087, %v2636
        %v3089 = vpop.permute.xlu0 %3088
        %3091 = vset.pattern.permute.xlu0 21
        %3092 = vperm.xlu0 %3091, %v2637
        %v3093 = vpop.permute.xlu0 %3092
        %3095 = vset.pattern.permute.xlu0 21
        %3096 = vperm.xlu0 %3095, %v2638
        %v3097 = vpop.permute.xlu0 %3096
        %3099 = vset.pattern.permute.xlu0 21
        %3100 = vperm.xlu0 %3099, %v2639
        %v3101 = vpop.permute.xlu0 %3100
        %3103 = vset.pattern.permute.xlu0 21
        %3104 = vperm.xlu0 %3103, %v2640
        %v3105 = vpop.permute.xlu0 %3104
        %3107 = vset.pattern.permute.xlu0 21
        %3108 = vperm.xlu0 %3107, %v2641
        %v3109 = vpop.permute.xlu0 %3108
        %3111 = vset.pattern.permute.xlu0 21
        %3112 = vperm.xlu0 %3111, %v2642
        %v3113 = vpop.permute.xlu0 %3112
        %v3115 = vmul.f32 %v3085, %v3067
        %v3116 = vmul.f32 %v3085, %v3068
        %v3117 = vmul.f32 %v3089, %v3069
        %v3118 = vmul.f32 %v3089, %v3070
        %v3119 = vmul.f32 %v3093, %v3071
        %v3120 = vmul.f32 %v3093, %v3072
        %v3121 = vmul.f32 %v3097, %v3073
        %v3122 = vmul.f32 %v3097, %v3074
        %v3123 = vmul.f32 %v3101, %v3075
        %v3124 = vmul.f32 %v3101, %v3076
        %v3125 = vmul.f32 %v3105, %v3077
        %v3126 = vmul.f32 %v3105, %v3078
        %v3127 = vmul.f32 %v3109, %v3079
        %v3128 = vmul.f32 %v3109, %v3080
        %v3129 = vmul.f32 %v3113, %v3081
        %v3130 = vmul.f32 %v3113, %v3082
        %v3131 = vadd.f32 %v3051, %v3115
        %v3132 = vadd.f32 %v3052, %v3116
        %v3133 = vadd.f32 %v3053, %v3117
        %v3134 = vadd.f32 %v3054, %v3118
        %v3135 = vadd.f32 %v3055, %v3119
        %v3136 = vadd.f32 %v3056, %v3120
        %v3137 = vadd.f32 %v3057, %v3121
        %v3138 = vadd.f32 %v3058, %v3122
        %v3139 = vadd.f32 %v3059, %v3123
        %v3140 = vadd.f32 %v3060, %v3124
        %v3141 = vadd.f32 %v3061, %v3125
        %v3142 = vadd.f32 %v3062, %v3126
        %v3143 = vadd.f32 %v3063, %v3127
        %v3144 = vadd.f32 %v3064, %v3128
        %v3145 = vadd.f32 %v3065, %v3129
        %v3146 = vadd.f32 %v3066, %v3130
        %v3147 = vmul.f32 %v3067, %v2660
        %v3148 = vmul.f32 %v3068, %v2662
        %v3149 = vmul.f32 %v3069, %v2664
        %v3150 = vmul.f32 %v3070, %v2666
        %v3151 = vmul.f32 %v3071, %v2668
        %v3152 = vmul.f32 %v3072, %v2670
        %v3153 = vmul.f32 %v3073, %v2672
        %v3154 = vmul.f32 %v3074, %v2674
        %v3155 = vmul.f32 %v3075, %v2676
        %v3156 = vmul.f32 %v3076, %v2678
        %v3157 = vmul.f32 %v3077, %v2680
        %v3158 = vmul.f32 %v3078, %v2682
        %v3159 = vmul.f32 %v3079, %v2684
        %v3160 = vmul.f32 %v3080, %v2686
        %v3161 = vmul.f32 %v3081, %v2688
        %v3162 = vmul.f32 %v3082, %v2690
        %3163 = vset.pattern.permute.xlu0 22
        %3164 = vperm.xlu0 %3163, %v2635
        %v3165 = vpop.permute.xlu0 %3164
        %3167 = vset.pattern.permute.xlu0 22
        %3168 = vperm.xlu0 %3167, %v2636
        %v3169 = vpop.permute.xlu0 %3168
        %3171 = vset.pattern.permute.xlu0 22
        %3172 = vperm.xlu0 %3171, %v2637
        %v3173 = vpop.permute.xlu0 %3172
        %3175 = vset.pattern.permute.xlu0 22
        %3176 = vperm.xlu0 %3175, %v2638
        %v3177 = vpop.permute.xlu0 %3176
        %3179 = vset.pattern.permute.xlu0 22
        %3180 = vperm.xlu0 %3179, %v2639
        %v3181 = vpop.permute.xlu0 %3180
        %3183 = vset.pattern.permute.xlu0 22
        %3184 = vperm.xlu0 %3183, %v2640
        %v3185 = vpop.permute.xlu0 %3184
        %3187 = vset.pattern.permute.xlu0 22
        %3188 = vperm.xlu0 %3187, %v2641
        %v3189 = vpop.permute.xlu0 %3188
        %3191 = vset.pattern.permute.xlu0 22
        %3192 = vperm.xlu0 %3191, %v2642
        %v3193 = vpop.permute.xlu0 %3192
        %v3195 = vmul.f32 %v3165, %v3147
        %v3196 = vmul.f32 %v3165, %v3148
        %v3197 = vmul.f32 %v3169, %v3149
        %v3198 = vmul.f32 %v3169, %v3150
        %v3199 = vmul.f32 %v3173, %v3151
        %v3200 = vmul.f32 %v3173, %v3152
        %v3201 = vmul.f32 %v3177, %v3153
        %v3202 = vmul.f32 %v3177, %v3154
        %v3203 = vmul.f32 %v3181, %v3155
        %v3204 = vmul.f32 %v3181, %v3156
        %v3205 = vmul.f32 %v3185, %v3157
        %v3206 = vmul.f32 %v3185, %v3158
        %v3207 = vmul.f32 %v3189, %v3159
        %v3208 = vmul.f32 %v3189, %v3160
        %v3209 = vmul.f32 %v3193, %v3161
        %v3210 = vmul.f32 %v3193, %v3162
        %v3211 = vadd.f32 %v3131, %v3195
        %v3212 = vadd.f32 %v3132, %v3196
        %v3213 = vadd.f32 %v3133, %v3197
        %v3214 = vadd.f32 %v3134, %v3198
        %v3215 = vadd.f32 %v3135, %v3199
        %v3216 = vadd.f32 %v3136, %v3200
        %v3217 = vadd.f32 %v3137, %v3201
        %v3218 = vadd.f32 %v3138, %v3202
        %v3219 = vadd.f32 %v3139, %v3203
        %v3220 = vadd.f32 %v3140, %v3204
        %v3221 = vadd.f32 %v3141, %v3205
        %v3222 = vadd.f32 %v3142, %v3206
        %v3223 = vadd.f32 %v3143, %v3207
        %v3224 = vadd.f32 %v3144, %v3208
        %v3225 = vadd.f32 %v3145, %v3209
        %v3226 = vadd.f32 %v3146, %v3210
        %v3227 = vmul.f32 %v3147, %v2660
        %v3228 = vmul.f32 %v3148, %v2662
        %v3229 = vmul.f32 %v3149, %v2664
        %v3230 = vmul.f32 %v3150, %v2666
        %v3231 = vmul.f32 %v3151, %v2668
        %v3232 = vmul.f32 %v3152, %v2670
        %v3233 = vmul.f32 %v3153, %v2672
        %v3234 = vmul.f32 %v3154, %v2674
        %v3235 = vmul.f32 %v3155, %v2676
        %v3236 = vmul.f32 %v3156, %v2678
        %v3237 = vmul.f32 %v3157, %v2680
        %v3238 = vmul.f32 %v3158, %v2682
        %v3239 = vmul.f32 %v3159, %v2684
        %v3240 = vmul.f32 %v3160, %v2686
        %v3241 = vmul.f32 %v3161, %v2688
        %v3242 = vmul.f32 %v3162, %v2690
        %3243 = vset.pattern.permute.xlu0 23
        %3244 = vperm.xlu0 %3243, %v2635
        %v3245 = vpop.permute.xlu0 %3244
        %3247 = vset.pattern.permute.xlu0 23
        %3248 = vperm.xlu0 %3247, %v2636
        %v3249 = vpop.permute.xlu0 %3248
        %3251 = vset.pattern.permute.xlu0 23
        %3252 = vperm.xlu0 %3251, %v2637
        %v3253 = vpop.permute.xlu0 %3252
        %3255 = vset.pattern.permute.xlu0 23
        %3256 = vperm.xlu0 %3255, %v2638
        %v3257 = vpop.permute.xlu0 %3256
        %3259 = vset.pattern.permute.xlu0 23
        %3260 = vperm.xlu0 %3259, %v2639
        %v3261 = vpop.permute.xlu0 %3260
        %3263 = vset.pattern.permute.xlu0 23
        %3264 = vperm.xlu0 %3263, %v2640
        %v3265 = vpop.permute.xlu0 %3264
        %3267 = vset.pattern.permute.xlu0 23
        %3268 = vperm.xlu0 %3267, %v2641
        %v3269 = vpop.permute.xlu0 %3268
        %3271 = vset.pattern.permute.xlu0 23
        %3272 = vperm.xlu0 %3271, %v2642
        %v3273 = vpop.permute.xlu0 %3272
        %v3275 = vmul.f32 %v3245, %v3227
        %v3276 = vmul.f32 %v3245, %v3228
        %v3277 = vmul.f32 %v3249, %v3229
        %v3278 = vmul.f32 %v3249, %v3230
        %v3279 = vmul.f32 %v3253, %v3231
        %v3280 = vmul.f32 %v3253, %v3232
        %v3281 = vmul.f32 %v3257, %v3233
        %v3282 = vmul.f32 %v3257, %v3234
        %v3283 = vmul.f32 %v3261, %v3235
        %v3284 = vmul.f32 %v3261, %v3236
        %v3285 = vmul.f32 %v3265, %v3237
        %v3286 = vmul.f32 %v3265, %v3238
        %v3287 = vmul.f32 %v3269, %v3239
        %v3288 = vmul.f32 %v3269, %v3240
        %v3289 = vmul.f32 %v3273, %v3241
        %v3290 = vmul.f32 %v3273, %v3242
        %v3291 = vadd.f32 %v3211, %v3275
        %v3292 = vadd.f32 %v3212, %v3276
        %v3293 = vadd.f32 %v3213, %v3277
        %v3294 = vadd.f32 %v3214, %v3278
        %v3295 = vadd.f32 %v3215, %v3279
        %v3296 = vadd.f32 %v3216, %v3280
        %v3297 = vadd.f32 %v3217, %v3281
        %v3298 = vadd.f32 %v3218, %v3282
        %v3299 = vadd.f32 %v3219, %v3283
        %v3300 = vadd.f32 %v3220, %v3284
        %v3301 = vadd.f32 %v3221, %v3285
        %v3302 = vadd.f32 %v3222, %v3286
        %v3303 = vadd.f32 %v3223, %v3287
        %v3304 = vadd.f32 %v3224, %v3288
        %v3305 = vadd.f32 %v3225, %v3289
        %v3306 = vadd.f32 %v3226, %v3290
        %v3307 = vmul.f32 %v3227, %v2660
        %v3308 = vmul.f32 %v3228, %v2662
        %v3309 = vmul.f32 %v3229, %v2664
        %v3310 = vmul.f32 %v3230, %v2666
        %v3311 = vmul.f32 %v3231, %v2668
        %v3312 = vmul.f32 %v3232, %v2670
        %v3313 = vmul.f32 %v3233, %v2672
        %v3314 = vmul.f32 %v3234, %v2674
        %v3315 = vmul.f32 %v3235, %v2676
        %v3316 = vmul.f32 %v3236, %v2678
        %v3317 = vmul.f32 %v3237, %v2680
        %v3318 = vmul.f32 %v3238, %v2682
        %v3319 = vmul.f32 %v3239, %v2684
        %v3320 = vmul.f32 %v3240, %v2686
        %v3321 = vmul.f32 %v3241, %v2688
        %v3322 = vmul.f32 %v3242, %v2690
        %3323 = vset.pattern.permute.xlu0 24
        %3324 = vperm.xlu0 %3323, %v2635
        %v3325 = vpop.permute.xlu0 %3324
        %3327 = vset.pattern.permute.xlu0 24
        %3328 = vperm.xlu0 %3327, %v2636
        %v3329 = vpop.permute.xlu0 %3328
        %3331 = vset.pattern.permute.xlu0 24
        %3332 = vperm.xlu0 %3331, %v2637
        %v3333 = vpop.permute.xlu0 %3332
        %3335 = vset.pattern.permute.xlu0 24
        %3336 = vperm.xlu0 %3335, %v2638
        %v3337 = vpop.permute.xlu0 %3336
        %3339 = vset.pattern.permute.xlu0 24
        %3340 = vperm.xlu0 %3339, %v2639
        %v3341 = vpop.permute.xlu0 %3340
        %3343 = vset.pattern.permute.xlu0 24
        %3344 = vperm.xlu0 %3343, %v2640
        %v3345 = vpop.permute.xlu0 %3344
        %3347 = vset.pattern.permute.xlu0 24
        %3348 = vperm.xlu0 %3347, %v2641
        %v3349 = vpop.permute.xlu0 %3348
        %3351 = vset.pattern.permute.xlu0 24
        %3352 = vperm.xlu0 %3351, %v2642
        %v3353 = vpop.permute.xlu0 %3352
        %v3355 = vmul.f32 %v3325, %v3307
        %v3356 = vmul.f32 %v3325, %v3308
        %v3357 = vmul.f32 %v3329, %v3309
        %v3358 = vmul.f32 %v3329, %v3310
        %v3359 = vmul.f32 %v3333, %v3311
        %v3360 = vmul.f32 %v3333, %v3312
        %v3361 = vmul.f32 %v3337, %v3313
        %v3362 = vmul.f32 %v3337, %v3314
        %v3363 = vmul.f32 %v3341, %v3315
        %v3364 = vmul.f32 %v3341, %v3316
        %v3365 = vmul.f32 %v3345, %v3317
        %v3366 = vmul.f32 %v3345, %v3318
        %v3367 = vmul.f32 %v3349, %v3319
        %v3368 = vmul.f32 %v3349, %v3320
        %v3369 = vmul.f32 %v3353, %v3321
        %v3370 = vmul.f32 %v3353, %v3322
        %v3371 = vadd.f32 %v3291, %v3355
        %v3372 = vadd.f32 %v3292, %v3356
        %v3373 = vadd.f32 %v3293, %v3357
        %v3374 = vadd.f32 %v3294, %v3358
        %v3375 = vadd.f32 %v3295, %v3359
        %v3376 = vadd.f32 %v3296, %v3360
        %v3377 = vadd.f32 %v3297, %v3361
        %v3378 = vadd.f32 %v3298, %v3362
        %v3379 = vadd.f32 %v3299, %v3363
        %v3380 = vadd.f32 %v3300, %v3364
        %v3381 = vadd.f32 %v3301, %v3365
        %v3382 = vadd.f32 %v3302, %v3366
        %v3383 = vadd.f32 %v3303, %v3367
        %v3384 = vadd.f32 %v3304, %v3368
        %v3385 = vadd.f32 %v3305, %v3369
        %v3386 = vadd.f32 %v3306, %v3370
        %v3387 = vmul.f32 %v3307, %v2660
        %v3388 = vmul.f32 %v3308, %v2662
        %v3389 = vmul.f32 %v3309, %v2664
        %v3390 = vmul.f32 %v3310, %v2666
        %v3391 = vmul.f32 %v3311, %v2668
        %v3392 = vmul.f32 %v3312, %v2670
        %v3393 = vmul.f32 %v3313, %v2672
        %v3394 = vmul.f32 %v3314, %v2674
        %v3395 = vmul.f32 %v3315, %v2676
        %v3396 = vmul.f32 %v3316, %v2678
        %v3397 = vmul.f32 %v3317, %v2680
        %v3398 = vmul.f32 %v3318, %v2682
        %v3399 = vmul.f32 %v3319, %v2684
        %v3400 = vmul.f32 %v3320, %v2686
        %v3401 = vmul.f32 %v3321, %v2688
        %v3402 = vmul.f32 %v3322, %v2690
        %3403 = vset.pattern.permute.xlu0 25
        %3404 = vperm.xlu0 %3403, %v2635
        %v3405 = vpop.permute.xlu0 %3404
        %3407 = vset.pattern.permute.xlu0 25
        %3408 = vperm.xlu0 %3407, %v2636
        %v3409 = vpop.permute.xlu0 %3408
        %3411 = vset.pattern.permute.xlu0 25
        %3412 = vperm.xlu0 %3411, %v2637
        %v3413 = vpop.permute.xlu0 %3412
        %3415 = vset.pattern.permute.xlu0 25
        %3416 = vperm.xlu0 %3415, %v2638
        %v3417 = vpop.permute.xlu0 %3416
        %3419 = vset.pattern.permute.xlu0 25
        %3420 = vperm.xlu0 %3419, %v2639
        %v3421 = vpop.permute.xlu0 %3420
        %3423 = vset.pattern.permute.xlu0 25
        %3424 = vperm.xlu0 %3423, %v2640
        %v3425 = vpop.permute.xlu0 %3424
        %3427 = vset.pattern.permute.xlu0 25
        %3428 = vperm.xlu0 %3427, %v2641
        %v3429 = vpop.permute.xlu0 %3428
        %3431 = vset.pattern.permute.xlu0 25
        %3432 = vperm.xlu0 %3431, %v2642
        %v3433 = vpop.permute.xlu0 %3432
        %v3435 = vmul.f32 %v3405, %v3387
        %v3436 = vmul.f32 %v3405, %v3388
        %v3437 = vmul.f32 %v3409, %v3389
        %v3438 = vmul.f32 %v3409, %v3390
        %v3439 = vmul.f32 %v3413, %v3391
        %v3440 = vmul.f32 %v3413, %v3392
        %v3441 = vmul.f32 %v3417, %v3393
        %v3442 = vmul.f32 %v3417, %v3394
        %v3443 = vmul.f32 %v3421, %v3395
        %v3444 = vmul.f32 %v3421, %v3396
        %v3445 = vmul.f32 %v3425, %v3397
        %v3446 = vmul.f32 %v3425, %v3398
        %v3447 = vmul.f32 %v3429, %v3399
        %v3448 = vmul.f32 %v3429, %v3400
        %v3449 = vmul.f32 %v3433, %v3401
        %v3450 = vmul.f32 %v3433, %v3402
        %v3451 = vadd.f32 %v3371, %v3435
        %v3452 = vadd.f32 %v3372, %v3436
        %v3453 = vadd.f32 %v3373, %v3437
        %v3454 = vadd.f32 %v3374, %v3438
        %v3455 = vadd.f32 %v3375, %v3439
        %v3456 = vadd.f32 %v3376, %v3440
        %v3457 = vadd.f32 %v3377, %v3441
        %v3458 = vadd.f32 %v3378, %v3442
        %v3459 = vadd.f32 %v3379, %v3443
        %v3460 = vadd.f32 %v3380, %v3444
        %v3461 = vadd.f32 %v3381, %v3445
        %v3462 = vadd.f32 %v3382, %v3446
        %v3463 = vadd.f32 %v3383, %v3447
        %v3464 = vadd.f32 %v3384, %v3448
        %v3465 = vadd.f32 %v3385, %v3449
        %v3466 = vadd.f32 %v3386, %v3450
        %v3467 = vmul.f32 %v3387, %v2660
        %v3468 = vmul.f32 %v3388, %v2662
        %v3469 = vmul.f32 %v3389, %v2664
        %v3470 = vmul.f32 %v3390, %v2666
        %v3471 = vmul.f32 %v3391, %v2668
        %v3472 = vmul.f32 %v3392, %v2670
        %v3473 = vmul.f32 %v3393, %v2672
        %v3474 = vmul.f32 %v3394, %v2674
        %v3475 = vmul.f32 %v3395, %v2676
        %v3476 = vmul.f32 %v3396, %v2678
        %v3477 = vmul.f32 %v3397, %v2680
        %v3478 = vmul.f32 %v3398, %v2682
        %v3479 = vmul.f32 %v3399, %v2684
        %v3480 = vmul.f32 %v3400, %v2686
        %v3481 = vmul.f32 %v3401, %v2688
        %v3482 = vmul.f32 %v3402, %v2690
        %3483 = vset.pattern.permute.xlu0 26
        %3484 = vperm.xlu0 %3483, %v2635
        %v3485 = vpop.permute.xlu0 %3484
        %3487 = vset.pattern.permute.xlu0 26
        %3488 = vperm.xlu0 %3487, %v2636
        %v3489 = vpop.permute.xlu0 %3488
        %3491 = vset.pattern.permute.xlu0 26
        %3492 = vperm.xlu0 %3491, %v2637
        %v3493 = vpop.permute.xlu0 %3492
        %3495 = vset.pattern.permute.xlu0 26
        %3496 = vperm.xlu0 %3495, %v2638
        %v3497 = vpop.permute.xlu0 %3496
        %3499 = vset.pattern.permute.xlu0 26
        %3500 = vperm.xlu0 %3499, %v2639
        %v3501 = vpop.permute.xlu0 %3500
        %3503 = vset.pattern.permute.xlu0 26
        %3504 = vperm.xlu0 %3503, %v2640
        %v3505 = vpop.permute.xlu0 %3504
        %3507 = vset.pattern.permute.xlu0 26
        %3508 = vperm.xlu0 %3507, %v2641
        %v3509 = vpop.permute.xlu0 %3508
        %3511 = vset.pattern.permute.xlu0 26
        %3512 = vperm.xlu0 %3511, %v2642
        %v3513 = vpop.permute.xlu0 %3512
        %v3515 = vmul.f32 %v3485, %v3467
        %v3516 = vmul.f32 %v3485, %v3468
        %v3517 = vmul.f32 %v3489, %v3469
        %v3518 = vmul.f32 %v3489, %v3470
        %v3519 = vmul.f32 %v3493, %v3471
        %v3520 = vmul.f32 %v3493, %v3472
        %v3521 = vmul.f32 %v3497, %v3473
        %v3522 = vmul.f32 %v3497, %v3474
        %v3523 = vmul.f32 %v3501, %v3475
        %v3524 = vmul.f32 %v3501, %v3476
        %v3525 = vmul.f32 %v3505, %v3477
        %v3526 = vmul.f32 %v3505, %v3478
        %v3527 = vmul.f32 %v3509, %v3479
        %v3528 = vmul.f32 %v3509, %v3480
        %v3529 = vmul.f32 %v3513, %v3481
        %v3530 = vmul.f32 %v3513, %v3482
        %v3531 = vadd.f32 %v3451, %v3515
        %v3532 = vadd.f32 %v3452, %v3516
        %v3533 = vadd.f32 %v3453, %v3517
        %v3534 = vadd.f32 %v3454, %v3518
        %v3535 = vadd.f32 %v3455, %v3519
        %v3536 = vadd.f32 %v3456, %v3520
        %v3537 = vadd.f32 %v3457, %v3521
        %v3538 = vadd.f32 %v3458, %v3522
        %v3539 = vadd.f32 %v3459, %v3523
        %v3540 = vadd.f32 %v3460, %v3524
        %v3541 = vadd.f32 %v3461, %v3525
        %v3542 = vadd.f32 %v3462, %v3526
        %v3543 = vadd.f32 %v3463, %v3527
        %v3544 = vadd.f32 %v3464, %v3528
        %v3545 = vadd.f32 %v3465, %v3529
        %v3546 = vadd.f32 %v3466, %v3530
        %v3547 = vmul.f32 %v3467, %v2660
        %v3548 = vmul.f32 %v3468, %v2662
        %v3549 = vmul.f32 %v3469, %v2664
        %v3550 = vmul.f32 %v3470, %v2666
        %v3551 = vmul.f32 %v3471, %v2668
        %v3552 = vmul.f32 %v3472, %v2670
        %v3553 = vmul.f32 %v3473, %v2672
        %v3554 = vmul.f32 %v3474, %v2674
        %v3555 = vmul.f32 %v3475, %v2676
        %v3556 = vmul.f32 %v3476, %v2678
        %v3557 = vmul.f32 %v3477, %v2680
        %v3558 = vmul.f32 %v3478, %v2682
        %v3559 = vmul.f32 %v3479, %v2684
        %v3560 = vmul.f32 %v3480, %v2686
        %v3561 = vmul.f32 %v3481, %v2688
        %v3562 = vmul.f32 %v3482, %v2690
        %3563 = vset.pattern.permute.xlu0 27
        %3564 = vperm.xlu0 %3563, %v2635
        %v3565 = vpop.permute.xlu0 %3564
        %3567 = vset.pattern.permute.xlu0 27
        %3568 = vperm.xlu0 %3567, %v2636
        %v3569 = vpop.permute.xlu0 %3568
        %3571 = vset.pattern.permute.xlu0 27
        %3572 = vperm.xlu0 %3571, %v2637
        %v3573 = vpop.permute.xlu0 %3572
        %3575 = vset.pattern.permute.xlu0 27
        %3576 = vperm.xlu0 %3575, %v2638
        %v3577 = vpop.permute.xlu0 %3576
        %3579 = vset.pattern.permute.xlu0 27
        %3580 = vperm.xlu0 %3579, %v2639
        %v3581 = vpop.permute.xlu0 %3580
        %3583 = vset.pattern.permute.xlu0 27
        %3584 = vperm.xlu0 %3583, %v2640
        %v3585 = vpop.permute.xlu0 %3584
        %3587 = vset.pattern.permute.xlu0 27
        %3588 = vperm.xlu0 %3587, %v2641
        %v3589 = vpop.permute.xlu0 %3588
        %3591 = vset.pattern.permute.xlu0 27
        %3592 = vperm.xlu0 %3591, %v2642
        %v3593 = vpop.permute.xlu0 %3592
        %v3595 = vmul.f32 %v3565, %v3547
        %v3596 = vmul.f32 %v3565, %v3548
        %v3597 = vmul.f32 %v3569, %v3549
        %v3598 = vmul.f32 %v3569, %v3550
        %v3599 = vmul.f32 %v3573, %v3551
        %v3600 = vmul.f32 %v3573, %v3552
        %v3601 = vmul.f32 %v3577, %v3553
        %v3602 = vmul.f32 %v3577, %v3554
        %v3603 = vmul.f32 %v3581, %v3555
        %v3604 = vmul.f32 %v3581, %v3556
        %v3605 = vmul.f32 %v3585, %v3557
        %v3606 = vmul.f32 %v3585, %v3558
        %v3607 = vmul.f32 %v3589, %v3559
        %v3608 = vmul.f32 %v3589, %v3560
        %v3609 = vmul.f32 %v3593, %v3561
        %v3610 = vmul.f32 %v3593, %v3562
        %v3611 = vadd.f32 %v3531, %v3595
        %v3612 = vadd.f32 %v3532, %v3596
        %v3613 = vadd.f32 %v3533, %v3597
        %v3614 = vadd.f32 %v3534, %v3598
        %v3615 = vadd.f32 %v3535, %v3599
        %v3616 = vadd.f32 %v3536, %v3600
        %v3617 = vadd.f32 %v3537, %v3601
        %v3618 = vadd.f32 %v3538, %v3602
        %v3619 = vadd.f32 %v3539, %v3603
        %v3620 = vadd.f32 %v3540, %v3604
        %v3621 = vadd.f32 %v3541, %v3605
        %v3622 = vadd.f32 %v3542, %v3606
        %v3623 = vadd.f32 %v3543, %v3607
        %v3624 = vadd.f32 %v3544, %v3608
        %v3625 = vadd.f32 %v3545, %v3609
        %v3626 = vadd.f32 %v3546, %v3610
        %v3627 = vmul.f32 %v3547, %v2660
        %v3628 = vmul.f32 %v3548, %v2662
        %v3629 = vmul.f32 %v3549, %v2664
        %v3630 = vmul.f32 %v3550, %v2666
        %v3631 = vmul.f32 %v3551, %v2668
        %v3632 = vmul.f32 %v3552, %v2670
        %v3633 = vmul.f32 %v3553, %v2672
        %v3634 = vmul.f32 %v3554, %v2674
        %v3635 = vmul.f32 %v3555, %v2676
        %v3636 = vmul.f32 %v3556, %v2678
        %v3637 = vmul.f32 %v3557, %v2680
        %v3638 = vmul.f32 %v3558, %v2682
        %v3639 = vmul.f32 %v3559, %v2684
        %v3640 = vmul.f32 %v3560, %v2686
        %v3641 = vmul.f32 %v3561, %v2688
        %v3642 = vmul.f32 %v3562, %v2690
        %3643 = vset.pattern.permute.xlu0 28
        %3644 = vperm.xlu0 %3643, %v2635
        %v3645 = vpop.permute.xlu0 %3644
        %3647 = vset.pattern.permute.xlu0 28
        %3648 = vperm.xlu0 %3647, %v2636
        %v3649 = vpop.permute.xlu0 %3648
        %3651 = vset.pattern.permute.xlu0 28
        %3652 = vperm.xlu0 %3651, %v2637
        %v3653 = vpop.permute.xlu0 %3652
        %3655 = vset.pattern.permute.xlu0 28
        %3656 = vperm.xlu0 %3655, %v2638
        %v3657 = vpop.permute.xlu0 %3656
        %3659 = vset.pattern.permute.xlu0 28
        %3660 = vperm.xlu0 %3659, %v2639
        %v3661 = vpop.permute.xlu0 %3660
        %3663 = vset.pattern.permute.xlu0 28
        %3664 = vperm.xlu0 %3663, %v2640
        %v3665 = vpop.permute.xlu0 %3664
        %3667 = vset.pattern.permute.xlu0 28
        %3668 = vperm.xlu0 %3667, %v2641
        %v3669 = vpop.permute.xlu0 %3668
        %3671 = vset.pattern.permute.xlu0 28
        %3672 = vperm.xlu0 %3671, %v2642
        %v3673 = vpop.permute.xlu0 %3672
        %v3675 = vmul.f32 %v3645, %v3627
        %v3676 = vmul.f32 %v3645, %v3628
        %v3677 = vmul.f32 %v3649, %v3629
        %v3678 = vmul.f32 %v3649, %v3630
        %v3679 = vmul.f32 %v3653, %v3631
        %v3680 = vmul.f32 %v3653, %v3632
        %v3681 = vmul.f32 %v3657, %v3633
        %v3682 = vmul.f32 %v3657, %v3634
        %v3683 = vmul.f32 %v3661, %v3635
        %v3684 = vmul.f32 %v3661, %v3636
        %v3685 = vmul.f32 %v3665, %v3637
        %v3686 = vmul.f32 %v3665, %v3638
        %v3687 = vmul.f32 %v3669, %v3639
        %v3688 = vmul.f32 %v3669, %v3640
        %v3689 = vmul.f32 %v3673, %v3641
        %v3690 = vmul.f32 %v3673, %v3642
        %v3691 = vadd.f32 %v3611, %v3675
        %v3692 = vadd.f32 %v3612, %v3676
        %v3693 = vadd.f32 %v3613, %v3677
        %v3694 = vadd.f32 %v3614, %v3678
        %v3695 = vadd.f32 %v3615, %v3679
        %v3696 = vadd.f32 %v3616, %v3680
        %v3697 = vadd.f32 %v3617, %v3681
        %v3698 = vadd.f32 %v3618, %v3682
        %v3699 = vadd.f32 %v3619, %v3683
        %v3700 = vadd.f32 %v3620, %v3684
        %v3701 = vadd.f32 %v3621, %v3685
        %v3702 = vadd.f32 %v3622, %v3686
        %v3703 = vadd.f32 %v3623, %v3687
        %v3704 = vadd.f32 %v3624, %v3688
        %v3705 = vadd.f32 %v3625, %v3689
        %v3706 = vadd.f32 %v3626, %v3690
        %v3707 = vmul.f32 %v3627, %v2660
        %v3708 = vmul.f32 %v3628, %v2662
        %v3709 = vmul.f32 %v3629, %v2664
        %v3710 = vmul.f32 %v3630, %v2666
        %v3711 = vmul.f32 %v3631, %v2668
        %v3712 = vmul.f32 %v3632, %v2670
        %v3713 = vmul.f32 %v3633, %v2672
        %v3714 = vmul.f32 %v3634, %v2674
        %v3715 = vmul.f32 %v3635, %v2676
        %v3716 = vmul.f32 %v3636, %v2678
        %v3717 = vmul.f32 %v3637, %v2680
        %v3718 = vmul.f32 %v3638, %v2682
        %v3719 = vmul.f32 %v3639, %v2684
        %v3720 = vmul.f32 %v3640, %v2686
        %v3721 = vmul.f32 %v3641, %v2688
        %v3722 = vmul.f32 %v3642, %v2690
        %3723 = vset.pattern.permute.xlu0 29
        %3724 = vperm.xlu0 %3723, %v2635
        %v3725 = vpop.permute.xlu0 %3724
        %3727 = vset.pattern.permute.xlu0 29
        %3728 = vperm.xlu0 %3727, %v2636
        %v3729 = vpop.permute.xlu0 %3728
        %3731 = vset.pattern.permute.xlu0 29
        %3732 = vperm.xlu0 %3731, %v2637
        %v3733 = vpop.permute.xlu0 %3732
        %3735 = vset.pattern.permute.xlu0 29
        %3736 = vperm.xlu0 %3735, %v2638
        %v3737 = vpop.permute.xlu0 %3736
        %3739 = vset.pattern.permute.xlu0 29
        %3740 = vperm.xlu0 %3739, %v2639
        %v3741 = vpop.permute.xlu0 %3740
        %3743 = vset.pattern.permute.xlu0 29
        %3744 = vperm.xlu0 %3743, %v2640
        %v3745 = vpop.permute.xlu0 %3744
        %3747 = vset.pattern.permute.xlu0 29
        %3748 = vperm.xlu0 %3747, %v2641
        %v3749 = vpop.permute.xlu0 %3748
        %3751 = vset.pattern.permute.xlu0 29
        %3752 = vperm.xlu0 %3751, %v2642
        %v3753 = vpop.permute.xlu0 %3752
        %v3755 = vmul.f32 %v3725, %v3707
        %v3756 = vmul.f32 %v3725, %v3708
        %v3757 = vmul.f32 %v3729, %v3709
        %v3758 = vmul.f32 %v3729, %v3710
        %v3759 = vmul.f32 %v3733, %v3711
        %v3760 = vmul.f32 %v3733, %v3712
        %v3761 = vmul.f32 %v3737, %v3713
        %v3762 = vmul.f32 %v3737, %v3714
        %v3763 = vmul.f32 %v3741, %v3715
        %v3764 = vmul.f32 %v3741, %v3716
        %v3765 = vmul.f32 %v3745, %v3717
        %v3766 = vmul.f32 %v3745, %v3718
        %v3767 = vmul.f32 %v3749, %v3719
        %v3768 = vmul.f32 %v3749, %v3720
        %v3769 = vmul.f32 %v3753, %v3721
        %v3770 = vmul.f32 %v3753, %v3722
        %v3771 = vadd.f32 %v3691, %v3755
        %v3772 = vadd.f32 %v3692, %v3756
        %v3773 = vadd.f32 %v3693, %v3757
        %v3774 = vadd.f32 %v3694, %v3758
        %v3775 = vadd.f32 %v3695, %v3759
        %v3776 = vadd.f32 %v3696, %v3760
        %v3777 = vadd.f32 %v3697, %v3761
        %v3778 = vadd.f32 %v3698, %v3762
        %v3779 = vadd.f32 %v3699, %v3763
        %v3780 = vadd.f32 %v3700, %v3764
        %v3781 = vadd.f32 %v3701, %v3765
        %v3782 = vadd.f32 %v3702, %v3766
        %v3783 = vadd.f32 %v3703, %v3767
        %v3784 = vadd.f32 %v3704, %v3768
        %v3785 = vadd.f32 %v3705, %v3769
        %v3786 = vadd.f32 %v3706, %v3770
        %v3787 = vmul.f32 %v3707, %v2660
        %v3788 = vmul.f32 %v3708, %v2662
        %v3789 = vmul.f32 %v3709, %v2664
        %v3790 = vmul.f32 %v3710, %v2666
        %v3791 = vmul.f32 %v3711, %v2668
        %v3792 = vmul.f32 %v3712, %v2670
        %v3793 = vmul.f32 %v3713, %v2672
        %v3794 = vmul.f32 %v3714, %v2674
        %v3795 = vmul.f32 %v3715, %v2676
        %v3796 = vmul.f32 %v3716, %v2678
        %v3797 = vmul.f32 %v3717, %v2680
        %v3798 = vmul.f32 %v3718, %v2682
        %v3799 = vmul.f32 %v3719, %v2684
        %v3800 = vmul.f32 %v3720, %v2686
        %v3801 = vmul.f32 %v3721, %v2688
        %v3802 = vmul.f32 %v3722, %v2690
        %3803 = vset.pattern.permute.xlu0 30
        %3804 = vperm.xlu0 %3803, %v2635
        %v3805 = vpop.permute.xlu0 %3804
        %3807 = vset.pattern.permute.xlu0 30
        %3808 = vperm.xlu0 %3807, %v2636
        %v3809 = vpop.permute.xlu0 %3808
        %3811 = vset.pattern.permute.xlu0 30
        %3812 = vperm.xlu0 %3811, %v2637
        %v3813 = vpop.permute.xlu0 %3812
        %3815 = vset.pattern.permute.xlu0 30
        %3816 = vperm.xlu0 %3815, %v2638
        %v3817 = vpop.permute.xlu0 %3816
        %3819 = vset.pattern.permute.xlu0 30
        %3820 = vperm.xlu0 %3819, %v2639
        %v3821 = vpop.permute.xlu0 %3820
        %3823 = vset.pattern.permute.xlu0 30
        %3824 = vperm.xlu0 %3823, %v2640
        %v3825 = vpop.permute.xlu0 %3824
        %3827 = vset.pattern.permute.xlu0 30
        %3828 = vperm.xlu0 %3827, %v2641
        %v3829 = vpop.permute.xlu0 %3828
        %3831 = vset.pattern.permute.xlu0 30
        %3832 = vperm.xlu0 %3831, %v2642
        %v3833 = vpop.permute.xlu0 %3832
        %v3835 = vmul.f32 %v3805, %v3787
        %v3836 = vmul.f32 %v3805, %v3788
        %v3837 = vmul.f32 %v3809, %v3789
        %v3838 = vmul.f32 %v3809, %v3790
        %v3839 = vmul.f32 %v3813, %v3791
        %v3840 = vmul.f32 %v3813, %v3792
        %v3841 = vmul.f32 %v3817, %v3793
        %v3842 = vmul.f32 %v3817, %v3794
        %v3843 = vmul.f32 %v3821, %v3795
        %v3844 = vmul.f32 %v3821, %v3796
        %v3845 = vmul.f32 %v3825, %v3797
        %v3846 = vmul.f32 %v3825, %v3798
        %v3847 = vmul.f32 %v3829, %v3799
        %v3848 = vmul.f32 %v3829, %v3800
        %v3849 = vmul.f32 %v3833, %v3801
        %v3850 = vmul.f32 %v3833, %v3802
        %v3851 = vadd.f32 %v3771, %v3835
        %v3852 = vadd.f32 %v3772, %v3836
        %v3853 = vadd.f32 %v3773, %v3837
        %v3854 = vadd.f32 %v3774, %v3838
        %v3855 = vadd.f32 %v3775, %v3839
        %v3856 = vadd.f32 %v3776, %v3840
        %v3857 = vadd.f32 %v3777, %v3841
        %v3858 = vadd.f32 %v3778, %v3842
        %v3859 = vadd.f32 %v3779, %v3843
        %v3860 = vadd.f32 %v3780, %v3844
        %v3861 = vadd.f32 %v3781, %v3845
        %v3862 = vadd.f32 %v3782, %v3846
        %v3863 = vadd.f32 %v3783, %v3847
        %v3864 = vadd.f32 %v3784, %v3848
        %v3865 = vadd.f32 %v3785, %v3849
        %v3866 = vadd.f32 %v3786, %v3850
        %v3867 = vmul.f32 %v3787, %v2660
        %v3868 = vmul.f32 %v3788, %v2662
        %v3869 = vmul.f32 %v3789, %v2664
        %v3870 = vmul.f32 %v3790, %v2666
        %v3871 = vmul.f32 %v3791, %v2668
        %v3872 = vmul.f32 %v3792, %v2670
        %v3873 = vmul.f32 %v3793, %v2672
        %v3874 = vmul.f32 %v3794, %v2674
        %v3875 = vmul.f32 %v3795, %v2676
        %v3876 = vmul.f32 %v3796, %v2678
        %v3877 = vmul.f32 %v3797, %v2680
        %v3878 = vmul.f32 %v3798, %v2682
        %v3879 = vmul.f32 %v3799, %v2684
        %v3880 = vmul.f32 %v3800, %v2686
        %v3881 = vmul.f32 %v3801, %v2688
        %v3882 = vmul.f32 %v3802, %v2690
        %3883 = vset.pattern.permute.xlu0 31
        %3884 = vperm.xlu0 %3883, %v2635
        %v3885 = vpop.permute.xlu0 %3884
        %3887 = vset.pattern.permute.xlu0 31
        %3888 = vperm.xlu0 %3887, %v2636
        %v3889 = vpop.permute.xlu0 %3888
        %3891 = vset.pattern.permute.xlu0 31
        %3892 = vperm.xlu0 %3891, %v2637
        %v3893 = vpop.permute.xlu0 %3892
        %3895 = vset.pattern.permute.xlu0 31
        %3896 = vperm.xlu0 %3895, %v2638
        %v3897 = vpop.permute.xlu0 %3896
        %3899 = vset.pattern.permute.xlu0 31
        %3900 = vperm.xlu0 %3899, %v2639
        %v3901 = vpop.permute.xlu0 %3900
        %3903 = vset.pattern.permute.xlu0 31
        %3904 = vperm.xlu0 %3903, %v2640
        %v3905 = vpop.permute.xlu0 %3904
        %3907 = vset.pattern.permute.xlu0 31
        %3908 = vperm.xlu0 %3907, %v2641
        %v3909 = vpop.permute.xlu0 %3908
        %3911 = vset.pattern.permute.xlu0 31
        %3912 = vperm.xlu0 %3911, %v2642
        %v3913 = vpop.permute.xlu0 %3912
        %v3915 = vmul.f32 %v3885, %v3867
        %v3916 = vmul.f32 %v3885, %v3868
        %v3917 = vmul.f32 %v3889, %v3869
        %v3918 = vmul.f32 %v3889, %v3870
        %v3919 = vmul.f32 %v3893, %v3871
        %v3920 = vmul.f32 %v3893, %v3872
        %v3921 = vmul.f32 %v3897, %v3873
        %v3922 = vmul.f32 %v3897, %v3874
        %v3923 = vmul.f32 %v3901, %v3875
        %v3924 = vmul.f32 %v3901, %v3876
        %v3925 = vmul.f32 %v3905, %v3877
        %v3926 = vmul.f32 %v3905, %v3878
        %v3927 = vmul.f32 %v3909, %v3879
        %v3928 = vmul.f32 %v3909, %v3880
        %v3929 = vmul.f32 %v3913, %v3881
        %v3930 = vmul.f32 %v3913, %v3882
        %v3931 = vadd.f32 %v3851, %v3915
        %v3932 = vadd.f32 %v3852, %v3916
        %v3933 = vadd.f32 %v3853, %v3917
        %v3934 = vadd.f32 %v3854, %v3918
        %v3935 = vadd.f32 %v3855, %v3919
        %v3936 = vadd.f32 %v3856, %v3920
        %v3937 = vadd.f32 %v3857, %v3921
        %v3938 = vadd.f32 %v3858, %v3922
        %v3939 = vadd.f32 %v3859, %v3923
        %v3940 = vadd.f32 %v3860, %v3924
        %v3941 = vadd.f32 %v3861, %v3925
        %v3942 = vadd.f32 %v3862, %v3926
        %v3943 = vadd.f32 %v3863, %v3927
        %v3944 = vadd.f32 %v3864, %v3928
        %v3945 = vadd.f32 %v3865, %v3929
        %v3946 = vadd.f32 %v3866, %v3930
        %v3947 = vmul.f32 %v3931, %v1984
        %v3948 = vmul.f32 %v3932, %v1985
        %v3949 = vmul.f32 %v3933, %v1986
        %v3950 = vmul.f32 %v3934, %v1987
        %v3951 = vmul.f32 %v3935, %v1988
        %v3952 = vmul.f32 %v3936, %v1989
        %v3953 = vmul.f32 %v3937, %v1990
        %v3954 = vmul.f32 %v3938, %v1991
        %v3955 = vmul.f32 %v3939, %v1992
        %v3956 = vmul.f32 %v3940, %v1993
        %v3957 = vmul.f32 %v3941, %v1994
        %v3958 = vmul.f32 %v3942, %v1995
        %v3959 = vmul.f32 %v3943, %v1996
        %v3960 = vmul.f32 %v3944, %v1997
        %v3961 = vmul.f32 %v3945, %v1998
        %v3962 = vmul.f32 %v3946, %v1999
        %v3963 = vld [vmem:[%s10] sm:$0x3]
        %v3965 = vlaneseq
        %v3966 = vshrl.u32 %v3965, 7
        %v3967 = vsub.s32 0, %v3966
        %v3968 = vrot.slane %v3963, %v3967
        %v3969 = vlaneseq
        %v3970 = vshrl.u32 %v3969, 7
        %v3971 = vsub.s32 1, %v3970
        %v3972 = vrot.slane %v3963, %v3971
        %v3975 = vmul.f32 %v1514, %v3968
        %v3976 = vmul.f32 %v1515, %v3972
        %v3977 = vmul.f32 %v1516, %v3968
        %v3978 = vmul.f32 %v1517, %v3972
        %v3979 = vmul.f32 %v1518, %v3968
        %v3980 = vmul.f32 %v1519, %v3972
        %v3981 = vmul.f32 %v1520, %v3968
        %v3982 = vmul.f32 %v1521, %v3972
        %v3983 = vmul.f32 %v1522, %v3968
        %v3984 = vmul.f32 %v1523, %v3972
        %v3985 = vmul.f32 %v1524, %v3968
        %v3986 = vmul.f32 %v1525, %v3972
        %v3987 = vmul.f32 %v1526, %v3968
        %v3988 = vmul.f32 %v1527, %v3972
        %v3989 = vmul.f32 %v1528, %v3968
        %v3990 = vmul.f32 %v1529, %v3972
        %v3991 = vsel %vm2016, %v3975, 0.0
        %v3992 = vsel %vm2016, %v3976, 0.0
        %v3993 = vsel %vm2017, %v3977, 0.0
        %v3994 = vsel %vm2017, %v3978, 0.0
        %v3995 = vsel %vm2018, %v3979, 0.0
        %v3996 = vsel %vm2018, %v3980, 0.0
        %v3997 = vsel %vm2019, %v3981, 0.0
        %v3998 = vsel %vm2019, %v3982, 0.0
        %v3999 = vsel %vm2020, %v3983, 0.0
        %v4000 = vsel %vm2020, %v3984, 0.0
        %v4001 = vsel %vm2021, %v3985, 0.0
        %v4002 = vsel %vm2021, %v3986, 0.0
        %v4003 = vsel %vm2022, %v3987, 0.0
        %v4004 = vsel %vm2022, %v3988, 0.0
        %v4005 = vsel %vm2023, %v3989, 0.0
        %v4006 = vsel %vm2023, %v3990, 0.0
        %v4007 = vadd.f32 %v3947, %v3991
        %v4008 = vadd.f32 %v3948, %v3992
        %v4009 = vadd.f32 %v3949, %v3993
        %v4010 = vadd.f32 %v3950, %v3994
        %v4011 = vadd.f32 %v3951, %v3995
        %v4012 = vadd.f32 %v3952, %v3996
        %v4013 = vadd.f32 %v3953, %v3997
        %v4014 = vadd.f32 %v3954, %v3998
        %v4015 = vadd.f32 %v3955, %v3999
        %v4016 = vadd.f32 %v3956, %v4000
        %v4017 = vadd.f32 %v3957, %v4001
        %v4018 = vadd.f32 %v3958, %v4002
        %v4019 = vadd.f32 %v3959, %v4003
        %v4020 = vadd.f32 %v3960, %v4004
        %v4021 = vadd.f32 %v3961, %v4005
        %v4022 = vadd.f32 %v3962, %v4006
        %v4023 = vsel %vm2016, %v920, 0.0
        %v4024 = vsel %vm2016, %v922, 0.0
        %v4025 = vsel %vm2017, %v926, 0.0
        %v4026 = vsel %vm2017, %v928, 0.0
        %v4027 = vsel %vm2018, %v932, 0.0
        %v4028 = vsel %vm2018, %v934, 0.0
        %v4029 = vsel %vm2019, %v938, 0.0
        %v4030 = vsel %vm2019, %v940, 0.0
        %v4031 = vsel %vm2020, %v944, 0.0
        %v4032 = vsel %vm2020, %v946, 0.0
        %v4033 = vsel %vm2021, %v950, 0.0
        %v4034 = vsel %vm2021, %v952, 0.0
        %v4035 = vsel %vm2022, %v956, 0.0
        %v4036 = vsel %vm2022, %v958, 0.0
        %v4037 = vsel %vm2023, %v962, 0.0
        %v4038 = vsel %vm2023, %v964, 0.0
        %v4039 = vld [vmem:[%s14] sm:$0xff]
        %vm4040 = vcmask 523264
        %v4042 = vsel %vm4040, %v4039, 0
        %4044 = vmatprep.subr.mxu0 %v4008
        %4045 = vmatpush1.msra.mxu0 %v4007
        %4046 = vmatprep.subr.mxu0 %v4010
        %4047 = vmatpush1.msra.mxu0 %v4009
        %4048 = vmatprep.subr.mxu0 %v4012
        %4049 = vmatpush1.msra.mxu0 %v4011
        %4050 = vmatprep.subr.mxu0 %v4014
        %4051 = vmatpush1.msra.mxu0 %v4013
        %4052 = vmatprep.subr.mxu0 %v4016
        %4053 = vmatpush1.msra.mxu0 %v4015
        %4054 = vmatprep.subr.mxu0 %v4018
        %4055 = vmatpush1.msra.mxu0 %v4017
        %4056 = vmatprep.subr.mxu0 %v4020
        %4057 = vmatpush1.msra.mxu0 %v4019
        %4058 = vmatprep.subr.mxu0 %v4022
        %4059 = vmatpush1.msra.mxu0 %v4021
        %4060 = vmatprep.subr.mxu0 0.0
        %4061 = vmatpush1.msra.mxu0 0.0
        %4062 = vmatprep.subr.mxu0 0.0
        %4063 = vmatpush1.msra.mxu0 0.0
        %4064 = vmatprep.subr.mxu0 0.0
        %4065 = vmatpush1.msra.mxu0 0.0
        %4066 = vmatprep.subr.mxu0 0.0
        %4067 = vmatpush1.msra.mxu0 0.0
        %4068 = vmatprep.subr.mxu0 0.0
        %4069 = vmatpush1.msra.mxu0 0.0
        %4070 = vmatprep.subr.mxu0 0.0
        %4071 = vmatpush1.msra.mxu0 0.0
        %4072 = vmatprep.subr.mxu0 0.0
        %4073 = vmatpush1.msra.mxu0 0.0
        %4074 = vmatprep.subr.mxu0 0.0
        %4075 = vmatpush1.msra.mxu0 0.0
        %4076 = vmatprep.subr.mxu0 0.0
        %4077 = vmatpush1.msra.mxu0 0.0
        %4078 = vmatprep.subr.mxu0 0.0
        %4079 = vmatpush1.msra.mxu0 0.0
        %4080 = vmatprep.subr.mxu0 0.0
        %4081 = vmatpush1.msra.mxu0 0.0
        %4082 = vmatprep.subr.mxu0 0.0
        %4083 = vmatpush1.msra.mxu0 0.0
        %4084 = vmatprep.subr.mxu0 0.0
        %4085 = vmatpush1.msra.mxu0 0.0
        %4086 = vmatprep.subr.mxu0 0.0
        %4087 = vmatpush1.msra.mxu0 0.0
        %4088 = vmatprep.subr.mxu0 0.0
        %4089 = vmatpush1.msra.mxu0 0.0
        %4090 = vmatprep.subr.mxu0 0.0
        %4091 = vmatpush1.msra.mxu0 0.0
        %4092 = vmatprep.subr.mxu0 0.0
        %4093 = vmatpush1.msra.mxu0 0.0
        %4094 = vmatprep.subr.mxu0 0.0
        %4095 = vmatpush1.msra.mxu0 0.0
        %4096 = vmatprep.subr.mxu0 0.0
        %4097 = vmatpush1.msra.mxu0 0.0
        %4098 = vmatprep.subr.mxu0 0.0
        %4099 = vmatpush1.msra.mxu0 0.0
        %4100 = vmatprep.subr.mxu0 0.0
        %4101 = vmatpush1.msra.mxu0 0.0
        %4102 = vmatprep.subr.mxu0 0.0
        %4103 = vmatpush1.msra.mxu0 0.0
        %4104 = vmatprep.subr.mxu0 0.0
        %4105 = vmatpush1.msra.mxu0 0.0
        %4106 = vmatprep.subr.mxu0 0.0
        %4107 = vmatpush1.msra.mxu0 0.0
        %4108 = vmatprep.mubr.f32.mxu0 0.0
        %4109 = vmatmul.mubr.f32.gmra.mrb[0].mxu0 %v4042
        %v4110 = vpop.f32.mrb[0].mxu0
        %v4111 = vadd.f32 0.0, %v4110
        %v4112 = vpop.f32.mrb[0].mxu0
        %v4113 = vadd.f32 0.0, %v4112
        %4114 = vdwg.mxu0
        %4115 = vmatprep.subr.mxu0 %v4024
        %4116 = vmatpush1.msra.mxu0 %v4023
        %4117 = vmatprep.subr.mxu0 %v4026
        %4118 = vmatpush1.msra.mxu0 %v4025
        %4119 = vmatprep.subr.mxu0 %v4028
        %4120 = vmatpush1.msra.mxu0 %v4027
        %4121 = vmatprep.subr.mxu0 %v4030
        %4122 = vmatpush1.msra.mxu0 %v4029
        %4123 = vmatprep.subr.mxu0 %v4032
        %4124 = vmatpush1.msra.mxu0 %v4031
        %4125 = vmatprep.subr.mxu0 %v4034
        %4126 = vmatpush1.msra.mxu0 %v4033
        %4127 = vmatprep.subr.mxu0 %v4036
        %4128 = vmatpush1.msra.mxu0 %v4035
        %4129 = vmatprep.subr.mxu0 %v4038
        %4130 = vmatpush1.msra.mxu0 %v4037
        %4131 = vmatprep.subr.mxu0 0.0
        %4132 = vmatpush1.msra.mxu0 0.0
        %4133 = vmatprep.subr.mxu0 0.0
        %4134 = vmatpush1.msra.mxu0 0.0
        %4135 = vmatprep.subr.mxu0 0.0
        %4136 = vmatpush1.msra.mxu0 0.0
        %4137 = vmatprep.subr.mxu0 0.0
        %4138 = vmatpush1.msra.mxu0 0.0
        %4139 = vmatprep.subr.mxu0 0.0
        %4140 = vmatpush1.msra.mxu0 0.0
        %4141 = vmatprep.subr.mxu0 0.0
        %4142 = vmatpush1.msra.mxu0 0.0
        %4143 = vmatprep.subr.mxu0 0.0
        %4144 = vmatpush1.msra.mxu0 0.0
        %4145 = vmatprep.subr.mxu0 0.0
        %4146 = vmatpush1.msra.mxu0 0.0
        %4147 = vmatprep.subr.mxu0 0.0
        %4148 = vmatpush1.msra.mxu0 0.0
        %4149 = vmatprep.subr.mxu0 0.0
        %4150 = vmatpush1.msra.mxu0 0.0
        %4151 = vmatprep.subr.mxu0 0.0
        %4152 = vmatpush1.msra.mxu0 0.0
        %4153 = vmatprep.subr.mxu0 0.0
        %4154 = vmatpush1.msra.mxu0 0.0
        %4155 = vmatprep.subr.mxu0 0.0
        %4156 = vmatpush1.msra.mxu0 0.0
        %4157 = vmatprep.subr.mxu0 0.0
        %4158 = vmatpush1.msra.mxu0 0.0
        %4159 = vmatprep.subr.mxu0 0.0
        %4160 = vmatpush1.msra.mxu0 0.0
        %4161 = vmatprep.subr.mxu0 0.0
        %4162 = vmatpush1.msra.mxu0 0.0
        %4163 = vmatprep.subr.mxu0 0.0
        %4164 = vmatpush1.msra.mxu0 0.0
        %4165 = vmatprep.subr.mxu0 0.0
        %4166 = vmatpush1.msra.mxu0 0.0
        %4167 = vmatprep.subr.mxu0 0.0
        %4168 = vmatpush1.msra.mxu0 0.0
        %4169 = vmatprep.subr.mxu0 0.0
        %4170 = vmatpush1.msra.mxu0 0.0
        %4171 = vmatprep.subr.mxu0 0.0
        %4172 = vmatpush1.msra.mxu0 0.0
        %4173 = vmatprep.subr.mxu0 0.0
        %4174 = vmatpush1.msra.mxu0 0.0
        %4175 = vmatprep.subr.mxu0 0.0
        %4176 = vmatpush1.msra.mxu0 0.0
        %4177 = vmatprep.subr.mxu0 0.0
        %4178 = vmatpush1.msra.mxu0 0.0
        %4179 = vmatprep.mubr.f32.mxu0 0.0
        %4180 = vmatmul.mubr.f32.gmra.mrb[0].mxu0 %v4042
        %v4181 = vpop.f32.mrb[0].mxu0
        %v4182 = vadd.f32 0.0, %v4181
        %v4183 = vpop.f32.mrb[0].mxu0
        %v4184 = vadd.f32 0.0, %v4183
        %4185 = vdwg.mxu0
        %v4186 = vsub.f32 0.0, %v4182
        %v4187 = vsub.f32 0.0, %v4184
        %v4188 = vmul.f32 %v4186, 1.442695
        %v4189 = vpow.pop %v4188
        %v4190 = vmul.f32 %v4187, 1.442695
        %v4191 = vpow.pop %v4190
        %v4192 = vadd.f32 %v4189, 1.0
        %v4193 = vadd.f32 %v4191, 1.0
        %v4194 = vrcp.pop %v4192
        %v4195 = vmul.f32 1.0, %v4194
        %v4196 = vrcp.pop %v4193
        %v4197 = vmul.f32 1.0, %v4196
        %v4198 = vmul.f32 %v4182, %v4195
        %v4199 = vmul.f32 %v4184, %v4197
        %v4200 = vmul.f32 %v4111, %v4198
        %v4201 = vmul.f32 %v4113, %v4199
        %v4202 = vld [vmem:[%s11] sm:$0xff]
        %v4203 = vld [vmem:[%s11 + $0x8] sm:$0xff]
        %v4204 = vld [vmem:[%s11 + $0x10] sm:$0xff]
        %v4205 = vld [vmem:[%s11 + $0x18] sm:$0xff]
        %v4206 = vld [vmem:[%s11 + $0x20] sm:$0xff]
        %v4207 = vld [vmem:[%s11 + $0x28] sm:$0xff]
        %v4208 = vld [vmem:[%s11 + $0x30] sm:$0xff]
        %v4209 = vld [vmem:[%s11 + $0x38] sm:$0xff]
        %v4210 = vld [vmem:[%s11 + $0x40] sm:$0xff]
        %v4211 = vld [vmem:[%s11 + $0x48] sm:$0xff]
        %v4212 = vld [vmem:[%s11 + $0x50] sm:$0xff]
        %v4213 = vld [vmem:[%s11 + $0x58] sm:$0xff]
        %v4214 = vld [vmem:[%s11 + $0x60] sm:$0xff]
        %v4215 = vld [vmem:[%s11 + $0x68] sm:$0xff]
        %v4216 = vld [vmem:[%s11 + $0x70] sm:$0xff]
        %v4217 = vld [vmem:[%s11 + $0x78] sm:$0xff]
        %v4218 = vld [vmem:[%s11 + $0x80] sm:$0xff]
        %v4219 = vld [vmem:[%s11 + $0x88] sm:$0xff]
        %v4220 = vld [vmem:[%s11 + $0x90] sm:$0xff]
        %v4221 = vld [vmem:[%s11 + $0x98] sm:$0xff]
        %v4222 = vld [vmem:[%s11 + $0xa0] sm:$0xff]
        %v4223 = vld [vmem:[%s11 + $0xa8] sm:$0xff]
        %v4224 = vld [vmem:[%s11 + $0xb0] sm:$0xff]
        %v4225 = vld [vmem:[%s11 + $0xb8] sm:$0xff]
        %v4226 = vld [vmem:[%s11 + $0xc0] sm:$0xff]
        %v4227 = vld [vmem:[%s11 + $0xc8] sm:$0xff]
        %v4228 = vld [vmem:[%s11 + $0xd0] sm:$0xff]
        %v4229 = vld [vmem:[%s11 + $0xd8] sm:$0xff]
        %v4230 = vld [vmem:[%s11 + $0xe0] sm:$0xff]
        %v4231 = vld [vmem:[%s11 + $0xe8] sm:$0xff]
        %v4232 = vld [vmem:[%s11 + $0xf0] sm:$0xff]
        %v4233 = vld [vmem:[%s11 + $0xf8] sm:$0xff]
        %4234 = vmatprep.subr.mxu0 0.0
        %4235 = vmatpush1.msra.mxu0 %v4202
        %4236 = vmatprep.subr.mxu0 0.0
        %4237 = vmatpush1.msra.mxu0 %v4203
        %4238 = vmatprep.subr.mxu0 0.0
        %4239 = vmatpush1.msra.mxu0 %v4204
        %4240 = vmatprep.subr.mxu0 0.0
        %4241 = vmatpush1.msra.mxu0 %v4205
        %4242 = vmatprep.subr.mxu0 0.0
        %4243 = vmatpush1.msra.mxu0 %v4206
        %4244 = vmatprep.subr.mxu0 0.0
        %4245 = vmatpush1.msra.mxu0 %v4207
        %4246 = vmatprep.subr.mxu0 0.0
        %4247 = vmatpush1.msra.mxu0 %v4208
        %4248 = vmatprep.subr.mxu0 0.0
        %4249 = vmatpush1.msra.mxu0 %v4209
        %4250 = vmatprep.subr.mxu0 0.0
        %4251 = vmatpush1.msra.mxu0 %v4210
        %4252 = vmatprep.subr.mxu0 0.0
        %4253 = vmatpush1.msra.mxu0 %v4211
        %4254 = vmatprep.subr.mxu0 0.0
        %4255 = vmatpush1.msra.mxu0 %v4212
        %4256 = vmatprep.subr.mxu0 0.0
        %4257 = vmatpush1.msra.mxu0 %v4213
        %4258 = vmatprep.subr.mxu0 0.0
        %4259 = vmatpush1.msra.mxu0 %v4214
        %4260 = vmatprep.subr.mxu0 0.0
        %4261 = vmatpush1.msra.mxu0 %v4215
        %4262 = vmatprep.subr.mxu0 0.0
        %4263 = vmatpush1.msra.mxu0 %v4216
        %4264 = vmatprep.subr.mxu0 0.0
        %4265 = vmatpush1.msra.mxu0 %v4217
        %4266 = vmatprep.subr.mxu0 0.0
        %4267 = vmatpush1.msra.mxu0 %v4218
        %4268 = vmatprep.subr.mxu0 0.0
        %4269 = vmatpush1.msra.mxu0 %v4219
        %4270 = vmatprep.subr.mxu0 0.0
        %4271 = vmatpush1.msra.mxu0 %v4220
        %4272 = vmatprep.subr.mxu0 0.0
        %4273 = vmatpush1.msra.mxu0 %v4221
        %4274 = vmatprep.subr.mxu0 0.0
        %4275 = vmatpush1.msra.mxu0 %v4222
        %4276 = vmatprep.subr.mxu0 0.0
        %4277 = vmatpush1.msra.mxu0 %v4223
        %4278 = vmatprep.subr.mxu0 0.0
        %4279 = vmatpush1.msra.mxu0 %v4224
        %4280 = vmatprep.subr.mxu0 0.0
        %4281 = vmatpush1.msra.mxu0 %v4225
        %4282 = vmatprep.subr.mxu0 0.0
        %4283 = vmatpush1.msra.mxu0 %v4226
        %4284 = vmatprep.subr.mxu0 0.0
        %4285 = vmatpush1.msra.mxu0 %v4227
        %4286 = vmatprep.subr.mxu0 0.0
        %4287 = vmatpush1.msra.mxu0 %v4228
        %4288 = vmatprep.subr.mxu0 0.0
        %4289 = vmatpush1.msra.mxu0 %v4229
        %4290 = vmatprep.subr.mxu0 0.0
        %4291 = vmatpush1.msra.mxu0 %v4230
        %4292 = vmatprep.subr.mxu0 0.0
        %4293 = vmatpush1.msra.mxu0 %v4231
        %4294 = vmatprep.subr.mxu0 0.0
        %4295 = vmatpush1.msra.mxu0 %v4232
        %4296 = vmatprep.subr.mxu0 0.0
        %4297 = vmatpush1.msra.mxu0 %v4233
        %4298 = vmatprep.mubr.f32.mxu0 %v4201
        %4299 = vmatmul.mubr.f32.gmra.mrb[0].mxu0 %v4200
        %v4300 = vpop.f32.mrb[0].mxu0
        %v4301 = vadd.f32 0.0, %v4300
        %v4302 = vpop.f32.mrb[0].mxu0
        %4303 = vdwg.mxu0
        %v4304 = vld [vmem:[%s12] sm:$0xff]
        %v4305 = vld [vmem:[%s12 + $0x8] sm:$0xff]
        %v4306 = vld [vmem:[%s12 + $0x10] sm:$0xff]
        %v4307 = vld [vmem:[%s12 + $0x18] sm:$0xff]
        %v4308 = vld [vmem:[%s12 + $0x20] sm:$0xff]
        %v4309 = vld [vmem:[%s12 + $0x28] sm:$0xff]
        %v4310 = vld [vmem:[%s12 + $0x30] sm:$0xff]
        %v4311 = vld [vmem:[%s12 + $0x38] sm:$0xff]
        %v4312 = vld [vmem:[%s12 + $0x40] sm:$0xff]
        %v4313 = vld [vmem:[%s12 + $0x48] sm:$0xff]
        %v4314 = vld [vmem:[%s12 + $0x50] sm:$0xff]
        %v4315 = vld [vmem:[%s12 + $0x58] sm:$0xff]
        %v4316 = vld [vmem:[%s12 + $0x60] sm:$0xff]
        %v4317 = vld [vmem:[%s12 + $0x68] sm:$0xff]
        %v4318 = vld [vmem:[%s12 + $0x70] sm:$0xff]
        %v4319 = vld [vmem:[%s12 + $0x78] sm:$0xff]
        %v4320 = vld [vmem:[%s13] sm:$0x1]
        %v4322 = vlaneseq
        %v4323 = vshrl.u32 %v4322, 7
        %v4324 = vsub.s32 0, %v4323
        %v4325 = vrot.slane %v4320, %v4324
        %4327 = vmatprep.subr.mxu0 0.0
        %4328 = vmatpush1.msra.mxu0 %v4304
        %4329 = vmatprep.subr.mxu0 0.0
        %4330 = vmatpush1.msra.mxu0 %v4305
        %4331 = vmatprep.subr.mxu0 0.0
        %4332 = vmatpush1.msra.mxu0 %v4306
        %4333 = vmatprep.subr.mxu0 0.0
        %4334 = vmatpush1.msra.mxu0 %v4307
        %4335 = vmatprep.subr.mxu0 0.0
        %4336 = vmatpush1.msra.mxu0 %v4308
        %4337 = vmatprep.subr.mxu0 0.0
        %4338 = vmatpush1.msra.mxu0 %v4309
        %4339 = vmatprep.subr.mxu0 0.0
        %4340 = vmatpush1.msra.mxu0 %v4310
        %4341 = vmatprep.subr.mxu0 0.0
        %4342 = vmatpush1.msra.mxu0 %v4311
        %4343 = vmatprep.subr.mxu0 0.0
        %4344 = vmatpush1.msra.mxu0 %v4312
        %4345 = vmatprep.subr.mxu0 0.0
        %4346 = vmatpush1.msra.mxu0 %v4313
        %4347 = vmatprep.subr.mxu0 0.0
        %4348 = vmatpush1.msra.mxu0 %v4314
        %4349 = vmatprep.subr.mxu0 0.0
        %4350 = vmatpush1.msra.mxu0 %v4315
        %4351 = vmatprep.subr.mxu0 0.0
        %4352 = vmatpush1.msra.mxu0 %v4316
        %4353 = vmatprep.subr.mxu0 0.0
        %4354 = vmatpush1.msra.mxu0 %v4317
        %4355 = vmatprep.subr.mxu0 0.0
        %4356 = vmatpush1.msra.mxu0 %v4318
        %4357 = vmatprep.subr.mxu0 0.0
        %4358 = vmatpush1.msra.mxu0 %v4319
        %4359 = vmatprep.subr.mxu0 0.0
        %4360 = vmatpush1.msra.mxu0 0.0
        %4361 = vmatprep.subr.mxu0 0.0
        %4362 = vmatpush1.msra.mxu0 0.0
        %4363 = vmatprep.subr.mxu0 0.0
        %4364 = vmatpush1.msra.mxu0 0.0
        %4365 = vmatprep.subr.mxu0 0.0
        %4366 = vmatpush1.msra.mxu0 0.0
        %4367 = vmatprep.subr.mxu0 0.0
        %4368 = vmatpush1.msra.mxu0 0.0
        %4369 = vmatprep.subr.mxu0 0.0
        %4370 = vmatpush1.msra.mxu0 0.0
        %4371 = vmatprep.subr.mxu0 0.0
        %4372 = vmatpush1.msra.mxu0 0.0
        %4373 = vmatprep.subr.mxu0 0.0
        %4374 = vmatpush1.msra.mxu0 0.0
        %4375 = vmatprep.subr.mxu0 0.0
        %4376 = vmatpush1.msra.mxu0 0.0
        %4377 = vmatprep.subr.mxu0 0.0
        %4378 = vmatpush1.msra.mxu0 0.0
        %4379 = vmatprep.subr.mxu0 0.0
        %4380 = vmatpush1.msra.mxu0 0.0
        %4381 = vmatprep.subr.mxu0 0.0
        %4382 = vmatpush1.msra.mxu0 0.0
        %4383 = vmatprep.subr.mxu0 0.0
        %4384 = vmatpush1.msra.mxu0 0.0
        %4385 = vmatprep.subr.mxu0 0.0
        %4386 = vmatpush1.msra.mxu0 0.0
        %4387 = vmatprep.subr.mxu0 0.0
        %4388 = vmatpush1.msra.mxu0 0.0
        %4389 = vmatprep.subr.mxu0 0.0
        %4390 = vmatpush1.msra.mxu0 0.0
        %4391 = vmatprep.mubr.f32.mxu0 0.0
        %4392 = vmatmul.mubr.f32.gmra.mrb[0].mxu0 %v4301
        %v4393 = vpop.f32.mrb[0].mxu0
        %v4394 = vadd.f32 %v4325, %v4393
        %v4395 = vpop.f32.mrb[0].mxu0
        %4396 = vdwg.mxu0
        %4397 = vmax.xlane.f32.xlu0 %v4394
        %v4398 = vpop.xlane.xlu0 %4397
        %v4399 = vsub.f32 %v4394, %v4398
        %v4400 = vmul.f32 %v4399, 1.442695
        %v4401 = vpow.pop %v4400
        %4402 = vadd.xlane.f32.xlu0 %v4401
        %v4403 = vpop.xlane.xlu0 %4402
        %v4404 = vrcp.pop %v4403
        %v4405 = vmul.f32 %v4401, %v4404
        %4406 = vst [vmem:[%s488] sm:$0xff] %v4405
        %s4407 = sand.u32 %s357, 1
        %s4408 = scalar_lea.sflag [#allocation3], %s4407
        %s4409 = sand.u32 %s357, 1
        %s4410 = smul.addr %s4409, 8
        %s4411 = scalar_lea.vmem [#allocation2], %s4410
        // Predicated region
        $region81: #{tpu_custom_call.1} parent=79 // pred_check
          %p4412 = pneg %p367
        $region82: #{tpu_custom_call.1} parent=79 // pred_check_branch
          %4414 = sbr.rel (%p4412) target = $region84
        $region83: #{tpu_custom_call.1} parent=79 // pred_region
          %s4416 = ssub.s32 128, 128
          %4417 = vsyncadd %s4408, %s4416
          %s4418 = smul.addr %s29, 128
          %s4419 = scalar_lea.hbm %s15, %s4418
          %s4421 = sshll.u32 %s4411, 4
          %s4422 = int_to_ptr.vmem [resolvable:$true] %s4421
          %4424 = dma.vmem_to_hbm [thread:$0]  %s4422, 128, %s4419, %s4408
        $region84: #{tpu_custom_call.1} parent=79 // pred_fallthru
          _
      $region80: #{tpu_custom_call.1} parent=5 // pred_fallthru
        _
      %p4425 = scmp.le.s32.totalorder 2, %s24
      // Predicated region
      $region85: #{tpu_custom_call.1} parent=5 // pred_check
        %p4426 = pneg %p4425
      $region86: #{tpu_custom_call.1} parent=5 // pred_check_branch
        %4428 = sbr.rel (%p4426) target = $region88
      $region87: #{tpu_custom_call.1} parent=5 // pred_region
        %s4429 = ssub.s32 %s24, 2
        // Predicated region
        $region89: #{tpu_custom_call.1} parent=87 // pred_check
          %p4430 = pneg %p373
        $region90: #{tpu_custom_call.1} parent=87 // pred_check_branch
          %4432 = sbr.rel (%p4430) target = $region92
        $region91: #{tpu_custom_call.1} parent=87 // pred_region
          %s4433 = sand.u32 %s358, 1
          %s4434 = scalar_lea.sflag [#allocation3], %s4433
          %s4435 = sand.u32 %s358, 1
          %s4436 = smul.addr %s4435, 8
          %s4437 = scalar_lea.vmem [#allocation2], %s4436
          %4438 = dma.done %s4434, 128
        $region92: #{tpu_custom_call.1} parent=87 // pred_fallthru
          _
      $region88: #{tpu_custom_call.1} parent=5 // pred_fallthru
        _
    $region6: #{tpu_custom_call.1} parent=1 // loop_footer
      %s28 = sadd.s32 1, %s24
    $region7: #{tpu_custom_call.1} parent=1 // loop_footer_branch
      %23 = sbr.rel target = $region3
    $region8: #{tpu_custom_call.1} parent=1 // loop_exit
      _
    %4439 = vsyncpa [#allocation3], 1
    %s4440 = scalar_lea.sflag [#allocation3], 1
    %4441 = vsyncpa %s4440, 1

</llo_original>
